<compile_context>
chip_gen: v7x
topology: tpu7x:2x2x1
jax: 0.10.0
libtpu: 0.0.40
codegen_flags: <defaults>
</compile_context>

<pallas_src>
import functools

import jax
import jax.numpy as jnp
from jax.experimental import pallas as pl
from jax.experimental.pallas import tpu as pltpu

_MARGIN = 128  # left/right scratch-window margin: keeps the big band stores lane-aligned
               # and gives the +-1 column-shifted operand slices a valid (zeroed) border.


def _halo_rows(w):
    """Smallest power-of-two row count whose flattened width is a multiple of 128."""
    hr = 1
    while (hr * w) % 128 != 0:
        hr *= 2
    return hr  # <= 8 whenever W % 16 == 0


def _default_row_tile(h, w, c, itemsize=4, target_bytes=2 << 20):
    """Largest multiple-of-8 divisor of H whose (C, tr, W) slab stays ~<= 2 MiB."""
    best = 8
    for t in range(8, h + 1, 8):
        if h % t == 0 and c * t * w * itemsize <= target_bytes:
            best = t
    return best


def _default_col_tile(hw, c, itemsize=4, target_bytes=4 << 20):
    """Largest multiple-of-128 divisor of H*W whose (C, tile) slab stays ~<= 4 MiB."""
    best = 128
    for t in range(128, hw + 1, 128):
        if hw % t == 0 and c * t * itemsize <= target_bytes:
            best = t
    return best


# -----------------------------------------------------------------------------
# Fused 3x3 "same" conv: bias + optional ReLU + optional per-tile GAP partial sums
# -----------------------------------------------------------------------------
def _conv3x3_kernel(x_ref, top_ref, bot_ref, w_ref, b_ref, *rest,
                    apply_relu, compute_sums, row_tile, width, halo_rows):
    if compute_sums:
        o_ref, sums_ref, win = rest
    else:
        o_ref, win = rest
        sums_ref = None

    tr, w = row_tile, width
    trw = tr * w
    m = _MARGIN
    c = x_ref.shape[1]
    cd = win.dtype

    ti = pl.program_id(1)
    last = pl.num_programs(1) - 1

    xb = x_ref[0].astype(cd)                                    # (C, tr*W)

    # --- assemble the kh-stacked im2col window: band k (rows [k*C,(k+1)*C)) holds image
    #     row (r + k - 1) at output row r, placed at column offset m. ---
    win[c:2 * c, m:m + trw] = xb                                # kh = 1 (aligned full store)
    win[0:c, m + w:m + trw] = xb[:, 0:trw - w]                  # kh = 0 (rows shifted down)
    win[0:c, m:m + w] = top_ref[0, :, (halo_rows - 1) * w:halo_rows * w].astype(cd)
    win[2 * c:3 * c, m:m + trw - w] = xb[:, w:trw]              # kh = 2 (rows shifted up)
    win[2 * c:3 * c, m + trw - w:m + trw] = bot_ref[0, :, 0:w].astype(cd)

    @pl.when(ti == 0)                                           # top image border -> zeros
    def _():
        win[0:c, m:m + w] = jnp.zeros((c, w), cd)

    @pl.when(ti == last)                                        # bottom image border -> zeros
    def _():
        win[2 * c:3 * c, m + trw - w:m + trw] = jnp.zeros((c, w), cd)

    # Zero the single margin column on each side so the +-1 shifted operands below never
    # read stale scratch (lane masks would hide it, but keep it robust).
    win[:, m - 1:m] = jnp.zeros((3 * c, 1), cd)
    win[:, m + trw:m + trw + 1] = jnp.zeros((3 * c, 1), cd)

    # --- 3 MXU dots with K = 3*C (kw = 0, 1, 2); W-border zero padding via lane masks. ---
    col = jax.lax.broadcasted_iota(jnp.int32, (1, trw), 1) % w
    x_c = win[:, m:m + trw]
    x_l = jnp.where(col != 0, win[:, m - 1:m - 1 + trw], 0)
    x_r = jnp.where(col != w - 1, win[:, m + 1:m + 1 + trw], 0)

    hi = jax.lax.Precision.HIGHEST
    acc = jnp.dot(w_ref[1], x_c, precision=hi, preferred_element_type=jnp.float32)
    acc = acc + jnp.dot(w_ref[0], x_l, precision=hi, preferred_element_type=jnp.float32)
    acc = acc + jnp.dot(w_ref[2], x_r, precision=hi, preferred_element_type=jnp.float32)
    acc = acc + b_ref[...]                                      # (Cout, 1) broadcast, f32

    if compute_sums:
        # Per-tile partial sums for the CALayer global average pool (pre-activation).
        sums_ref[0, 0] = jnp.sum(acc, axis=1, keepdims=True)    # (Cout, 1)

    if apply_relu:
        acc = jnp.maximum(acc, 0.0)
    o_ref[0] = acc.astype(o_ref.dtype)


def conv3x3_bias_act(x, w_oihw, b, *, apply_relu, compute_sums=False,
                     row_tile=None, compute_dtype=None, vmem_limit_bytes=32 << 20):
    """nn.Conv2d(C, Cout, 3, padding=1, bias=True) [+ ReLU] on an NCHW tensor.

    Returns the NCHW output in compute_dtype; if compute_sums also returns the
    (N, Cout) f32 per-(n, c) spatial sums of the (pre-activation) output.
    """
    n, c, h, wd = x.shape
    cout = w_oihw.shape[0]
    assert w_oihw.shape == (cout, c, 3, 3)
    assert h % 8 == 0, "H must be a multiple of 8"
    assert wd % 16 == 0, "W must be a multiple of 16"

    tr = row_tile or _default_row_tile(h, wd, c)
    assert tr % 8 == 0 and h % tr == 0
    cd = jnp.dtype(compute_dtype) if compute_dtype is not None else jnp.dtype(x.dtype)
    hr = _halo_rows(wd)
    rb = tr // hr                       # hr-row blocks per row tile
    max_blk = h // hr - 1
    n_tiles = h // tr
    trw = tr * wd
    hw = h * wd

    x_flat = x.reshape(n, c, hw)        # free reshape; dtype cast happens in-kernel
    # kw-major, kh-stacked weights: w_k[kw][o, kh*C + i] = w_oihw[o, i, kh, kw]
    w_k = jnp.transpose(w_oihw, (3, 0, 2, 1)).reshape(3, cout, 3 * c).astype(cd)
    b_k = b.reshape(cout, 1).astype(jnp.float32)

    in_specs = [
        pl.BlockSpec((1, c, trw), lambda ni, ti: (ni, 0, ti)),
        # hr-row halo views of the same array: the rows just above / below the tile
        pl.BlockSpec((1, c, hr * wd),
                     lambda ni, ti: (ni, 0, jnp.maximum(ti * rb - 1, 0))),
        pl.BlockSpec((1, c, hr * wd),
                     lambda ni, ti: (ni, 0, jnp.minimum((ti + 1) * rb, max_blk))),
        pl.BlockSpec((3, cout, 3 * c), lambda ni, ti: (0, 0, 0)),   # resident weights
        pl.BlockSpec((cout, 1), lambda ni, ti: (0, 0)),             # resident bias
    ]
    out_shape = [jax.ShapeDtypeStruct((n, cout, hw), cd)]
    out_specs = [pl.BlockSpec((1, cout, trw), lambda ni, ti: (ni, 0, ti))]
    if compute_sums:
        out_shape.append(jax.ShapeDtypeStruct((n, n_tiles, cout, 1), jnp.float32))
        out_specs.append(pl.BlockSpec((1, 1, cout, 1), lambda ni, ti: (ni, ti, 0, 0)))

    kernel = functools.partial(_conv3x3_kernel, apply_relu=apply_relu,
                               compute_sums=compute_sums, row_tile=tr, width=wd,
                               halo_rows=hr)

    result = pl.pallas_call(
        kernel,
        grid=(n, n_tiles),
        in_specs=in_specs,
        out_specs=tuple(out_specs) if compute_sums else out_specs[0],
        out_shape=tuple(out_shape) if compute_sums else out_shape[0],
        scratch_shapes=[pltpu.VMEM((3 * c, 2 * _MARGIN + trw), cd)],
        compiler_params=pltpu.CompilerParams(
            dimension_semantics=("parallel", "parallel"),
            vmem_limit_bytes=vmem_limit_bytes),
    )(x_flat, x_flat, x_flat, w_k, b_k)

    if compute_sums:
        out_flat, partials = result
        return out_flat.reshape(n, cout, h, wd), partials.sum(axis=(1, 3))
    return result.reshape(n, cout, h, wd)


# -----------------------------------------------------------------------------
# Channel-attention apply + residual: out = res * (gate*res_scale) + x  (tiled)
# -----------------------------------------------------------------------------
def _ca_residual_kernel(res_ref, x_ref, g_ref, o_ref):
    res = res_ref[0].astype(jnp.float32)       # (C, T)
    xin = x_ref[0].astype(jnp.float32)         # (C, T)
    o_ref[0] = (res * g_ref[0] + xin).astype(o_ref.dtype)   # res_scale folded into gate


def ca_scale_residual(res, x, gate_scaled, *, col_tile=None, vmem_limit_bytes=32 << 20):
    n, c, h, wd = x.shape
    hw = h * wd
    tile = col_tile or _default_col_tile(hw, c)
    assert hw % tile == 0 and tile % 128 == 0
    res_f = res.reshape(n, c, hw)
    x_f = x.reshape(n, c, hw)
    g = gate_scaled.astype(jnp.float32).reshape(n, c, 1)

    out = pl.pallas_call(
        _ca_residual_kernel,
        grid=(n, hw // tile),
        in_specs=[
            pl.BlockSpec((1, c, tile), lambda ni, ti: (ni, 0, ti)),
            pl.BlockSpec((1, c, tile), lambda ni, ti: (ni, 0, ti)),
            pl.BlockSpec((1, c, 1), lambda ni, ti: (ni, 0, 0)),
        ],
        out_specs=pl.BlockSpec((1, c, tile), lambda ni, ti: (ni, 0, ti)),
        out_shape=jax.ShapeDtypeStruct((n, c, hw), x.dtype),
        compiler_params=pltpu.CompilerParams(
            dimension_semantics=("parallel", "parallel"),
            vmem_limit_bytes=vmem_limit_bytes),
    )(res_f, x_f, g)
    return out.reshape(n, c, h, wd)


# -----------------------------------------------------------------------------
# ResAttentionBlock.forward
# -----------------------------------------------------------------------------
def res_attention_block(x, params, res_scale=1.0, *, row_tile=None,
                        compute_dtype=None, vmem_limit_bytes=32 << 20):
    n, c, h, wd = x.shape

    # body: conv3x3 -> ReLU -> conv3x3 (per-tile GAP partial sums fused into conv2)
    h1 = conv3x3_bias_act(x, params["w_conv1"], params["b_conv1"],
                          apply_relu=True, compute_sums=False, row_tile=row_tile,
                          compute_dtype=compute_dtype, vmem_limit_bytes=vmem_limit_bytes)
    h2, sums = conv3x3_bias_act(h1, params["w_conv2"], params["b_conv2"],
                                apply_relu=False, compute_sums=True, row_tile=row_tile,
                                compute_dtype=compute_dtype,
                                vmem_limit_bytes=vmem_limit_bytes)

    # CALayer squeeze/excite MLP on the pooled (N, C) vector -- tiny, plain JAX.
    mean = sums / float(h * wd)                                     # (N, C) f32
    z = jax.nn.relu(mean @ params["w_ca1"] + params["b_ca1"])       # (N, C//16)
    gate = jax.nn.sigmoid(z @ params["w_ca2"] + params["b_ca2"])    # (N, C)
    gate_scaled = gate * jnp.float32(res_scale)                     # fold res_scale

    return ca_scale_residual(h2, x, gate_scaled, vmem_limit_bytes=vmem_limit_bytes)


# -----------------------------------------------------------------------------
# Pure-JAX reference (correctness check)
# -----------------------------------------------------------------------------
def ref_forward(x, p, res_scale):
    def conv(v, w, b):
        y = jax.lax.conv_general_dilated(
            v, w, window_strides=(1, 1), padding="SAME",
            dimension_numbers=("NCHW", "OIHW", "NCHW"),
            precision=jax.lax.Precision.HIGHEST)
        return y + b.reshape(1, -1, 1, 1)

    h = jax.nn.relu(conv(x, p["w_conv1"], p["b_conv1"]))
    h = conv(h, p["w_conv2"], p["b_conv2"])
    m = jnp.mean(h, axis=(2, 3))                                    # (N, C)
    z = jax.nn.relu(m @ p["w_ca1"] + p["b_ca1"])
    g = jax.nn.sigmoid(z @ p["w_ca2"] + p["b_ca2"])
    return h * g[:, :, None, None] * res_scale + x


# -----------------------------------------------------------------------------
# Main
# -----------------------------------------------------------------------------
if __name__ == "__main__":
    # n_feats must be >= the CA reduction (16); small spatial for the self-test.
    N, C, H, W = 2, 32, 16, 16
    CR = C // 16
    RES_SCALE = 0.5

    key = jax.random.PRNGKey(0)
    k1, k2, k3, k4, k5, k6, k7, k8, kx = jax.random.split(key, 9)

    params = {
        # body: conv(n_feats, n_feats, 3) -> ReLU -> conv(n_feats, n_feats, 3)
        "w_conv1": jax.random.normal(k1, (C, C, 3, 3), jnp.float32) * 0.05,
        "b_conv1": jax.random.normal(k2, (C,), jnp.float32) * 0.05,
        "w_conv2": jax.random.normal(k3, (C, C, 3, 3), jnp.float32) * 0.05,
        "b_conv2": jax.random.normal(k4, (C,), jnp.float32) * 0.05,
        # CALayer conv_du 1x1 convs stored as matmul weights (C, Cr) and (Cr, C).
        "w_ca1": jax.random.normal(k5, (C, CR), jnp.float32) * 0.2,
        "b_ca1": jax.random.normal(k6, (CR,), jnp.float32) * 0.05,
        "w_ca2": jax.random.normal(k7, (CR, C), jnp.float32) * 0.2,
        "b_ca2": jax.random.normal(k8, (C,), jnp.float32) * 0.05,
    }

    x = jax.random.normal(kx, (N, C, H, W), jnp.float32)

    ref = jax.block_until_ready(ref_forward(x, params, RES_SCALE))

    # f32 path with row_tile=8 -> 2 row tiles: exercises the halo views, border masking
    # and the per-tile GAP partial-sum path.
    out = jax.block_until_ready(
        res_attention_block(x, params, res_scale=RES_SCALE, row_tile=8))
    assert out.shape == x.shape and out.dtype == x.dtype
    if not jnp.allclose(out, ref, atol=5e-3, rtol=5e-3):
        err = float(jnp.max(jnp.abs(out - ref)))
        raise AssertionError(f"f32 Pallas output mismatch (max|err|={err})")

    # bf16 streaming path (default row_tile -> single tile per image): looser tolerance.
    out_bf16 = jax.block_until_ready(
        res_attention_block(x, params, res_scale=RES_SCALE,
                            compute_dtype=jnp.bfloat16))
    diff = jnp.abs(out_bf16.astype(jnp.float32) - ref)
    if not jnp.allclose(out_bf16.astype(jnp.float32), ref, atol=1e-1, rtol=1e-1):
        raise AssertionError(f"bf16 Pallas output mismatch (max|err|={float(jnp.max(diff))})")

    print("KERNEL_OK")
</pallas_src>

<mosaic_0001>
module attributes {stable_mosaic.version = 11 : i64} {
  func.func @_conv3x3_kernel(%arg0: i32, %arg1: i32, %arg2: memref<1x32x128xf32, #tpu.memory_space<vmem>>, %arg3: memref<1x32x128xf32, #tpu.memory_space<vmem>>, %arg4: memref<1x32x128xf32, #tpu.memory_space<vmem>>, %arg5: memref<3x32x96xf32, #tpu.memory_space<vmem>>, %arg6: memref<32x1xf32, #tpu.memory_space<vmem>>, %arg7: memref<1x32x128xf32, #tpu.memory_space<vmem>>, %arg8: memref<96x384xf32, #tpu.memory_space<vmem>>) attributes {dimension_semantics = [#tpu.dimension_semantics<parallel>, #tpu.dimension_semantics<parallel>], iteration_bounds = array<i64: 2, 2>, scalar_prefetch = 0 : i64, scratch_operands = 1 : i64, tpu.core_type = #tpu.core_type<tc>, window_params = [{transform_indices = @transform_0, window_bounds = array<i64: 1, 32, 128>}, {transform_indices = @transform_1, window_bounds = array<i64: 1, 32, 128>}, {transform_indices = @transform_2, window_bounds = array<i64: 1, 32, 128>}, {pipeline_mode = #tpu.pipeline_mode<synchronous>, transform_indices = @transform_3, window_bounds = array<i64: 3, 32, 96>}, {pipeline_mode = #tpu.pipeline_mode<synchronous>, transform_indices = @transform_4, window_bounds = array<i64: 32, 1>}, {transform_indices = @transform_5, window_bounds = array<i64: 1, 32, 128>}]} {
    %c0 = arith.constant 0 : index
    %c0_0 = arith.constant 0 : index
    %c0_1 = arith.constant 0 : index
    %0 = vector.load %arg2[%c0, %c0_0, %c0_1] : memref<1x32x128xf32, #tpu.memory_space<vmem>>, vector<1x32x128xf32>
    %1 = vector.shape_cast %0 : vector<1x32x128xf32> to vector<32x128xf32>
    %c32 = arith.constant 32 : index
    %c128 = arith.constant 128 : index
    %2 = vector.load %arg8[%c32, %c128] : memref<96x384xf32, #tpu.memory_space<vmem>>, vector<32x128xf32>
    tpu.vector_store %arg8[%c32, %c128], %1 {strides = array<i32>} : memref<96x384xf32, #tpu.memory_space<vmem>>, vector<32x128xf32>,
    %3 = vector.extract_strided_slice %1 {offsets = [0, 0], sizes = [32, 112], strides = [1, 1]} : vector<32x128xf32> to vector<32x112xf32>
    %c0_2 = arith.constant 0 : index
    %c144 = arith.constant 144 : index
    %4 = vector.load %arg8[%c0_2, %c144] : memref<96x384xf32, #tpu.memory_space<vmem>>, vector<32x112xf32>
    tpu.vector_store %arg8[%c0_2, %c144], %3 {strides = array<i32>} : memref<96x384xf32, #tpu.memory_space<vmem>>, vector<32x112xf32>,
    %c0_3 = arith.constant 0 : index
    %c0_4 = arith.constant 0 : index
    %c112 = arith.constant 112 : index
    %5 = vector.load %arg3[%c0_3, %c0_4, %c112] : memref<1x32x128xf32, #tpu.memory_space<vmem>>, vector<1x32x16xf32>
    %6 = vector.shape_cast %5 : vector<1x32x16xf32> to vector<32x16xf32>
    %c0_5 = arith.constant 0 : index
    %c128_6 = arith.constant 128 : index
    %7 = vector.load %arg8[%c0_5, %c128_6] : memref<96x384xf32, #tpu.memory_space<vmem>>, vector<32x16xf32>
    tpu.vector_store %arg8[%c0_5, %c128_6], %6 {strides = array<i32>} : memref<96x384xf32, #tpu.memory_space<vmem>>, vector<32x16xf32>,
    %8 = vector.extract_strided_slice %1 {offsets = [0, 16], sizes = [32, 112], strides = [1, 1]} : vector<32x128xf32> to vector<32x112xf32>
    %c64 = arith.constant 64 : index
    %c128_7 = arith.constant 128 : index
    %9 = vector.load %arg8[%c64, %c128_7] : memref<96x384xf32, #tpu.memory_space<vmem>>, vector<32x112xf32>
    tpu.vector_store %arg8[%c64, %c128_7], %8 {strides = array<i32>} : memref<96x384xf32, #tpu.memory_space<vmem>>, vector<32x112xf32>,
    %c0_8 = arith.constant 0 : index
    %c0_9 = arith.constant 0 : index
    %c0_10 = arith.constant 0 : index
    %10 = vector.load %arg4[%c0_8, %c0_9, %c0_10] : memref<1x32x128xf32, #tpu.memory_space<vmem>>, vector<1x32x16xf32>
    %11 = vector.shape_cast %10 : vector<1x32x16xf32> to vector<32x16xf32>
    %c64_11 = arith.constant 64 : index
    %c240 = arith.constant 240 : index
    %12 = vector.load %arg8[%c64_11, %c240] : memref<96x384xf32, #tpu.memory_space<vmem>>, vector<32x16xf32>
    tpu.vector_store %arg8[%c64_11, %c240], %11 {strides = array<i32>} : memref<96x384xf32, #tpu.memory_space<vmem>>, vector<32x16xf32>,
    %c0_i32 = arith.constant 0 : i32
    %13 = arith.cmpi eq, %arg1, %c0_i32 : i32
    %14 = arith.extui %13 : i1 to i32
    %c0_i32_12 = arith.constant 0 : i32
    %15 = arith.cmpi ne, %14, %c0_i32_12 : i32
    scf.if %15 {
      %cst_46 = arith.constant 0.000000e+00 : f32
      %76 = vector.broadcast %cst_46 : f32 to vector<32x16xf32>
      %c0_47 = arith.constant 0 : index
      %c128_48 = arith.constant 128 : index
      %77 = vector.load %arg8[%c0_47, %c128_48] : memref<96x384xf32, #tpu.memory_space<vmem>>, vector<32x16xf32>
      tpu.vector_store %arg8[%c0_47, %c128_48], %76 {strides = array<i32>} : memref<96x384xf32, #tpu.memory_space<vmem>>, vector<32x16xf32>,
    } else {
    }
    %c1_i32 = arith.constant 1 : i32
    %16 = arith.cmpi eq, %arg1, %c1_i32 : i32
    %17 = arith.extui %16 : i1 to i32
    %c0_i32_13 = arith.constant 0 : i32
    %18 = arith.cmpi ne, %17, %c0_i32_13 : i32
    scf.if %18 {
      %cst_46 = arith.constant 0.000000e+00 : f32
      %76 = vector.broadcast %cst_46 : f32 to vector<32x16xf32>
      %c64_47 = arith.constant 64 : index
      %c240_48 = arith.constant 240 : index
      %77 = vector.load %arg8[%c64_47, %c240_48] : memref<96x384xf32, #tpu.memory_space<vmem>>, vector<32x16xf32>
      tpu.vector_store %arg8[%c64_47, %c240_48], %76 {strides = array<i32>} : memref<96x384xf32, #tpu.memory_space<vmem>>, vector<32x16xf32>,
    } else {
    }
    %cst = arith.constant 0.000000e+00 : f32
    %19 = vector.broadcast %cst : f32 to vector<96x1xf32>
    %c0_14 = arith.constant 0 : index
    %c127 = arith.constant 127 : index
    %20 = vector.load %arg8[%c0_14, %c127] : memref<96x384xf32, #tpu.memory_space<vmem>>, vector<96x1xf32>
    tpu.vector_store %arg8[%c0_14, %c127], %19 {strides = array<i32>} : memref<96x384xf32, #tpu.memory_space<vmem>>, vector<96x1xf32>,
    %cst_15 = arith.constant 0.000000e+00 : f32
    %21 = vector.broadcast %cst_15 : f32 to vector<96x1xf32>
    %c0_16 = arith.constant 0 : index
    %c256 = arith.constant 256 : index
    %22 = vector.load %arg8[%c0_16, %c256] : memref<96x384xf32, #tpu.memory_space<vmem>>, vector<96x1xf32>
    tpu.vector_store %arg8[%c0_16, %c256], %21 {strides = array<i32>} : memref<96x384xf32, #tpu.memory_space<vmem>>, vector<96x1xf32>,
    %23 = tpu.iota {dimensions = array<i32: 1>} : vector<1x128xi32>
    %c16_i32 = arith.constant 16 : i32
    %c0_i32_17 = arith.constant 0 : i32
    %24 = arith.cmpi eq, %c16_i32, %c0_i32_17 : i32
    %c1_i32_18 = arith.constant 1 : i32
    %25 = arith.select %24, %c1_i32_18, %c16_i32 : i32
    %26 = vector.broadcast %25 : i32 to vector<1x128xi32>
    %27 = arith.remsi %23, %26 : vector<1x128xi32>
    %c0_i32_19 = arith.constant 0 : i32
    %28 = vector.broadcast %c0_i32_19 : i32 to vector<1x128xi32>
    %29 = arith.cmpi ne, %27, %28 : vector<1x128xi32>
    %c0_i32_20 = arith.constant 0 : i32
    %30 = vector.broadcast %c0_i32_20 : i32 to vector<1x128xi32>
    %31 = arith.cmpi slt, %27, %30 : vector<1x128xi32>
    %c0_i32_21 = arith.constant 0 : i32
    %32 = arith.cmpi slt, %25, %c0_i32_21 : i32
    %33 = vector.broadcast %32 : i1 to vector<1x128xi1>
    %34 = vector.broadcast %33 : vector<1x128xi1> to vector<1x128xi1>
    %35 = arith.xori %31, %34 : vector<1x128xi1>
    %36 = arith.andi %35, %29 : vector<1x128xi1>
    %37 = vector.broadcast %25 : i32 to vector<1x128xi32>
    %38 = arith.addi %27, %37 : vector<1x128xi32>
    %39 = arith.select %36, %38, %27 : vector<1x128xi1>, vector<1x128xi32>
    %c0_22 = arith.constant 0 : index
    %c128_23 = arith.constant 128 : index
    %40 = vector.load %arg8[%c0_22, %c128_23] : memref<96x384xf32, #tpu.memory_space<vmem>>, vector<96x128xf32>
    %c0_i32_24 = arith.constant 0 : i32
    %41 = vector.broadcast %c0_i32_24 : i32 to vector<1x128xi32>
    %42 = arith.cmpi ne, %39, %41 : vector<1x128xi32>
    %c0_25 = arith.constant 0 : index
    %c127_26 = arith.constant 127 : index
    %43 = vector.load %arg8[%c0_25, %c127_26] : memref<96x384xf32, #tpu.memory_space<vmem>>, vector<96x128xf32>
    %c0_i32_27 = arith.constant 0 : i32
    %44 = arith.sitofp %c0_i32_27 : i32 to f32
    %45 = vector.shape_cast %42 : vector<1x128xi1> to vector<1x128xi1>
    %46 = vector.broadcast %45 : vector<1x128xi1> to vector<96x128xi1>
    %47 = vector.broadcast %44 : f32 to vector<96x128xf32>
    %48 = arith.select %46, %43, %47 : vector<96x128xi1>, vector<96x128xf32>
    %c15_i32 = arith.constant 15 : i32
    %49 = vector.broadcast %c15_i32 : i32 to vector<1x128xi32>
    %50 = arith.cmpi ne, %39, %49 : vector<1x128xi32>
    %c0_28 = arith.constant 0 : index
    %c129 = arith.constant 129 : index
    %51 = vector.load %arg8[%c0_28, %c129] : memref<96x384xf32, #tpu.memory_space<vmem>>, vector<96x128xf32>
    %c0_i32_29 = arith.constant 0 : i32
    %52 = arith.sitofp %c0_i32_29 : i32 to f32
    %53 = vector.shape_cast %50 : vector<1x128xi1> to vector<1x128xi1>
    %54 = vector.broadcast %53 : vector<1x128xi1> to vector<96x128xi1>
    %55 = vector.broadcast %52 : f32 to vector<96x128xf32>
    %56 = arith.select %54, %51, %55 : vector<96x128xi1>, vector<96x128xf32>
    %c1 = arith.constant 1 : index
    %c0_30 = arith.constant 0 : index
    %c0_31 = arith.constant 0 : index
    %57 = vector.load %arg5[%c1, %c0_30, %c0_31] : memref<3x32x96xf32, #tpu.memory_space<vmem>>, vector<1x32x96xf32>
    %58 = vector.shape_cast %57 : vector<1x32x96xf32> to vector<32x96xf32>
    %cst_32 = arith.constant dense<0.000000e+00> : vector<32x128xf32>
    %59 = tpu.matmul %58, %40, %cst_32 {dimension_numbers = #tpu.dot_dimension_numbers<[1], [0], [0], [1], [0, 0, 1, 1], [], []>, precision = #tpu.contract_precision<fp32>} : vector<32x96xf32>, vector<96x128xf32>, vector<32x128xf32> -> vector<32x128xf32>
    %c0_33 = arith.constant 0 : index
    %c0_34 = arith.constant 0 : index
    %c0_35 = arith.constant 0 : index
    %60 = vector.load %arg5[%c0_33, %c0_34, %c0_35] : memref<3x32x96xf32, #tpu.memory_space<vmem>>, vector<1x32x96xf32>
    %61 = vector.shape_cast %60 : vector<1x32x96xf32> to vector<32x96xf32>
    %cst_36 = arith.constant dense<0.000000e+00> : vector<32x128xf32>
    %62 = tpu.matmul %61, %48, %cst_36 {dimension_numbers = #tpu.dot_dimension_numbers<[1], [0], [0], [1], [0, 0, 1, 1], [], []>, precision = #tpu.contract_precision<fp32>} : vector<32x96xf32>, vector<96x128xf32>, vector<32x128xf32> -> vector<32x128xf32>
    %63 = arith.addf %59, %62 : vector<32x128xf32>
    %c2 = arith.constant 2 : index
    %c0_37 = arith.constant 0 : index
    %c0_38 = arith.constant 0 : index
    %64 = vector.load %arg5[%c2, %c0_37, %c0_38] : memref<3x32x96xf32, #tpu.memory_space<vmem>>, vector<1x32x96xf32>
    %65 = vector.shape_cast %64 : vector<1x32x96xf32> to vector<32x96xf32>
    %cst_39 = arith.constant dense<0.000000e+00> : vector<32x128xf32>
    %66 = tpu.matmul %65, %56, %cst_39 {dimension_numbers = #tpu.dot_dimension_numbers<[1], [0], [0], [1], [0, 0, 1, 1], [], []>, precision = #tpu.contract_precision<fp32>} : vector<32x96xf32>, vector<96x128xf32>, vector<32x128xf32> -> vector<32x128xf32>
    %67 = arith.addf %63, %66 : vector<32x128xf32>
    %c0_40 = arith.constant 0 : index
    %c0_41 = arith.constant 0 : index
    %68 = vector.load %arg6[%c0_40, %c0_41] : memref<32x1xf32, #tpu.memory_space<vmem>>, vector<32x1xf32>
    %69 = vector.broadcast %68 : vector<32x1xf32> to vector<32x128xf32>
    %70 = arith.addf %67, %69 : vector<32x128xf32>
    %cst_42 = arith.constant 0.000000e+00 : f32
    %71 = vector.broadcast %cst_42 : f32 to vector<32x128xf32>
    %72 = arith.maximumf %70, %71 : vector<32x128xf32>
    %c0_43 = arith.constant 0 : index
    %c0_44 = arith.constant 0 : index
    %c0_45 = arith.constant 0 : index
    %73 = vector.load %arg7[%c0_43, %c0_44, %c0_45] : memref<1x32x128xf32, #tpu.memory_space<vmem>>, vector<1x32x128xf32>
    %74 = vector.shape_cast %73 : vector<1x32x128xf32> to vector<32x128xf32>
    %75 = vector.shape_cast %72 : vector<32x128xf32> to vector<1x32x128xf32>
    tpu.vector_store %arg7[%c0_43, %c0_44, %c0_45], %75 {strides = array<i32>} : memref<1x32x128xf32, #tpu.memory_space<vmem>>, vector<1x32x128xf32>,
    return
  }
  func.func @transform_0(%arg0: i32, %arg1: i32) -> (i32, i32, i32) {
    %c0_i32 = arith.constant 0 : i32
    %c0_i32_0 = arith.constant 0 : i32
    return %arg0, %c0_i32, %arg1 : i32, i32, i32
  }
  func.func @transform_1(%arg0: i32, %arg1: i32) -> (i32, i32, i32) {
    %c1_i32 = arith.constant 1 : i32
    %0 = arith.muli %arg1, %c1_i32 : i32
    %c1_i32_0 = arith.constant 1 : i32
    %1 = arith.subi %0, %c1_i32_0 : i32
    %c0_i32 = arith.constant 0 : i32
    %2 = arith.maxsi %1, %c0_i32 : i32
    %c0_i32_1 = arith.constant 0 : i32
    %c0_i32_2 = arith.constant 0 : i32
    return %arg0, %c0_i32_1, %2 : i32, i32, i32
  }
  func.func @transform_2(%arg0: i32, %arg1: i32) -> (i32, i32, i32) {
    %c1_i32 = arith.constant 1 : i32
    %0 = arith.addi %arg1, %c1_i32 : i32
    %c1_i32_0 = arith.constant 1 : i32
    %1 = arith.muli %0, %c1_i32_0 : i32
    %c1_i32_1 = arith.constant 1 : i32
    %2 = arith.minsi %1, %c1_i32_1 : i32
    %c0_i32 = arith.constant 0 : i32
    %c0_i32_2 = arith.constant 0 : i32
    return %arg0, %c0_i32, %2 : i32, i32, i32
  }
  func.func @transform_3(%arg0: i32, %arg1: i32) -> (i32, i32, i32) {
    %c0_i32 = arith.constant 0 : i32
    %c0_i32_0 = arith.constant 0 : i32
    %c0_i32_1 = arith.constant 0 : i32
    %c0_i32_2 = arith.constant 0 : i32
    return %c0_i32, %c0_i32_0, %c0_i32_1 : i32, i32, i32
  }
  func.func @transform_4(%arg0: i32, %arg1: i32) -> (i32, i32) {
    %c0_i32 = arith.constant 0 : i32
    %c0_i32_0 = arith.constant 0 : i32
    %c0_i32_1 = arith.constant 0 : i32
    return %c0_i32, %c0_i32_0 : i32, i32
  }
  func.func @transform_5(%arg0: i32, %arg1: i32) -> (i32, i32, i32) {
    %c0_i32 = arith.constant 0 : i32
    %c0_i32_0 = arith.constant 0 : i32
    return %arg0, %c0_i32, %arg1 : i32, i32, i32
  }
}

</mosaic_0001>

<llo_original>
// kernel: tpu_custom_call.1
$region0: #{tpu_custom_call.1}
  #allocation0 [shape = 'u32[]', space=smem, size = 0x4, offset = 0x4, fixed_abs, tag = 'smem constant byte address 0x4 - core index']
  #allocation1 [shape = 'u32[144,128]{1,0:T(1,128)}', space=vmem, size = 0x12000, scoped, tag = 'internal scratch']
  #allocation2 [shape = 'f32[96,384]{1,0:T(8,128)}', space=vmem, size = 0x24000, scoped, tag = 'scratch operand']
  %s0 = inlined_call_operand.hbm [shape: f32[2,32,256], index: 0, kind: input, shape index: {}]
  %s1 = inlined_call_operand.hbm [shape: f32[2,32,256], index: 1, kind: input, shape index: {}]
  %s2 = inlined_call_operand.hbm [shape: f32[2,32,256], index: 2, kind: input, shape index: {}]
  %s3 = inlined_call_operand.hbm [shape: f32[3,32,96], index: 3, kind: input, shape index: {}]
  %s4 = inlined_call_operand.vmem [shape: f32[32,1], index: 4, kind: input, shape index: {}]
  %s5 = inlined_call_operand.hbm [shape: f32[2,32,256], index: 5, kind: output, shape index: {}]
  %s6 = sld [smem:[#allocation0]]
  $region77: #{tpu_custom_call.1} parent=0
    _
  %s8 = ssub.s32 1, %s6
  %s9 = scalar_select 0, %s8, %s6
  $region1: #{tpu_custom_call.1} parent=0
    #allocation3 [shape = 'u8[32768]{0}', space=vmem, size = 0x8000, scoped, tag = 'input window, operand 0']
    #allocation4 [shape = 's32[2]{0}', space=sflag, size = 0x8, scoped, tag = 'scoped memory for tpu_custom_call.1']
    #allocation5 [shape = 's32[2]{0}', space=sflag, size = 0x8, scoped, tag = 'scoped memory for tpu_custom_call.1']
    #allocation6 [shape = 'u8[32768]{0}', space=vmem, size = 0x8000, scoped, tag = 'input window, operand 1']
    #allocation7 [shape = 's32[2]{0}', space=sflag, size = 0x8, scoped, tag = 'scoped memory for tpu_custom_call.1']
    #allocation8 [shape = 'u8[32768]{0}', space=vmem, size = 0x8000, scoped, tag = 'input window, operand 2']
    #allocation9 [shape = 'u8[49152]{0}', space=vmem, size = 0xc000, scoped, tag = 'input window, operand 3, single buffered']
    #allocation10 [shape = 's32[1]{0}', space=sflag, size = 0x4, scoped, tag = 'scoped memory for tpu_custom_call.1']
    #allocation11 [shape = 'u8[32768]{0}', space=vmem, size = 0x8000, scoped, tag = 'output window, operand 0']
    %10 = vsyncpa [#allocation4], 0
    %s11 = scalar_lea.sflag [#allocation4], 1
    %12 = vsyncpa %s11, 0
    %13 = vsyncpa [#allocation7], 0
    %s14 = scalar_lea.sflag [#allocation7], 1
    %15 = vsyncpa %s14, 0
    %16 = vsyncpa [#allocation10], 0
    %17 = vsyncpa [#allocation5], 0
    %s18 = scalar_lea.sflag [#allocation5], 1
    %19 = vsyncpa %s18, 0
    loop: start=0, step=1, limit=6
    $region2: #{tpu_custom_call.1} parent=1 // loop_pre_header
      _
    $region3: #{tpu_custom_call.1} parent=1 // loop_header
      %s21 = sphi 0, %s25
      %p22 = scmp.ge.s32.totalorder %s21, 6
      %s28 = sphi 0, %s40
      %s29 = sphi 0, %s36
      %s30 = sphi 0, %s28
      %s31 = sphi 0, %s29
      %s32 = sphi 0, %s30
      %s33 = sphi 0, %s31
      %s45 = sphi 0, %s47
      %s48 = sphi 0, %s45
      %s49 = sphi 0, %s48
      %s65 = sphi 0, %s49
      %s79 = sphi 0, %s81
      %s82 = sphi 0, %s79
      %s83 = sphi 0, %s82
      %s99 = sphi 0, %s83
      %s113 = sphi 0, %s115
      %s116 = sphi 0, %s113
      %s117 = sphi 0, %s116
      %s133 = sphi 0, %s117
      %s137 = sphi 0, %s137
      %s139 = sphi 0, %s137
      %s140 = sphi 0, %s139
      %s154 = sphi 0, %s140
      %s158 = sphi 0, %s158
      %s160 = sphi 0, %s158
      %s161 = sphi 0, %s160
      %s175 = sphi 0, %s161
      %s183 = sphi 0, %s185
      %s186 = sphi 0, %s183
      %s187 = sphi 0, %s186
      %s203 = sphi 0, %s187
    $region4: #{tpu_custom_call.1} parent=1 // loop_header_branch
      %24 = sbr.rel (%p22) target = $region8
    $region5: #{tpu_custom_call.1} parent=1 // loop_body
      %s26 = ssub.s32 %s21, 1
      %s27 = ssub.s32 %s21, 2
      %s34 = sadd.s32 1, %s29
      %p35 = scmp.ge.s32.totalorder %s34, 2
      %s36 = scalar_select %p35, 0, %s34
      %s37 = sadd.s32 1, %s28
      %s38 = scalar_select %p35, %s37, %s28
      %p39 = scmp.ge.s32.totalorder %s38, 2
      %s40 = scalar_select %p39, 0, %s38
      %s41 = ssub.s32 %s28, %s40
      %s42 = ssub.s32 %s29, %s36
      %s43 = sor.u32 %s41, %s42
      %p44 = scmp.eq.s32.totalorder %s43, 0
      %s46 = sadd.s32 %s45, 1
      %s47 = scalar_select %p44, %s45, %s46
      %p50 = pneg %p44
      %p51 = scmp.eq.s32.totalorder %s21, 3
      %p52 = por %p50, %p51
      %p53 = scmp.ne.s32.totalorder %s45, %s48
      %p54 = scmp.eq.s32.totalorder %s21, 0
      %p55 = por %p53, %p54
      %p56 = scmp.ne.s32.totalorder %s45, %s48
      %p57 = scmp.eq.s32.totalorder %s26, 3
      %p58 = por %p56, %p57
      %p59 = scmp.ne.s32.totalorder %s48, %s49
      %p60 = scmp.eq.s32.totalorder %s26, 0
      %p61 = por %p59, %p60
      %p62 = scmp.ne.s32.totalorder %s48, %s49
      %p63 = scmp.eq.s32.totalorder %s27, 3
      %p64 = por %p62, %p63
      %p66 = scmp.ne.s32.totalorder %s49, %s65
      %p67 = scmp.eq.s32.totalorder %s27, 0
      %p68 = por %p66, %p67
      %s69 = ssub.s32 %s29, 1
      %p70 = scmp.gt.s32.totalorder %s69, 0
      %s71 = scalar_select %p70, %s69, 0
      %s72 = ssub.s32 %s36, 1
      %p73 = scmp.gt.s32.totalorder %s72, 0
      %s74 = scalar_select %p73, %s72, 0
      %s75 = ssub.s32 %s28, %s40
      %s76 = ssub.s32 %s71, %s74
      %s77 = sor.u32 %s75, %s76
      %p78 = scmp.eq.s32.totalorder %s77, 0
      %s80 = sadd.s32 %s79, 1
      %s81 = scalar_select %p78, %s79, %s80
      %p84 = pneg %p78
      %p85 = scmp.eq.s32.totalorder %s21, 3
      %p86 = por %p84, %p85
      %p87 = scmp.ne.s32.totalorder %s79, %s82
      %p88 = scmp.eq.s32.totalorder %s21, 0
      %p89 = por %p87, %p88
      %p90 = scmp.ne.s32.totalorder %s79, %s82
      %p91 = scmp.eq.s32.totalorder %s26, 3
      %p92 = por %p90, %p91
      %p93 = scmp.ne.s32.totalorder %s82, %s83
      %p94 = scmp.eq.s32.totalorder %s26, 0
      %p95 = por %p93, %p94
      %p96 = scmp.ne.s32.totalorder %s82, %s83
      %p97 = scmp.eq.s32.totalorder %s27, 3
      %p98 = por %p96, %p97
      %p100 = scmp.ne.s32.totalorder %s83, %s99
      %p101 = scmp.eq.s32.totalorder %s27, 0
      %p102 = por %p100, %p101
      %s103 = sadd.s32 %s29, 1
      %p104 = scmp.lt.s32.totalorder %s103, 1
      %s105 = scalar_select %p104, %s103, 1
      %s106 = sadd.s32 %s36, 1
      %p107 = scmp.lt.s32.totalorder %s106, 1
      %s108 = scalar_select %p107, %s106, 1
      %s109 = ssub.s32 %s28, %s40
      %s110 = ssub.s32 %s105, %s108
      %s111 = sor.u32 %s109, %s110
      %p112 = scmp.eq.s32.totalorder %s111, 0
      %s114 = sadd.s32 %s113, 1
      %s115 = scalar_select %p112, %s113, %s114
      %p118 = pneg %p112
      %p119 = scmp.eq.s32.totalorder %s21, 3
      %p120 = por %p118, %p119
      %p121 = scmp.ne.s32.totalorder %s113, %s116
      %p122 = scmp.eq.s32.totalorder %s21, 0
      %p123 = por %p121, %p122
      %p124 = scmp.ne.s32.totalorder %s113, %s116
      %p125 = scmp.eq.s32.totalorder %s26, 3
      %p126 = por %p124, %p125
      %p127 = scmp.ne.s32.totalorder %s116, %s117
      %p128 = scmp.eq.s32.totalorder %s26, 0
      %p129 = por %p127, %p128
      %p130 = scmp.ne.s32.totalorder %s116, %s117
      %p131 = scmp.eq.s32.totalorder %s27, 3
      %p132 = por %p130, %p131
      %p134 = scmp.ne.s32.totalorder %s117, %s133
      %p135 = scmp.eq.s32.totalorder %s27, 0
      %p136 = por %p134, %p135
      %s138 = sadd.s32 %s137, 1
      %p141 = scmp.eq.s32.totalorder %s21, 3
      %p142 = scmp.ne.s32.totalorder %s137, %s139
      %p143 = scmp.eq.s32.totalorder %s21, 0
      %p144 = por %p142, %p143
      %p145 = scmp.ne.s32.totalorder %s137, %s139
      %p146 = scmp.eq.s32.totalorder %s26, 3
      %p147 = por %p145, %p146
      %p148 = scmp.ne.s32.totalorder %s139, %s140
      %p149 = scmp.eq.s32.totalorder %s26, 0
      %p150 = por %p148, %p149
      %p151 = scmp.ne.s32.totalorder %s139, %s140
      %p152 = scmp.eq.s32.totalorder %s27, 3
      %p153 = por %p151, %p152
      %p155 = scmp.ne.s32.totalorder %s140, %s154
      %p156 = scmp.eq.s32.totalorder %s27, 0
      %p157 = por %p155, %p156
      %s159 = sadd.s32 %s158, 1
      %p162 = scmp.eq.s32.totalorder %s21, 3
      %p163 = scmp.ne.s32.totalorder %s158, %s160
      %p164 = scmp.eq.s32.totalorder %s21, 0
      %p165 = por %p163, %p164
      %p166 = scmp.ne.s32.totalorder %s158, %s160
      %p167 = scmp.eq.s32.totalorder %s26, 3
      %p168 = por %p166, %p167
      %p169 = scmp.ne.s32.totalorder %s160, %s161
      %p170 = scmp.eq.s32.totalorder %s26, 0
      %p171 = por %p169, %p170
      %p172 = scmp.ne.s32.totalorder %s160, %s161
      %p173 = scmp.eq.s32.totalorder %s27, 3
      %p174 = por %p172, %p173
      %p176 = scmp.ne.s32.totalorder %s161, %s175
      %p177 = scmp.eq.s32.totalorder %s27, 0
      %p178 = por %p176, %p177
      %s179 = ssub.s32 %s28, %s40
      %s180 = ssub.s32 %s29, %s36
      %s181 = sor.u32 %s179, %s180
      %p182 = scmp.eq.s32.totalorder %s181, 0
      %s184 = sadd.s32 %s183, 1
      %s185 = scalar_select %p182, %s183, %s184
      %p188 = pneg %p182
      %p189 = scmp.eq.s32.totalorder %s21, 3
      %p190 = por %p188, %p189
      %p191 = scmp.ne.s32.totalorder %s183, %s186
      %p192 = scmp.eq.s32.totalorder %s21, 0
      %p193 = por %p191, %p192
      %p194 = scmp.ne.s32.totalorder %s183, %s186
      %p195 = scmp.eq.s32.totalorder %s26, 3
      %p196 = por %p194, %p195
      %p197 = scmp.ne.s32.totalorder %s186, %s187
      %p198 = scmp.eq.s32.totalorder %s26, 0
      %p199 = por %p197, %p198
      %p200 = scmp.ne.s32.totalorder %s186, %s187
      %p201 = scmp.eq.s32.totalorder %s27, 3
      %p202 = por %p200, %p201
      %p204 = scmp.ne.s32.totalorder %s187, %s203
      %p205 = scmp.eq.s32.totalorder %s27, 0
      %p206 = por %p204, %p205
      %p207 = scmp.le.s32.totalorder 1, %s21
      %p208 = scmp.lt.s32.totalorder %s21, 5
      %p209 = pnand %p207, %p208
      %p210 = pneg %p209
      // Predicated region
      $region9: #{tpu_custom_call.1} parent=5 // pred_check
        _
      $region10: #{tpu_custom_call.1} parent=5 // pred_check_branch
        %212 = sbr.rel (%p209) target = $region12
      $region11: #{tpu_custom_call.1} parent=5 // pred_region
        %s213 = ssub.s32 %s21, 1
        // Predicated region
        $region13: #{tpu_custom_call.1} parent=11 // pred_check
          %p214 = pneg %p150
        $region14: #{tpu_custom_call.1} parent=11 // pred_check_branch
          %216 = sbr.rel (%p214) target = $region16
        $region15: #{tpu_custom_call.1} parent=11 // pred_region
          %s218 = ssub.s32 1536, 1536
          %219 = vsyncadd [#allocation10], %s218
          %s220 = sshll.u32 [#allocation9], 4
          %s221 = int_to_ptr.vmem [resolvable:$true] %s220
          %226 = dma.hbm_to_vmem [thread:$0]  %s3, 1536, %s221, [#allocation10], 128, 128, 8
        $region16: #{tpu_custom_call.1} parent=11 // pred_fallthru
          _
        // Predicated region
        $region17: #{tpu_custom_call.1} parent=11 // pred_check
          %p227 = pneg %p171
        $region18: #{tpu_custom_call.1} parent=11 // pred_check_branch
          %229 = sbr.rel (%p227) target = $region20
        $region19: #{tpu_custom_call.1} parent=11 // pred_region
          _
        $region20: #{tpu_custom_call.1} parent=11 // pred_fallthru
          _
      $region12: #{tpu_custom_call.1} parent=5 // pred_fallthru
        _
      %p230 = scmp.lt.s32.totalorder %s21, 4
      // Predicated region
      $region21: #{tpu_custom_call.1} parent=5 // pred_check
        %p231 = pneg %p230
      $region22: #{tpu_custom_call.1} parent=5 // pred_check_branch
        %233 = sbr.rel (%p231) target = $region24
      $region23: #{tpu_custom_call.1} parent=5 // pred_region
        // Predicated region
        $region25: #{tpu_custom_call.1} parent=23 // pred_check
          %p234 = pneg %p55
        $region26: #{tpu_custom_call.1} parent=23 // pred_check_branch
          %236 = sbr.rel (%p234) target = $region28
        $region27: #{tpu_custom_call.1} parent=23 // pred_region
          %s237 = sand.u32 %s45, 1
          %s238 = scalar_lea.sflag [#allocation4], %s237
          %s239 = sand.u32 %s45, 1
          %s240 = smul.addr %s239, 32
          %s241 = scalar_lea.vmem [#allocation3], %s240
          %s243 = ssub.s32 512, 512
          %244 = vsyncadd %s238, %s243
          %s245 = smul.addr %s28, 8
          %s246 = sadd.s32 %s29, %s245
          %s247 = smul.addr %s246, 128
          %s248 = scalar_lea.hbm %s0, %s247
          %s249 = sshll.u32 %s241, 4
          %s250 = int_to_ptr.vmem [resolvable:$true] %s249
          %255 = dma.hbm_to_vmem [thread:$0]  %s248, 512, %s250, %s238, 256, 128, 8
        $region28: #{tpu_custom_call.1} parent=23 // pred_fallthru
          _
        // Predicated region
        $region29: #{tpu_custom_call.1} parent=23 // pred_check
          %p256 = pneg %p89
        $region30: #{tpu_custom_call.1} parent=23 // pred_check_branch
          %258 = sbr.rel (%p256) target = $region32
        $region31: #{tpu_custom_call.1} parent=23 // pred_region
          %s259 = sand.u32 %s21, 1
          %s260 = scalar_lea.sflag [#allocation7], %s259
          %s261 = sand.u32 %s79, 1
          %s262 = smul.addr %s261, 32
          %s263 = scalar_lea.vmem [#allocation6], %s262
          %s264 = ssub.s32 %s29, 1
          %p265 = scmp.gt.s32.totalorder %s264, 0
          %s266 = scalar_select %p265, %s264, 0
          %s268 = ssub.s32 512, 512
          %269 = vsyncadd %s260, %s268
          %s270 = smul.addr %s28, 8
          %s271 = sadd.s32 %s266, %s270
          %s272 = smul.addr %s271, 128
          %s273 = scalar_lea.hbm %s1, %s272
          %s274 = sshll.u32 %s263, 4
          %s275 = int_to_ptr.vmem [resolvable:$true] %s274
          %280 = dma.hbm_to_vmem [thread:$0]  %s273, 512, %s275, %s260, 256, 128, 8
        $region32: #{tpu_custom_call.1} parent=23 // pred_fallthru
          _
        // Predicated region
        $region33: #{tpu_custom_call.1} parent=23 // pred_check
          %p281 = pneg %p123
        $region34: #{tpu_custom_call.1} parent=23 // pred_check_branch
          %283 = sbr.rel (%p281) target = $region36
        $region35: #{tpu_custom_call.1} parent=23 // pred_region
          %s284 = sand.u32 %s21, 1
          %s285 = scalar_lea.sflag [#allocation7], %s284
          %s286 = sand.u32 %s113, 1
          %s287 = smul.addr %s286, 32
          %s288 = scalar_lea.vmem [#allocation8], %s287
          %s289 = sadd.s32 %s29, 1
          %p290 = scmp.lt.s32.totalorder %s289, 1
          %s291 = scalar_select %p290, %s289, 1
          %s293 = ssub.s32 512, 512
          %294 = vsyncadd %s285, %s293
          %s295 = smul.addr %s28, 8
          %s296 = sadd.s32 %s291, %s295
          %s297 = smul.addr %s296, 128
          %s298 = scalar_lea.hbm %s2, %s297
          %s299 = sshll.u32 %s288, 4
          %s300 = int_to_ptr.vmem [resolvable:$true] %s299
          %305 = dma.hbm_to_vmem [thread:$0]  %s298, 512, %s300, %s285, 256, 128, 8
        $region36: #{tpu_custom_call.1} parent=23 // pred_fallthru
          _
      $region24: #{tpu_custom_call.1} parent=5 // pred_fallthru
        _
      %p306 = scmp.le.s32.totalorder 1, %s21
      %p307 = scmp.lt.s32.totalorder %s21, 5
      %p308 = pnand %p306, %p307
      %p309 = pneg %p308
      // Predicated region
      $region37: #{tpu_custom_call.1} parent=5 // pred_check
        _
      $region38: #{tpu_custom_call.1} parent=5 // pred_check_branch
        %311 = sbr.rel (%p308) target = $region40
      $region39: #{tpu_custom_call.1} parent=5 // pred_region
        %s312 = ssub.s32 %s21, 1
        %s313 = sand.u32 %s48, 1
        %s314 = scalar_lea.sflag [#allocation4], %s313
        %s315 = sand.u32 %s48, 1
        %s316 = smul.addr %s315, 32
        %s317 = scalar_lea.vmem [#allocation3], %s316
        // Predicated region
        $region41: #{tpu_custom_call.1} parent=39 // pred_check
          %p318 = pneg %p61
        $region42: #{tpu_custom_call.1} parent=39 // pred_check_branch
          %320 = sbr.rel (%p318) target = $region44
        $region43: #{tpu_custom_call.1} parent=39 // pred_region
          %321 = dma.done %s314, 512
        $region44: #{tpu_custom_call.1} parent=39 // pred_fallthru
          _
        %s322 = sand.u32 %s26, 1
        %s323 = scalar_lea.sflag [#allocation7], %s322
        %s324 = sand.u32 %s82, 1
        %s325 = smul.addr %s324, 32
        %s326 = scalar_lea.vmem [#allocation6], %s325
        // Predicated region
        $region45: #{tpu_custom_call.1} parent=39 // pred_check
          %p327 = pneg %p95
        $region46: #{tpu_custom_call.1} parent=39 // pred_check_branch
          %329 = sbr.rel (%p327) target = $region48
        $region47: #{tpu_custom_call.1} parent=39 // pred_region
          %330 = dma.done %s323, 512
        $region48: #{tpu_custom_call.1} parent=39 // pred_fallthru
          _
        %s331 = sand.u32 %s26, 1
        %s332 = scalar_lea.sflag [#allocation7], %s331
        %s333 = sand.u32 %s116, 1
        %s334 = smul.addr %s333, 32
        %s335 = scalar_lea.vmem [#allocation8], %s334
        // Predicated region
        $region49: #{tpu_custom_call.1} parent=39 // pred_check
          %p336 = pneg %p129
        $region50: #{tpu_custom_call.1} parent=39 // pred_check_branch
          %338 = sbr.rel (%p336) target = $region52
        $region51: #{tpu_custom_call.1} parent=39 // pred_region
          %339 = dma.done %s332, 512
        $region52: #{tpu_custom_call.1} parent=39 // pred_fallthru
          _
        // Predicated region
        $region53: #{tpu_custom_call.1} parent=39 // pred_check
          %p340 = pneg %p150
        $region54: #{tpu_custom_call.1} parent=39 // pred_check_branch
          %342 = sbr.rel (%p340) target = $region56
        $region55: #{tpu_custom_call.1} parent=39 // pred_region
          %343 = dma.done [#allocation10], 1536
        $region56: #{tpu_custom_call.1} parent=39 // pred_fallthru
          _
        %s344 = sand.u32 %s48, 1
        %s345 = scalar_lea.sflag [#allocation4], %s344
        %s346 = sand.u32 %s48, 1
        %s347 = smul.addr %s346, 32
        %s348 = scalar_lea.vmem [#allocation3], %s347
        %p349 = pneg %p61
        %p350 = pneg %p58
        %s351 = sand.u32 %s26, 1
        %s352 = scalar_lea.sflag [#allocation7], %s351
        %s353 = sand.u32 %s82, 1
        %s354 = smul.addr %s353, 32
        %s355 = scalar_lea.vmem [#allocation6], %s354
        %p356 = pneg %p95
        %p357 = pneg %p92
        %s358 = sand.u32 %s26, 1
        %s359 = scalar_lea.sflag [#allocation7], %s358
        %s360 = sand.u32 %s116, 1
        %s361 = smul.addr %s360, 32
        %s362 = scalar_lea.vmem [#allocation8], %s361
        %p363 = pneg %p129
        %p364 = pneg %p126
        %p365 = pneg %p150
        %p366 = pneg %p147
        %p367 = pneg %p171
        %p368 = pneg %p168
        %p369 = pneg %p199
        %p370 = pneg %p196
        %s371 = sand.u32 %s186, 1
        %s372 = scalar_lea.sflag [#allocation5], %s371
        %s373 = sand.u32 %s186, 1
        %s374 = smul.addr %s373, 32
        %s375 = scalar_lea.vmem [#allocation11], %s374
        %s376 = ssub.s32 %s31, 1
        %p377 = scmp.gt.s32.totalorder %s376, 0
        %s378 = scalar_select %p377, %s376, 0
        %s379 = sadd.s32 %s31, 1
        %p380 = scmp.lt.s32.totalorder %s379, 1
        %s381 = scalar_select %p380, %s379, 1
        %v382 = vld [vmem:[%s317] sm:$0xff]
        %v383 = vld [vmem:[%s317 + $0x8] sm:$0xff]
        %v384 = vld [vmem:[%s317 + $0x10] sm:$0xff]
        %v385 = vld [vmem:[%s317 + $0x18] sm:$0xff]
        %386 = vst [vmem:[#allocation2 + $0x68] sm:$0xff] %v382
        %387 = vst [vmem:[#allocation2 + $0x80] sm:$0xff] %v383
        %388 = vst [vmem:[#allocation2 + $0x98] sm:$0xff] %v384
        %389 = vst [vmem:[#allocation2 + $0xb0] sm:$0xff] %v385
        %394 = vrot.lane.b32.xlu0 %v382, 16
        %v395 = vpop.permute.xlu0 %394
        %396 = vrot.lane.b32.xlu0 %v383, 16
        %v397 = vpop.permute.xlu0 %396
        %398 = vrot.lane.b32.xlu0 %v384, 16
        %v399 = vpop.permute.xlu0 %398
        %400 = vrot.lane.b32.xlu0 %v385, 16
        %v401 = vpop.permute.xlu0 %400
        %vm406 = vcmask 1047680
        %407 = vst.msk [vmem:[#allocation2 + $0x8] sm:$0xff] %vm406, %v395
        %408 = vst.msk [vmem:[#allocation2 + $0x20] sm:$0xff] %vm406, %v397
        %409 = vst.msk [vmem:[#allocation2 + $0x38] sm:$0xff] %vm406, %v399
        %410 = vst.msk [vmem:[#allocation2 + $0x50] sm:$0xff] %vm406, %v401
        %v411 = vld [vmem:[%s326] sm:$0xff]
        %v412 = vld [vmem:[%s326 + $0x8] sm:$0xff]
        %v413 = vld [vmem:[%s326 + $0x10] sm:$0xff]
        %v414 = vld [vmem:[%s326 + $0x18] sm:$0xff]
        %419 = vrot.lane.b32.xlu0 %v411, 16
        %v420 = vpop.permute.xlu0 %419
        %421 = vrot.lane.b32.xlu0 %v412, 16
        %v422 = vpop.permute.xlu0 %421
        %423 = vrot.lane.b32.xlu0 %v413, 16
        %v424 = vpop.permute.xlu0 %423
        %425 = vrot.lane.b32.xlu0 %v414, 16
        %v426 = vpop.permute.xlu0 %425
        %vm431 = vcmask 130048
        %432 = vst.msk [vmem:[#allocation2 + $0x8] sm:$0xff] %vm431, %v420
        %433 = vst.msk [vmem:[#allocation2 + $0x20] sm:$0xff] %vm431, %v422
        %434 = vst.msk [vmem:[#allocation2 + $0x38] sm:$0xff] %vm431, %v424
        %435 = vst.msk [vmem:[#allocation2 + $0x50] sm:$0xff] %vm431, %v426
        %436 = vrot.lane.b32.xlu0 %v382, 112
        %v437 = vpop.permute.xlu0 %436
        %438 = vrot.lane.b32.xlu0 %v383, 112
        %v439 = vpop.permute.xlu0 %438
        %440 = vrot.lane.b32.xlu0 %v384, 112
        %v441 = vpop.permute.xlu0 %440
        %442 = vrot.lane.b32.xlu0 %v385, 112
        %v443 = vpop.permute.xlu0 %442
        %vm448 = vcmask 916480
        %449 = vst.msk [vmem:[#allocation2 + $0xc8] sm:$0xff] %vm448, %v437
        %450 = vst.msk [vmem:[#allocation2 + $0xe0] sm:$0xff] %vm448, %v439
        %451 = vst.msk [vmem:[#allocation2 + $0xf8] sm:$0xff] %vm448, %v441
        %452 = vst.msk [vmem:[#allocation2 + $0x110] sm:$0xff] %vm448, %v443
        %v453 = vld [vmem:[%s335] sm:$0xff]
        %v454 = vld [vmem:[%s335 + $0x8] sm:$0xff]
        %v455 = vld [vmem:[%s335 + $0x10] sm:$0xff]
        %v456 = vld [vmem:[%s335 + $0x18] sm:$0xff]
        %461 = vrot.lane.b32.xlu0 %v453, 112
        %v462 = vpop.permute.xlu0 %461
        %463 = vrot.lane.b32.xlu0 %v454, 112
        %v464 = vpop.permute.xlu0 %463
        %465 = vrot.lane.b32.xlu0 %v455, 112
        %v466 = vpop.permute.xlu0 %465
        %467 = vrot.lane.b32.xlu0 %v456, 112
        %v468 = vpop.permute.xlu0 %467
        %vm473 = vcmask 1048448
        %474 = vst.msk [vmem:[#allocation2 + $0xc8] sm:$0xff] %vm473, %v462
        %475 = vst.msk [vmem:[#allocation2 + $0xe0] sm:$0xff] %vm473, %v464
        %476 = vst.msk [vmem:[#allocation2 + $0xf8] sm:$0xff] %vm473, %v466
        %477 = vst.msk [vmem:[#allocation2 + $0x110] sm:$0xff] %vm473, %v468
        %p478 = scmp.eq.s32.totalorder %s31, 0
        // Predicated region
        $region57: #{tpu_custom_call.1} parent=39 // pred_check
          %p479 = pneg %p478
        $region58: #{tpu_custom_call.1} parent=39 // pred_check_branch
          %481 = sbr.rel (%p479) target = $region60
        $region59: #{tpu_custom_call.1} parent=39 // pred_region
          %482 = vst.msk [vmem:[#allocation2 + $0x8] sm:$0xff] %vm431, 0.0
          %483 = vst.msk [vmem:[#allocation2 + $0x20] sm:$0xff] %vm431, 0.0
          %484 = vst.msk [vmem:[#allocation2 + $0x38] sm:$0xff] %vm431, 0.0
          %485 = vst.msk [vmem:[#allocation2 + $0x50] sm:$0xff] %vm431, 0.0
        $region60: #{tpu_custom_call.1} parent=39 // pred_fallthru
          _
        %p486 = scmp.eq.s32.totalorder %s31, 1
        // Predicated region
        $region61: #{tpu_custom_call.1} parent=39 // pred_check
          %p487 = pneg %p486
        $region62: #{tpu_custom_call.1} parent=39 // pred_check_branch
          %489 = sbr.rel (%p487) target = $region64
        $region63: #{tpu_custom_call.1} parent=39 // pred_region
          %490 = vst.msk [vmem:[#allocation2 + $0xc8] sm:$0xff] %vm473, 0.0
          %491 = vst.msk [vmem:[#allocation2 + $0xe0] sm:$0xff] %vm473, 0.0
          %492 = vst.msk [vmem:[#allocation2 + $0xf8] sm:$0xff] %vm473, 0.0
          %493 = vst.msk [vmem:[#allocation2 + $0x110] sm:$0xff] %vm473, 0.0
        $region64: #{tpu_custom_call.1} parent=39 // pred_fallthru
          _
        %vm494 = vcmask 1048568
        %495 = vst.msk [vmem:[#allocation2] sm:$0xff] %vm494, 0.0
        %496 = vst.msk [vmem:[#allocation2 + $0x18] sm:$0xff] %vm494, 0.0
        %497 = vst.msk [vmem:[#allocation2 + $0x30] sm:$0xff] %vm494, 0.0
        %498 = vst.msk [vmem:[#allocation2 + $0x48] sm:$0xff] %vm494, 0.0
        %499 = vst.msk [vmem:[#allocation2 + $0x60] sm:$0xff] %vm494, 0.0
        %500 = vst.msk [vmem:[#allocation2 + $0x78] sm:$0xff] %vm494, 0.0
        %501 = vst.msk [vmem:[#allocation2 + $0x90] sm:$0xff] %vm494, 0.0
        %502 = vst.msk [vmem:[#allocation2 + $0xa8] sm:$0xff] %vm494, 0.0
        %503 = vst.msk [vmem:[#allocation2 + $0xc0] sm:$0xff] %vm494, 0.0
        %504 = vst.msk [vmem:[#allocation2 + $0xd8] sm:$0xff] %vm494, 0.0
        %505 = vst.msk [vmem:[#allocation2 + $0xf0] sm:$0xff] %vm494, 0.0
        %506 = vst.msk [vmem:[#allocation2 + $0x108] sm:$0xff] %vm494, 0.0
        %vm507 = vcmask 7168
        %508 = vst.msk [vmem:[#allocation2 + $0x10] sm:$0xff] %vm507, 0.0
        %509 = vst.msk [vmem:[#allocation2 + $0x28] sm:$0xff] %vm507, 0.0
        %510 = vst.msk [vmem:[#allocation2 + $0x40] sm:$0xff] %vm507, 0.0
        %511 = vst.msk [vmem:[#allocation2 + $0x58] sm:$0xff] %vm507, 0.0
        %512 = vst.msk [vmem:[#allocation2 + $0x70] sm:$0xff] %vm507, 0.0
        %513 = vst.msk [vmem:[#allocation2 + $0x88] sm:$0xff] %vm507, 0.0
        %514 = vst.msk [vmem:[#allocation2 + $0xa0] sm:$0xff] %vm507, 0.0
        %515 = vst.msk [vmem:[#allocation2 + $0xb8] sm:$0xff] %vm507, 0.0
        %516 = vst.msk [vmem:[#allocation2 + $0xd0] sm:$0xff] %vm507, 0.0
        %517 = vst.msk [vmem:[#allocation2 + $0xe8] sm:$0xff] %vm507, 0.0
        %518 = vst.msk [vmem:[#allocation2 + $0x100] sm:$0xff] %vm507, 0.0
        %519 = vst.msk [vmem:[#allocation2 + $0x118] sm:$0xff] %vm507, 0.0
        %v520 = vlaneseq
        %v521 = vand.u32 %v520, 127
        %vm522 = vcmp.lt.s32.totalorder %v521, 0
        %v523 = vsub.s32 0, %v521
        %v524 = vsel %vm522, %v523, %v521
        %v525 = vshrl.u32 %v524, 4
        %v526 = vand.u32 %v524, 15
        %v527 = vsub.s32 0, %v526
        %v528 = vsel %vm522, %v527, %v526
        %vm529 = vcmp.ne.s32.totalorder %v528, 0
        %vm530 = vcmp.lt.s32.totalorder %v528, 0
        %vm531 = vmand %vm530, %vm529
        %v532 = vadd.s32 %v528, 16
        %v533 = vsel %vm531, %v532, %v528
        %v534 = vld [vmem:[#allocation2 + $0x8] sm:$0xff]
        %v535 = vld [vmem:[#allocation2 + $0x20] sm:$0xff]
        %v536 = vld [vmem:[#allocation2 + $0x38] sm:$0xff]
        %v537 = vld [vmem:[#allocation2 + $0x50] sm:$0xff]
        %v538 = vld [vmem:[#allocation2 + $0x68] sm:$0xff]
        %v539 = vld [vmem:[#allocation2 + $0x80] sm:$0xff]
        %v540 = vld [vmem:[#allocation2 + $0x98] sm:$0xff]
        %v541 = vld [vmem:[#allocation2 + $0xb0] sm:$0xff]
        %v542 = vld [vmem:[#allocation2 + $0xc8] sm:$0xff]
        %v543 = vld [vmem:[#allocation2 + $0xe0] sm:$0xff]
        %v544 = vld [vmem:[#allocation2 + $0xf8] sm:$0xff]
        %v545 = vld [vmem:[#allocation2 + $0x110] sm:$0xff]
        %vm546 = vcmp.ne.s32.totalorder %v533, 0
        %v547 = vld [vmem:[#allocation2] sm:$0xff]
        %v548 = vld [vmem:[#allocation2 + $0x18] sm:$0xff]
        %v549 = vld [vmem:[#allocation2 + $0x30] sm:$0xff]
        %v550 = vld [vmem:[#allocation2 + $0x48] sm:$0xff]
        %v551 = vld [vmem:[#allocation2 + $0x60] sm:$0xff]
        %v552 = vld [vmem:[#allocation2 + $0x78] sm:$0xff]
        %v553 = vld [vmem:[#allocation2 + $0x90] sm:$0xff]
        %v554 = vld [vmem:[#allocation2 + $0xa8] sm:$0xff]
        %v555 = vld [vmem:[#allocation2 + $0xc0] sm:$0xff]
        %v556 = vld [vmem:[#allocation2 + $0xd8] sm:$0xff]
        %v557 = vld [vmem:[#allocation2 + $0xf0] sm:$0xff]
        %v558 = vld [vmem:[#allocation2 + $0x108] sm:$0xff]
        %v559 = vsel %vm546, 1, 0
        %vm560 = vcmp.eq.s32.totalorder %v559, 1
        %585 = vrot.lane.b32.xlu0 %v547, 1
        %v586 = vpop.permute.xlu0 %585
        %587 = vrot.lane.b32.xlu0 %v534, 1
        %v588 = vpop.permute.xlu0 %587
        %589 = vrot.lane.b32.xlu0 %v548, 1
        %v590 = vpop.permute.xlu0 %589
        %591 = vrot.lane.b32.xlu0 %v535, 1
        %v592 = vpop.permute.xlu0 %591
        %593 = vrot.lane.b32.xlu0 %v549, 1
        %v594 = vpop.permute.xlu0 %593
        %595 = vrot.lane.b32.xlu0 %v536, 1
        %v596 = vpop.permute.xlu0 %595
        %597 = vrot.lane.b32.xlu0 %v550, 1
        %v598 = vpop.permute.xlu0 %597
        %599 = vrot.lane.b32.xlu0 %v537, 1
        %v600 = vpop.permute.xlu0 %599
        %601 = vrot.lane.b32.xlu0 %v551, 1
        %v602 = vpop.permute.xlu0 %601
        %603 = vrot.lane.b32.xlu0 %v538, 1
        %v604 = vpop.permute.xlu0 %603
        %605 = vrot.lane.b32.xlu0 %v552, 1
        %v606 = vpop.permute.xlu0 %605
        %607 = vrot.lane.b32.xlu0 %v539, 1
        %v608 = vpop.permute.xlu0 %607
        %609 = vrot.lane.b32.xlu0 %v553, 1
        %v610 = vpop.permute.xlu0 %609
        %611 = vrot.lane.b32.xlu0 %v540, 1
        %v612 = vpop.permute.xlu0 %611
        %613 = vrot.lane.b32.xlu0 %v554, 1
        %v614 = vpop.permute.xlu0 %613
        %615 = vrot.lane.b32.xlu0 %v541, 1
        %v616 = vpop.permute.xlu0 %615
        %617 = vrot.lane.b32.xlu0 %v555, 1
        %v618 = vpop.permute.xlu0 %617
        %619 = vrot.lane.b32.xlu0 %v542, 1
        %v620 = vpop.permute.xlu0 %619
        %621 = vrot.lane.b32.xlu0 %v556, 1
        %v622 = vpop.permute.xlu0 %621
        %623 = vrot.lane.b32.xlu0 %v543, 1
        %v624 = vpop.permute.xlu0 %623
        %625 = vrot.lane.b32.xlu0 %v557, 1
        %v626 = vpop.permute.xlu0 %625
        %627 = vrot.lane.b32.xlu0 %v544, 1
        %v628 = vpop.permute.xlu0 %627
        %629 = vrot.lane.b32.xlu0 %v558, 1
        %v630 = vpop.permute.xlu0 %629
        %631 = vrot.lane.b32.xlu0 %v545, 1
        %v632 = vpop.permute.xlu0 %631
        %v633 = vsel %vm507, %v586, %v588
        %v634 = vsel %vm507, %v590, %v592
        %v635 = vsel %vm507, %v594, %v596
        %v636 = vsel %vm507, %v598, %v600
        %v637 = vsel %vm507, %v602, %v604
        %v638 = vsel %vm507, %v606, %v608
        %v639 = vsel %vm507, %v610, %v612
        %v640 = vsel %vm507, %v614, %v616
        %v641 = vsel %vm507, %v618, %v620
        %v642 = vsel %vm507, %v622, %v624
        %v643 = vsel %vm507, %v626, %v628
        %v644 = vsel %vm507, %v630, %v632
        %v657 = vsel %vm560, %v633, 0.0
        %v658 = vsel %vm560, %v634, 0.0
        %v659 = vsel %vm560, %v635, 0.0
        %v660 = vsel %vm560, %v636, 0.0
        %v661 = vsel %vm560, %v637, 0.0
        %v662 = vsel %vm560, %v638, 0.0
        %v663 = vsel %vm560, %v639, 0.0
        %v664 = vsel %vm560, %v640, 0.0
        %v665 = vsel %vm560, %v641, 0.0
        %v666 = vsel %vm560, %v642, 0.0
        %v667 = vsel %vm560, %v643, 0.0
        %v668 = vsel %vm560, %v644, 0.0
        %vm669 = vcmp.ne.s32.totalorder %v533, 15
        %v670 = vld [vmem:[#allocation2 + $0x8] sm:$0xff]
        %v671 = vld [vmem:[#allocation2 + $0x10] sm:$0xff]
        %v672 = vld [vmem:[#allocation2 + $0x20] sm:$0xff]
        %v673 = vld [vmem:[#allocation2 + $0x28] sm:$0xff]
        %v674 = vld [vmem:[#allocation2 + $0x38] sm:$0xff]
        %v675 = vld [vmem:[#allocation2 + $0x40] sm:$0xff]
        %v676 = vld [vmem:[#allocation2 + $0x50] sm:$0xff]
        %v677 = vld [vmem:[#allocation2 + $0x58] sm:$0xff]
        %v678 = vld [vmem:[#allocation2 + $0x68] sm:$0xff]
        %v679 = vld [vmem:[#allocation2 + $0x70] sm:$0xff]
        %v680 = vld [vmem:[#allocation2 + $0x80] sm:$0xff]
        %v681 = vld [vmem:[#allocation2 + $0x88] sm:$0xff]
        %v682 = vld [vmem:[#allocation2 + $0x98] sm:$0xff]
        %v683 = vld [vmem:[#allocation2 + $0xa0] sm:$0xff]
        %v684 = vld [vmem:[#allocation2 + $0xb0] sm:$0xff]
        %v685 = vld [vmem:[#allocation2 + $0xb8] sm:$0xff]
        %v686 = vld [vmem:[#allocation2 + $0xc8] sm:$0xff]
        %v687 = vld [vmem:[#allocation2 + $0xd0] sm:$0xff]
        %v688 = vld [vmem:[#allocation2 + $0xe0] sm:$0xff]
        %v689 = vld [vmem:[#allocation2 + $0xe8] sm:$0xff]
        %v690 = vld [vmem:[#allocation2 + $0xf8] sm:$0xff]
        %v691 = vld [vmem:[#allocation2 + $0x100] sm:$0xff]
        %v692 = vld [vmem:[#allocation2 + $0x110] sm:$0xff]
        %v693 = vld [vmem:[#allocation2 + $0x118] sm:$0xff]
        %v694 = vsel %vm669, 1, 0
        %vm695 = vcmp.eq.s32.totalorder %v694, 1
        %720 = vrot.lane.b32.xlu0 %v670, 127
        %v721 = vpop.permute.xlu0 %720
        %722 = vrot.lane.b32.xlu0 %v671, 127
        %v723 = vpop.permute.xlu0 %722
        %724 = vrot.lane.b32.xlu0 %v672, 127
        %v725 = vpop.permute.xlu0 %724
        %726 = vrot.lane.b32.xlu0 %v673, 127
        %v727 = vpop.permute.xlu0 %726
        %728 = vrot.lane.b32.xlu0 %v674, 127
        %v729 = vpop.permute.xlu0 %728
        %730 = vrot.lane.b32.xlu0 %v675, 127
        %v731 = vpop.permute.xlu0 %730
        %732 = vrot.lane.b32.xlu0 %v676, 127
        %v733 = vpop.permute.xlu0 %732
        %734 = vrot.lane.b32.xlu0 %v677, 127
        %v735 = vpop.permute.xlu0 %734
        %736 = vrot.lane.b32.xlu0 %v678, 127
        %v737 = vpop.permute.xlu0 %736
        %738 = vrot.lane.b32.xlu0 %v679, 127
        %v739 = vpop.permute.xlu0 %738
        %740 = vrot.lane.b32.xlu0 %v680, 127
        %v741 = vpop.permute.xlu0 %740
        %742 = vrot.lane.b32.xlu0 %v681, 127
        %v743 = vpop.permute.xlu0 %742
        %744 = vrot.lane.b32.xlu0 %v682, 127
        %v745 = vpop.permute.xlu0 %744
        %746 = vrot.lane.b32.xlu0 %v683, 127
        %v747 = vpop.permute.xlu0 %746
        %748 = vrot.lane.b32.xlu0 %v684, 127
        %v749 = vpop.permute.xlu0 %748
        %750 = vrot.lane.b32.xlu0 %v685, 127
        %v751 = vpop.permute.xlu0 %750
        %752 = vrot.lane.b32.xlu0 %v686, 127
        %v753 = vpop.permute.xlu0 %752
        %754 = vrot.lane.b32.xlu0 %v687, 127
        %v755 = vpop.permute.xlu0 %754
        %756 = vrot.lane.b32.xlu0 %v688, 127
        %v757 = vpop.permute.xlu0 %756
        %758 = vrot.lane.b32.xlu0 %v689, 127
        %v759 = vpop.permute.xlu0 %758
        %760 = vrot.lane.b32.xlu0 %v690, 127
        %v761 = vpop.permute.xlu0 %760
        %762 = vrot.lane.b32.xlu0 %v691, 127
        %v763 = vpop.permute.xlu0 %762
        %764 = vrot.lane.b32.xlu0 %v692, 127
        %v765 = vpop.permute.xlu0 %764
        %766 = vrot.lane.b32.xlu0 %v693, 127
        %v767 = vpop.permute.xlu0 %766
        %vm768 = vcmask 1039360
        %v769 = vsel %vm768, %v721, %v723
        %v770 = vsel %vm768, %v725, %v727
        %v771 = vsel %vm768, %v729, %v731
        %v772 = vsel %vm768, %v733, %v735
        %v773 = vsel %vm768, %v737, %v739
        %v774 = vsel %vm768, %v741, %v743
        %v775 = vsel %vm768, %v745, %v747
        %v776 = vsel %vm768, %v749, %v751
        %v777 = vsel %vm768, %v753, %v755
        %v778 = vsel %vm768, %v757, %v759
        %v779 = vsel %vm768, %v761, %v763
        %v780 = vsel %vm768, %v765, %v767
        %v793 = vsel %vm695, %v769, 0.0
        %v794 = vsel %vm695, %v770, 0.0
        %v795 = vsel %vm695, %v771, 0.0
        %v796 = vsel %vm695, %v772, 0.0
        %v797 = vsel %vm695, %v773, 0.0
        %v798 = vsel %vm695, %v774, 0.0
        %v799 = vsel %vm695, %v775, 0.0
        %v800 = vsel %vm695, %v776, 0.0
        %v801 = vsel %vm695, %v777, 0.0
        %v802 = vsel %vm695, %v778, 0.0
        %v803 = vsel %vm695, %v779, 0.0
        %v804 = vsel %vm695, %v780, 0.0
        %s805 = scalar_lea.vmem [#allocation9], 32
        %v806 = vld [vmem:[%s805] sm:$0xff]
        %v807 = vld [vmem:[%s805 + $0x8] sm:$0xff]
        %v808 = vld [vmem:[%s805 + $0x10] sm:$0xff]
        %v809 = vld [vmem:[%s805 + $0x18] sm:$0xff]
        %v810 = vld [vmem:[#allocation9] sm:$0xff]
        %v811 = vld [vmem:[#allocation9 + $0x8] sm:$0xff]
        %v812 = vld [vmem:[#allocation9 + $0x10] sm:$0xff]
        %v813 = vld [vmem:[#allocation9 + $0x18] sm:$0xff]
        %vm814 = vcmask 785408
        %v816 = vsel %vm814, %v810, 0
        %v819 = vsel %vm814, %v811, 0
        %v822 = vsel %vm814, %v812, 0
        %v825 = vsel %vm814, %v813, 0
        %827 = vmatprep.subr.mxu0 0.0
        %v828 = vand.u32 %v657, 4294901760
        %829 = vmatpush1.msra.mxu0 %v828
        %830 = vmatprep.subr.mxu0 0.0
        %v831 = vand.u32 %v658, 4294901760
        %832 = vmatpush1.msra.mxu0 %v831
        %833 = vmatprep.subr.mxu0 0.0
        %v834 = vand.u32 %v659, 4294901760
        %835 = vmatpush1.msra.mxu0 %v834
        %836 = vmatprep.subr.mxu0 0.0
        %v837 = vand.u32 %v660, 4294901760
        %838 = vmatpush1.msra.mxu0 %v837
        %839 = vmatprep.subr.mxu0 0.0
        %v840 = vand.u32 %v661, 4294901760
        %841 = vmatpush1.msra.mxu0 %v840
        %842 = vmatprep.subr.mxu0 0.0
        %v843 = vand.u32 %v662, 4294901760
        %844 = vmatpush1.msra.mxu0 %v843
        %845 = vmatprep.subr.mxu0 0.0
        %v846 = vand.u32 %v663, 4294901760
        %847 = vmatpush1.msra.mxu0 %v846
        %848 = vmatprep.subr.mxu0 0.0
        %v849 = vand.u32 %v664, 4294901760
        %850 = vmatpush1.msra.mxu0 %v849
        %851 = vmatprep.subr.mxu0 0.0
        %v852 = vand.u32 %v665, 4294901760
        %853 = vmatpush1.msra.mxu0 %v852
        %854 = vmatprep.subr.mxu0 0.0
        %v855 = vand.u32 %v666, 4294901760
        %856 = vmatpush1.msra.mxu0 %v855
        %857 = vmatprep.subr.mxu0 0.0
        %v858 = vand.u32 %v667, 4294901760
        %859 = vmatpush1.msra.mxu0 %v858
        %860 = vmatprep.subr.mxu0 0.0
        %v861 = vand.u32 %v668, 4294901760
        %862 = vmatpush1.msra.mxu0 %v861
        %863 = vmatprep.subr.mxu0 0.0
        %864 = vmatpush1.msra.mxu0 0.0
        %865 = vmatprep.subr.mxu0 0.0
        %866 = vmatpush1.msra.mxu0 0.0
        %867 = vmatprep.subr.mxu0 0.0
        %868 = vmatpush1.msra.mxu0 0.0
        %869 = vmatprep.subr.mxu0 0.0
        %870 = vmatpush1.msra.mxu0 0.0
        %871 = vmatprep.subr.mxu0 0.0
        %872 = vmatpush1.msra.mxu0 0.0
        %873 = vmatprep.subr.mxu0 0.0
        %874 = vmatpush1.msra.mxu0 0.0
        %875 = vmatprep.subr.mxu0 0.0
        %876 = vmatpush1.msra.mxu0 0.0
        %877 = vmatprep.subr.mxu0 0.0
        %878 = vmatpush1.msra.mxu0 0.0
        %879 = vmatprep.subr.mxu0 0.0
        %880 = vmatpush1.msra.mxu0 0.0
        %881 = vmatprep.subr.mxu0 0.0
        %882 = vmatpush1.msra.mxu0 0.0
        %883 = vmatprep.subr.mxu0 0.0
        %884 = vmatpush1.msra.mxu0 0.0
        %885 = vmatprep.subr.mxu0 0.0
        %886 = vmatpush1.msra.mxu0 0.0
        %887 = vmatprep.subr.mxu0 0.0
        %888 = vmatpush1.msra.mxu0 0.0
        %889 = vmatprep.subr.mxu0 0.0
        %890 = vmatpush1.msra.mxu0 0.0
        %891 = vmatprep.subr.mxu0 0.0
        %892 = vmatpush1.msra.mxu0 0.0
        %893 = vmatprep.subr.mxu0 0.0
        %894 = vmatpush1.msra.mxu0 0.0
        %895 = vmatprep.subr.mxu0 0.0
        %896 = vmatpush1.msra.mxu0 0.0
        %897 = vmatprep.subr.mxu0 0.0
        %898 = vmatpush1.msra.mxu0 0.0
        %899 = vmatprep.subr.mxu0 0.0
        %900 = vmatpush1.msra.mxu0 0.0
        %901 = vmatprep.subr.mxu0 0.0
        %902 = vmatpush1.msra.mxu0 0.0
        %903 = vmatprep.mubr.f32.mxu0 0.0
        %v904 = vand.u32 %v816, 4294901760
        %v905 = vsub.f32 %v816, %v904
        %v906 = vand.u32 %v905, 4294901760
        %v907 = vsub.f32 %v905, %v906
        %v908 = vand.u32 %v907, 4294901760
        %909 = vmatmul.mubr.f32.gmra.mrb[0].mxu0 %v908
        %v910 = vpop.f32.mrb[0].mxu0
        %v911 = vadd.f32 0.0, %v910
        %v912 = vpop.f32.mrb[0].mxu0
        %913 = vmatprep.mubr.f32.mxu0 0.0
        %v914 = vand.u32 %v819, 4294901760
        %v915 = vsub.f32 %v819, %v914
        %v916 = vand.u32 %v915, 4294901760
        %v917 = vsub.f32 %v915, %v916
        %v918 = vand.u32 %v917, 4294901760
        %919 = vmatmul.mubr.f32.gmra.mrb[0].mxu0 %v918
        %v920 = vpop.f32.mrb[0].mxu0
        %v921 = vadd.f32 0.0, %v920
        %v922 = vpop.f32.mrb[0].mxu0
        %923 = vmatprep.mubr.f32.mxu0 0.0
        %v924 = vand.u32 %v822, 4294901760
        %v925 = vsub.f32 %v822, %v924
        %v926 = vand.u32 %v925, 4294901760
        %v927 = vsub.f32 %v925, %v926
        %v928 = vand.u32 %v927, 4294901760
        %929 = vmatmul.mubr.f32.gmra.mrb[0].mxu0 %v928
        %v930 = vpop.f32.mrb[0].mxu0
        %v931 = vadd.f32 0.0, %v930
        %v932 = vpop.f32.mrb[0].mxu0
        %933 = vmatprep.mubr.f32.mxu0 0.0
        %v934 = vand.u32 %v825, 4294901760
        %v935 = vsub.f32 %v825, %v934
        %v936 = vand.u32 %v935, 4294901760
        %v937 = vsub.f32 %v935, %v936
        %v938 = vand.u32 %v937, 4294901760
        %939 = vmatmul.mubr.f32.gmra.mrb[0].mxu0 %v938
        %v940 = vpop.f32.mrb[0].mxu0
        %v941 = vadd.f32 0.0, %v940
        %v942 = vpop.f32.mrb[0].mxu0
        %943 = vdwg.mxu0
        %944 = vmatprep.subr.mxu0 0.0
        %v945 = vand.u32 %v657, 4294901760
        %v946 = vsub.f32 %v657, %v945
        %v947 = vand.u32 %v946, 4294901760
        %v948 = vsub.f32 %v946, %v947
        %v949 = vand.u32 %v948, 4294901760
        %950 = vmatpush1.msra.mxu0 %v949
        %951 = vmatprep.subr.mxu0 0.0
        %v952 = vand.u32 %v658, 4294901760
        %v953 = vsub.f32 %v658, %v952
        %v954 = vand.u32 %v953, 4294901760
        %v955 = vsub.f32 %v953, %v954
        %v956 = vand.u32 %v955, 4294901760
        %957 = vmatpush1.msra.mxu0 %v956
        %958 = vmatprep.subr.mxu0 0.0
        %v959 = vand.u32 %v659, 4294901760
        %v960 = vsub.f32 %v659, %v959
        %v961 = vand.u32 %v960, 4294901760
        %v962 = vsub.f32 %v960, %v961
        %v963 = vand.u32 %v962, 4294901760
        %964 = vmatpush1.msra.mxu0 %v963
        %965 = vmatprep.subr.mxu0 0.0
        %v966 = vand.u32 %v660, 4294901760
        %v967 = vsub.f32 %v660, %v966
        %v968 = vand.u32 %v967, 4294901760
        %v969 = vsub.f32 %v967, %v968
        %v970 = vand.u32 %v969, 4294901760
        %971 = vmatpush1.msra.mxu0 %v970
        %972 = vmatprep.subr.mxu0 0.0
        %v973 = vand.u32 %v661, 4294901760
        %v974 = vsub.f32 %v661, %v973
        %v975 = vand.u32 %v974, 4294901760
        %v976 = vsub.f32 %v974, %v975
        %v977 = vand.u32 %v976, 4294901760
        %978 = vmatpush1.msra.mxu0 %v977
        %979 = vmatprep.subr.mxu0 0.0
        %v980 = vand.u32 %v662, 4294901760
        %v981 = vsub.f32 %v662, %v980
        %v982 = vand.u32 %v981, 4294901760
        %v983 = vsub.f32 %v981, %v982
        %v984 = vand.u32 %v983, 4294901760
        %985 = vmatpush1.msra.mxu0 %v984
        %986 = vmatprep.subr.mxu0 0.0
        %v987 = vand.u32 %v663, 4294901760
        %v988 = vsub.f32 %v663, %v987
        %v989 = vand.u32 %v988, 4294901760
        %v990 = vsub.f32 %v988, %v989
        %v991 = vand.u32 %v990, 4294901760
        %992 = vmatpush1.msra.mxu0 %v991
        %993 = vmatprep.subr.mxu0 0.0
        %v994 = vand.u32 %v664, 4294901760
        %v995 = vsub.f32 %v664, %v994
        %v996 = vand.u32 %v995, 4294901760
        %v997 = vsub.f32 %v995, %v996
        %v998 = vand.u32 %v997, 4294901760
        %999 = vmatpush1.msra.mxu0 %v998
        %1000 = vmatprep.subr.mxu0 0.0
        %v1001 = vand.u32 %v665, 4294901760
        %v1002 = vsub.f32 %v665, %v1001
        %v1003 = vand.u32 %v1002, 4294901760
        %v1004 = vsub.f32 %v1002, %v1003
        %v1005 = vand.u32 %v1004, 4294901760
        %1006 = vmatpush1.msra.mxu0 %v1005
        %1007 = vmatprep.subr.mxu0 0.0
        %v1008 = vand.u32 %v666, 4294901760
        %v1009 = vsub.f32 %v666, %v1008
        %v1010 = vand.u32 %v1009, 4294901760
        %v1011 = vsub.f32 %v1009, %v1010
        %v1012 = vand.u32 %v1011, 4294901760
        %1013 = vmatpush1.msra.mxu0 %v1012
        %1014 = vmatprep.subr.mxu0 0.0
        %v1015 = vand.u32 %v667, 4294901760
        %v1016 = vsub.f32 %v667, %v1015
        %v1017 = vand.u32 %v1016, 4294901760
        %v1018 = vsub.f32 %v1016, %v1017
        %v1019 = vand.u32 %v1018, 4294901760
        %1020 = vmatpush1.msra.mxu0 %v1019
        %1021 = vmatprep.subr.mxu0 0.0
        %v1022 = vand.u32 %v668, 4294901760
        %v1023 = vsub.f32 %v668, %v1022
        %v1024 = vand.u32 %v1023, 4294901760
        %v1025 = vsub.f32 %v1023, %v1024
        %v1026 = vand.u32 %v1025, 4294901760
        %1027 = vmatpush1.msra.mxu0 %v1026
        %1028 = vmatprep.subr.mxu0 0.0
        %1029 = vmatpush1.msra.mxu0 0.0
        %1030 = vmatprep.subr.mxu0 0.0
        %1031 = vmatpush1.msra.mxu0 0.0
        %1032 = vmatprep.subr.mxu0 0.0
        %1033 = vmatpush1.msra.mxu0 0.0
        %1034 = vmatprep.subr.mxu0 0.0
        %1035 = vmatpush1.msra.mxu0 0.0
        %1036 = vmatprep.subr.mxu0 0.0
        %1037 = vmatpush1.msra.mxu0 0.0
        %1038 = vmatprep.subr.mxu0 0.0
        %1039 = vmatpush1.msra.mxu0 0.0
        %1040 = vmatprep.subr.mxu0 0.0
        %1041 = vmatpush1.msra.mxu0 0.0
        %1042 = vmatprep.subr.mxu0 0.0
        %1043 = vmatpush1.msra.mxu0 0.0
        %1044 = vmatprep.subr.mxu0 0.0
        %1045 = vmatpush1.msra.mxu0 0.0
        %1046 = vmatprep.subr.mxu0 0.0
        %1047 = vmatpush1.msra.mxu0 0.0
        %1048 = vmatprep.subr.mxu0 0.0
        %1049 = vmatpush1.msra.mxu0 0.0
        %1050 = vmatprep.subr.mxu0 0.0
        %1051 = vmatpush1.msra.mxu0 0.0
        %1052 = vmatprep.subr.mxu0 0.0
        %1053 = vmatpush1.msra.mxu0 0.0
        %1054 = vmatprep.subr.mxu0 0.0
        %1055 = vmatpush1.msra.mxu0 0.0
        %1056 = vmatprep.subr.mxu0 0.0
        %1057 = vmatpush1.msra.mxu0 0.0
        %1058 = vmatprep.subr.mxu0 0.0
        %1059 = vmatpush1.msra.mxu0 0.0
        %1060 = vmatprep.subr.mxu0 0.0
        %1061 = vmatpush1.msra.mxu0 0.0
        %1062 = vmatprep.subr.mxu0 0.0
        %1063 = vmatpush1.msra.mxu0 0.0
        %1064 = vmatprep.subr.mxu0 0.0
        %1065 = vmatpush1.msra.mxu0 0.0
        %1066 = vmatprep.subr.mxu0 0.0
        %1067 = vmatpush1.msra.mxu0 0.0
        %1068 = vmatprep.mubr.f32.mxu0 0.0
        %v1069 = vand.u32 %v816, 4294901760
        %1070 = vmatmul.mubr.f32.gmra.mrb[0].mxu0 %v1069
        %v1071 = vpop.f32.mrb[0].mxu0
        %v1072 = vadd.f32 %v911, %v1071
        %v1073 = vpop.f32.mrb[0].mxu0
        %1074 = vmatprep.mubr.f32.mxu0 0.0
        %v1075 = vand.u32 %v819, 4294901760
        %1076 = vmatmul.mubr.f32.gmra.mrb[0].mxu0 %v1075
        %v1077 = vpop.f32.mrb[0].mxu0
        %v1078 = vadd.f32 %v921, %v1077
        %v1079 = vpop.f32.mrb[0].mxu0
        %1080 = vmatprep.mubr.f32.mxu0 0.0
        %v1081 = vand.u32 %v822, 4294901760
        %1082 = vmatmul.mubr.f32.gmra.mrb[0].mxu0 %v1081
        %v1083 = vpop.f32.mrb[0].mxu0
        %v1084 = vadd.f32 %v931, %v1083
        %v1085 = vpop.f32.mrb[0].mxu0
        %1086 = vmatprep.mubr.f32.mxu0 0.0
        %v1087 = vand.u32 %v825, 4294901760
        %1088 = vmatmul.mubr.f32.gmra.mrb[0].mxu0 %v1087
        %v1089 = vpop.f32.mrb[0].mxu0
        %v1090 = vadd.f32 %v941, %v1089
        %v1091 = vpop.f32.mrb[0].mxu0
        %1092 = vdwg.mxu0
        %1093 = vmatprep.subr.mxu0 0.0
        %v1094 = vand.u32 %v657, 4294901760
        %v1095 = vsub.f32 %v657, %v1094
        %1096 = vmatpush1.msra.mxu0 %v1095
        %1097 = vmatprep.subr.mxu0 0.0
        %v1098 = vand.u32 %v658, 4294901760
        %v1099 = vsub.f32 %v658, %v1098
        %1100 = vmatpush1.msra.mxu0 %v1099
        %1101 = vmatprep.subr.mxu0 0.0
        %v1102 = vand.u32 %v659, 4294901760
        %v1103 = vsub.f32 %v659, %v1102
        %1104 = vmatpush1.msra.mxu0 %v1103
        %1105 = vmatprep.subr.mxu0 0.0
        %v1106 = vand.u32 %v660, 4294901760
        %v1107 = vsub.f32 %v660, %v1106
        %1108 = vmatpush1.msra.mxu0 %v1107
        %1109 = vmatprep.subr.mxu0 0.0
        %v1110 = vand.u32 %v661, 4294901760
        %v1111 = vsub.f32 %v661, %v1110
        %1112 = vmatpush1.msra.mxu0 %v1111
        %1113 = vmatprep.subr.mxu0 0.0
        %v1114 = vand.u32 %v662, 4294901760
        %v1115 = vsub.f32 %v662, %v1114
        %1116 = vmatpush1.msra.mxu0 %v1115
        %1117 = vmatprep.subr.mxu0 0.0
        %v1118 = vand.u32 %v663, 4294901760
        %v1119 = vsub.f32 %v663, %v1118
        %1120 = vmatpush1.msra.mxu0 %v1119
        %1121 = vmatprep.subr.mxu0 0.0
        %v1122 = vand.u32 %v664, 4294901760
        %v1123 = vsub.f32 %v664, %v1122
        %1124 = vmatpush1.msra.mxu0 %v1123
        %1125 = vmatprep.subr.mxu0 0.0
        %v1126 = vand.u32 %v665, 4294901760
        %v1127 = vsub.f32 %v665, %v1126
        %1128 = vmatpush1.msra.mxu0 %v1127
        %1129 = vmatprep.subr.mxu0 0.0
        %v1130 = vand.u32 %v666, 4294901760
        %v1131 = vsub.f32 %v666, %v1130
        %1132 = vmatpush1.msra.mxu0 %v1131
        %1133 = vmatprep.subr.mxu0 0.0
        %v1134 = vand.u32 %v667, 4294901760
        %v1135 = vsub.f32 %v667, %v1134
        %1136 = vmatpush1.msra.mxu0 %v1135
        %1137 = vmatprep.subr.mxu0 0.0
        %v1138 = vand.u32 %v668, 4294901760
        %v1139 = vsub.f32 %v668, %v1138
        %1140 = vmatpush1.msra.mxu0 %v1139
        %1141 = vmatprep.subr.mxu0 0.0
        %1142 = vmatpush1.msra.mxu0 0.0
        %1143 = vmatprep.subr.mxu0 0.0
        %1144 = vmatpush1.msra.mxu0 0.0
        %1145 = vmatprep.subr.mxu0 0.0
        %1146 = vmatpush1.msra.mxu0 0.0
        %1147 = vmatprep.subr.mxu0 0.0
        %1148 = vmatpush1.msra.mxu0 0.0
        %1149 = vmatprep.subr.mxu0 0.0
        %1150 = vmatpush1.msra.mxu0 0.0
        %1151 = vmatprep.subr.mxu0 0.0
        %1152 = vmatpush1.msra.mxu0 0.0
        %1153 = vmatprep.subr.mxu0 0.0
        %1154 = vmatpush1.msra.mxu0 0.0
        %1155 = vmatprep.subr.mxu0 0.0
        %1156 = vmatpush1.msra.mxu0 0.0
        %1157 = vmatprep.subr.mxu0 0.0
        %1158 = vmatpush1.msra.mxu0 0.0
        %1159 = vmatprep.subr.mxu0 0.0
        %1160 = vmatpush1.msra.mxu0 0.0
        %1161 = vmatprep.subr.mxu0 0.0
        %1162 = vmatpush1.msra.mxu0 0.0
        %1163 = vmatprep.subr.mxu0 0.0
        %1164 = vmatpush1.msra.mxu0 0.0
        %1165 = vmatprep.subr.mxu0 0.0
        %1166 = vmatpush1.msra.mxu0 0.0
        %1167 = vmatprep.subr.mxu0 0.0
        %1168 = vmatpush1.msra.mxu0 0.0
        %1169 = vmatprep.subr.mxu0 0.0
        %1170 = vmatpush1.msra.mxu0 0.0
        %1171 = vmatprep.subr.mxu0 0.0
        %1172 = vmatpush1.msra.mxu0 0.0
        %1173 = vmatprep.subr.mxu0 0.0
        %1174 = vmatpush1.msra.mxu0 0.0
        %1175 = vmatprep.subr.mxu0 0.0
        %1176 = vmatpush1.msra.mxu0 0.0
        %1177 = vmatprep.subr.mxu0 0.0
        %1178 = vmatpush1.msra.mxu0 0.0
        %1179 = vmatprep.subr.mxu0 0.0
        %1180 = vmatpush1.msra.mxu0 0.0
        %1181 = vmatprep.mubr.f32.mxu0 0.0
        %v1182 = vand.u32 %v816, 4294901760
        %v1183 = vsub.f32 %v816, %v1182
        %1184 = vmatmul.mubr.f32.gmra.mrb[0].mxu0 %v1183
        %v1185 = vpop.f32.mrb[0].mxu0
        %v1186 = vadd.f32 %v1072, %v1185
        %v1187 = vpop.f32.mrb[0].mxu0
        %1188 = vmatprep.mubr.f32.mxu0 0.0
        %v1189 = vand.u32 %v819, 4294901760
        %v1190 = vsub.f32 %v819, %v1189
        %1191 = vmatmul.mubr.f32.gmra.mrb[0].mxu0 %v1190
        %v1192 = vpop.f32.mrb[0].mxu0
        %v1193 = vadd.f32 %v1078, %v1192
        %v1194 = vpop.f32.mrb[0].mxu0
        %1195 = vmatprep.mubr.f32.mxu0 0.0
        %v1196 = vand.u32 %v822, 4294901760
        %v1197 = vsub.f32 %v822, %v1196
        %1198 = vmatmul.mubr.f32.gmra.mrb[0].mxu0 %v1197
        %v1199 = vpop.f32.mrb[0].mxu0
        %v1200 = vadd.f32 %v1084, %v1199
        %v1201 = vpop.f32.mrb[0].mxu0
        %1202 = vmatprep.mubr.f32.mxu0 0.0
        %v1203 = vand.u32 %v825, 4294901760
        %v1204 = vsub.f32 %v825, %v1203
        %1205 = vmatmul.mubr.f32.gmra.mrb[0].mxu0 %v1204
        %v1206 = vpop.f32.mrb[0].mxu0
        %v1207 = vadd.f32 %v1090, %v1206
        %v1208 = vpop.f32.mrb[0].mxu0
        %1209 = vdwg.mxu0
        %1210 = vmatprep.subr.mxu0 0.0
        %v1211 = vand.u32 %v657, 4294901760
        %1212 = vmatpush1.msra.mxu0 %v1211
        %1213 = vmatprep.subr.mxu0 0.0
        %v1214 = vand.u32 %v658, 4294901760
        %1215 = vmatpush1.msra.mxu0 %v1214
        %1216 = vmatprep.subr.mxu0 0.0
        %v1217 = vand.u32 %v659, 4294901760
        %1218 = vmatpush1.msra.mxu0 %v1217
        %1219 = vmatprep.subr.mxu0 0.0
        %v1220 = vand.u32 %v660, 4294901760
        %1221 = vmatpush1.msra.mxu0 %v1220
        %1222 = vmatprep.subr.mxu0 0.0
        %v1223 = vand.u32 %v661, 4294901760
        %1224 = vmatpush1.msra.mxu0 %v1223
        %1225 = vmatprep.subr.mxu0 0.0
        %v1226 = vand.u32 %v662, 4294901760
        %1227 = vmatpush1.msra.mxu0 %v1226
        %1228 = vmatprep.subr.mxu0 0.0
        %v1229 = vand.u32 %v663, 4294901760
        %1230 = vmatpush1.msra.mxu0 %v1229
        %1231 = vmatprep.subr.mxu0 0.0
        %v1232 = vand.u32 %v664, 4294901760
        %1233 = vmatpush1.msra.mxu0 %v1232
        %1234 = vmatprep.subr.mxu0 0.0
        %v1235 = vand.u32 %v665, 4294901760
        %1236 = vmatpush1.msra.mxu0 %v1235
        %1237 = vmatprep.subr.mxu0 0.0
        %v1238 = vand.u32 %v666, 4294901760
        %1239 = vmatpush1.msra.mxu0 %v1238
        %1240 = vmatprep.subr.mxu0 0.0
        %v1241 = vand.u32 %v667, 4294901760
        %1242 = vmatpush1.msra.mxu0 %v1241
        %1243 = vmatprep.subr.mxu0 0.0
        %v1244 = vand.u32 %v668, 4294901760
        %1245 = vmatpush1.msra.mxu0 %v1244
        %1246 = vmatprep.subr.mxu0 0.0
        %1247 = vmatpush1.msra.mxu0 0.0
        %1248 = vmatprep.subr.mxu0 0.0
        %1249 = vmatpush1.msra.mxu0 0.0
        %1250 = vmatprep.subr.mxu0 0.0
        %1251 = vmatpush1.msra.mxu0 0.0
        %1252 = vmatprep.subr.mxu0 0.0
        %1253 = vmatpush1.msra.mxu0 0.0
        %1254 = vmatprep.subr.mxu0 0.0
        %1255 = vmatpush1.msra.mxu0 0.0
        %1256 = vmatprep.subr.mxu0 0.0
        %1257 = vmatpush1.msra.mxu0 0.0
        %1258 = vmatprep.subr.mxu0 0.0
        %1259 = vmatpush1.msra.mxu0 0.0
        %1260 = vmatprep.subr.mxu0 0.0
        %1261 = vmatpush1.msra.mxu0 0.0
        %1262 = vmatprep.subr.mxu0 0.0
        %1263 = vmatpush1.msra.mxu0 0.0
        %1264 = vmatprep.subr.mxu0 0.0
        %1265 = vmatpush1.msra.mxu0 0.0
        %1266 = vmatprep.subr.mxu0 0.0
        %1267 = vmatpush1.msra.mxu0 0.0
        %1268 = vmatprep.subr.mxu0 0.0
        %1269 = vmatpush1.msra.mxu0 0.0
        %1270 = vmatprep.subr.mxu0 0.0
        %1271 = vmatpush1.msra.mxu0 0.0
        %1272 = vmatprep.subr.mxu0 0.0
        %1273 = vmatpush1.msra.mxu0 0.0
        %1274 = vmatprep.subr.mxu0 0.0
        %1275 = vmatpush1.msra.mxu0 0.0
        %1276 = vmatprep.subr.mxu0 0.0
        %1277 = vmatpush1.msra.mxu0 0.0
        %1278 = vmatprep.subr.mxu0 0.0
        %1279 = vmatpush1.msra.mxu0 0.0
        %1280 = vmatprep.subr.mxu0 0.0
        %1281 = vmatpush1.msra.mxu0 0.0
        %1282 = vmatprep.subr.mxu0 0.0
        %1283 = vmatpush1.msra.mxu0 0.0
        %1284 = vmatprep.subr.mxu0 0.0
        %1285 = vmatpush1.msra.mxu0 0.0
        %1286 = vmatprep.mubr.f32.mxu0 0.0
        %v1287 = vand.u32 %v816, 4294901760
        %v1288 = vsub.f32 %v816, %v1287
        %v1289 = vand.u32 %v1288, 4294901760
        %1290 = vmatmul.mubr.f32.gmra.mrb[0].mxu0 %v1289
        %v1291 = vpop.f32.mrb[0].mxu0
        %v1292 = vadd.f32 %v1186, %v1291
        %v1293 = vpop.f32.mrb[0].mxu0
        %1294 = vmatprep.mubr.f32.mxu0 0.0
        %v1295 = vand.u32 %v819, 4294901760
        %v1296 = vsub.f32 %v819, %v1295
        %v1297 = vand.u32 %v1296, 4294901760
        %1298 = vmatmul.mubr.f32.gmra.mrb[0].mxu0 %v1297
        %v1299 = vpop.f32.mrb[0].mxu0
        %v1300 = vadd.f32 %v1193, %v1299
        %v1301 = vpop.f32.mrb[0].mxu0
        %1302 = vmatprep.mubr.f32.mxu0 0.0
        %v1303 = vand.u32 %v822, 4294901760
        %v1304 = vsub.f32 %v822, %v1303
        %v1305 = vand.u32 %v1304, 4294901760
        %1306 = vmatmul.mubr.f32.gmra.mrb[0].mxu0 %v1305
        %v1307 = vpop.f32.mrb[0].mxu0
        %v1308 = vadd.f32 %v1200, %v1307
        %v1309 = vpop.f32.mrb[0].mxu0
        %1310 = vmatprep.mubr.f32.mxu0 0.0
        %v1311 = vand.u32 %v825, 4294901760
        %v1312 = vsub.f32 %v825, %v1311
        %v1313 = vand.u32 %v1312, 4294901760
        %1314 = vmatmul.mubr.f32.gmra.mrb[0].mxu0 %v1313
        %v1315 = vpop.f32.mrb[0].mxu0
        %v1316 = vadd.f32 %v1207, %v1315
        %v1317 = vpop.f32.mrb[0].mxu0
        %1318 = vdwg.mxu0
        %1319 = vmatprep.subr.mxu0 0.0
        %v1320 = vand.u32 %v657, 4294901760
        %v1321 = vsub.f32 %v657, %v1320
        %v1322 = vand.u32 %v1321, 4294901760
        %1323 = vmatpush1.msra.mxu0 %v1322
        %1324 = vmatprep.subr.mxu0 0.0
        %v1325 = vand.u32 %v658, 4294901760
        %v1326 = vsub.f32 %v658, %v1325
        %v1327 = vand.u32 %v1326, 4294901760
        %1328 = vmatpush1.msra.mxu0 %v1327
        %1329 = vmatprep.subr.mxu0 0.0
        %v1330 = vand.u32 %v659, 4294901760
        %v1331 = vsub.f32 %v659, %v1330
        %v1332 = vand.u32 %v1331, 4294901760
        %1333 = vmatpush1.msra.mxu0 %v1332
        %1334 = vmatprep.subr.mxu0 0.0
        %v1335 = vand.u32 %v660, 4294901760
        %v1336 = vsub.f32 %v660, %v1335
        %v1337 = vand.u32 %v1336, 4294901760
        %1338 = vmatpush1.msra.mxu0 %v1337
        %1339 = vmatprep.subr.mxu0 0.0
        %v1340 = vand.u32 %v661, 4294901760
        %v1341 = vsub.f32 %v661, %v1340
        %v1342 = vand.u32 %v1341, 4294901760
        %1343 = vmatpush1.msra.mxu0 %v1342
        %1344 = vmatprep.subr.mxu0 0.0
        %v1345 = vand.u32 %v662, 4294901760
        %v1346 = vsub.f32 %v662, %v1345
        %v1347 = vand.u32 %v1346, 4294901760
        %1348 = vmatpush1.msra.mxu0 %v1347
        %1349 = vmatprep.subr.mxu0 0.0
        %v1350 = vand.u32 %v663, 4294901760
        %v1351 = vsub.f32 %v663, %v1350
        %v1352 = vand.u32 %v1351, 4294901760
        %1353 = vmatpush1.msra.mxu0 %v1352
        %1354 = vmatprep.subr.mxu0 0.0
        %v1355 = vand.u32 %v664, 4294901760
        %v1356 = vsub.f32 %v664, %v1355
        %v1357 = vand.u32 %v1356, 4294901760
        %1358 = vmatpush1.msra.mxu0 %v1357
        %1359 = vmatprep.subr.mxu0 0.0
        %v1360 = vand.u32 %v665, 4294901760
        %v1361 = vsub.f32 %v665, %v1360
        %v1362 = vand.u32 %v1361, 4294901760
        %1363 = vmatpush1.msra.mxu0 %v1362
        %1364 = vmatprep.subr.mxu0 0.0
        %v1365 = vand.u32 %v666, 4294901760
        %v1366 = vsub.f32 %v666, %v1365
        %v1367 = vand.u32 %v1366, 4294901760
        %1368 = vmatpush1.msra.mxu0 %v1367
        %1369 = vmatprep.subr.mxu0 0.0
        %v1370 = vand.u32 %v667, 4294901760
        %v1371 = vsub.f32 %v667, %v1370
        %v1372 = vand.u32 %v1371, 4294901760
        %1373 = vmatpush1.msra.mxu0 %v1372
        %1374 = vmatprep.subr.mxu0 0.0
        %v1375 = vand.u32 %v668, 4294901760
        %v1376 = vsub.f32 %v668, %v1375
        %v1377 = vand.u32 %v1376, 4294901760
        %1378 = vmatpush1.msra.mxu0 %v1377
        %1379 = vmatprep.subr.mxu0 0.0
        %1380 = vmatpush1.msra.mxu0 0.0
        %1381 = vmatprep.subr.mxu0 0.0
        %1382 = vmatpush1.msra.mxu0 0.0
        %1383 = vmatprep.subr.mxu0 0.0
        %1384 = vmatpush1.msra.mxu0 0.0
        %1385 = vmatprep.subr.mxu0 0.0
        %1386 = vmatpush1.msra.mxu0 0.0
        %1387 = vmatprep.subr.mxu0 0.0
        %1388 = vmatpush1.msra.mxu0 0.0
        %1389 = vmatprep.subr.mxu0 0.0
        %1390 = vmatpush1.msra.mxu0 0.0
        %1391 = vmatprep.subr.mxu0 0.0
        %1392 = vmatpush1.msra.mxu0 0.0
        %1393 = vmatprep.subr.mxu0 0.0
        %1394 = vmatpush1.msra.mxu0 0.0
        %1395 = vmatprep.subr.mxu0 0.0
        %1396 = vmatpush1.msra.mxu0 0.0
        %1397 = vmatprep.subr.mxu0 0.0
        %1398 = vmatpush1.msra.mxu0 0.0
        %1399 = vmatprep.subr.mxu0 0.0
        %1400 = vmatpush1.msra.mxu0 0.0
        %1401 = vmatprep.subr.mxu0 0.0
        %1402 = vmatpush1.msra.mxu0 0.0
        %1403 = vmatprep.subr.mxu0 0.0
        %1404 = vmatpush1.msra.mxu0 0.0
        %1405 = vmatprep.subr.mxu0 0.0
        %1406 = vmatpush1.msra.mxu0 0.0
        %1407 = vmatprep.subr.mxu0 0.0
        %1408 = vmatpush1.msra.mxu0 0.0
        %1409 = vmatprep.subr.mxu0 0.0
        %1410 = vmatpush1.msra.mxu0 0.0
        %1411 = vmatprep.subr.mxu0 0.0
        %1412 = vmatpush1.msra.mxu0 0.0
        %1413 = vmatprep.subr.mxu0 0.0
        %1414 = vmatpush1.msra.mxu0 0.0
        %1415 = vmatprep.subr.mxu0 0.0
        %1416 = vmatpush1.msra.mxu0 0.0
        %1417 = vmatprep.subr.mxu0 0.0
        %1418 = vmatpush1.msra.mxu0 0.0
        %1419 = vmatprep.mubr.f32.mxu0 0.0
        %v1420 = vand.u32 %v816, 4294901760
        %1421 = vmatmul.mubr.f32.gmra.mrb[0].mxu0 %v1420
        %v1422 = vpop.f32.mrb[0].mxu0
        %v1423 = vadd.f32 %v1292, %v1422
        %v1424 = vpop.f32.mrb[0].mxu0
        %1425 = vmatprep.mubr.f32.mxu0 0.0
        %v1426 = vand.u32 %v819, 4294901760
        %1427 = vmatmul.mubr.f32.gmra.mrb[0].mxu0 %v1426
        %v1428 = vpop.f32.mrb[0].mxu0
        %v1429 = vadd.f32 %v1300, %v1428
        %v1430 = vpop.f32.mrb[0].mxu0
        %1431 = vmatprep.mubr.f32.mxu0 0.0
        %v1432 = vand.u32 %v822, 4294901760
        %1433 = vmatmul.mubr.f32.gmra.mrb[0].mxu0 %v1432
        %v1434 = vpop.f32.mrb[0].mxu0
        %v1435 = vadd.f32 %v1308, %v1434
        %v1436 = vpop.f32.mrb[0].mxu0
        %1437 = vmatprep.mubr.f32.mxu0 0.0
        %v1438 = vand.u32 %v825, 4294901760
        %1439 = vmatmul.mubr.f32.gmra.mrb[0].mxu0 %v1438
        %v1440 = vpop.f32.mrb[0].mxu0
        %v1441 = vadd.f32 %v1316, %v1440
        %v1442 = vpop.f32.mrb[0].mxu0
        %1443 = vdwg.mxu0
        %1444 = vmatprep.subr.mxu0 0.0
        %v1445 = vand.u32 %v657, 4294901760
        %1446 = vmatpush1.msra.mxu0 %v1445
        %1447 = vmatprep.subr.mxu0 0.0
        %v1448 = vand.u32 %v658, 4294901760
        %1449 = vmatpush1.msra.mxu0 %v1448
        %1450 = vmatprep.subr.mxu0 0.0
        %v1451 = vand.u32 %v659, 4294901760
        %1452 = vmatpush1.msra.mxu0 %v1451
        %1453 = vmatprep.subr.mxu0 0.0
        %v1454 = vand.u32 %v660, 4294901760
        %1455 = vmatpush1.msra.mxu0 %v1454
        %1456 = vmatprep.subr.mxu0 0.0
        %v1457 = vand.u32 %v661, 4294901760
        %1458 = vmatpush1.msra.mxu0 %v1457
        %1459 = vmatprep.subr.mxu0 0.0
        %v1460 = vand.u32 %v662, 4294901760
        %1461 = vmatpush1.msra.mxu0 %v1460
        %1462 = vmatprep.subr.mxu0 0.0
        %v1463 = vand.u32 %v663, 4294901760
        %1464 = vmatpush1.msra.mxu0 %v1463
        %1465 = vmatprep.subr.mxu0 0.0
        %v1466 = vand.u32 %v664, 4294901760
        %1467 = vmatpush1.msra.mxu0 %v1466
        %1468 = vmatprep.subr.mxu0 0.0
        %v1469 = vand.u32 %v665, 4294901760
        %1470 = vmatpush1.msra.mxu0 %v1469
        %1471 = vmatprep.subr.mxu0 0.0
        %v1472 = vand.u32 %v666, 4294901760
        %1473 = vmatpush1.msra.mxu0 %v1472
        %1474 = vmatprep.subr.mxu0 0.0
        %v1475 = vand.u32 %v667, 4294901760
        %1476 = vmatpush1.msra.mxu0 %v1475
        %1477 = vmatprep.subr.mxu0 0.0
        %v1478 = vand.u32 %v668, 4294901760
        %1479 = vmatpush1.msra.mxu0 %v1478
        %1480 = vmatprep.subr.mxu0 0.0
        %1481 = vmatpush1.msra.mxu0 0.0
        %1482 = vmatprep.subr.mxu0 0.0
        %1483 = vmatpush1.msra.mxu0 0.0
        %1484 = vmatprep.subr.mxu0 0.0
        %1485 = vmatpush1.msra.mxu0 0.0
        %1486 = vmatprep.subr.mxu0 0.0
        %1487 = vmatpush1.msra.mxu0 0.0
        %1488 = vmatprep.subr.mxu0 0.0
        %1489 = vmatpush1.msra.mxu0 0.0
        %1490 = vmatprep.subr.mxu0 0.0
        %1491 = vmatpush1.msra.mxu0 0.0
        %1492 = vmatprep.subr.mxu0 0.0
        %1493 = vmatpush1.msra.mxu0 0.0
        %1494 = vmatprep.subr.mxu0 0.0
        %1495 = vmatpush1.msra.mxu0 0.0
        %1496 = vmatprep.subr.mxu0 0.0
        %1497 = vmatpush1.msra.mxu0 0.0
        %1498 = vmatprep.subr.mxu0 0.0
        %1499 = vmatpush1.msra.mxu0 0.0
        %1500 = vmatprep.subr.mxu0 0.0
        %1501 = vmatpush1.msra.mxu0 0.0
        %1502 = vmatprep.subr.mxu0 0.0
        %1503 = vmatpush1.msra.mxu0 0.0
        %1504 = vmatprep.subr.mxu0 0.0
        %1505 = vmatpush1.msra.mxu0 0.0
        %1506 = vmatprep.subr.mxu0 0.0
        %1507 = vmatpush1.msra.mxu0 0.0
        %1508 = vmatprep.subr.mxu0 0.0
        %1509 = vmatpush1.msra.mxu0 0.0
        %1510 = vmatprep.subr.mxu0 0.0
        %1511 = vmatpush1.msra.mxu0 0.0
        %1512 = vmatprep.subr.mxu0 0.0
        %1513 = vmatpush1.msra.mxu0 0.0
        %1514 = vmatprep.subr.mxu0 0.0
        %1515 = vmatpush1.msra.mxu0 0.0
        %1516 = vmatprep.subr.mxu0 0.0
        %1517 = vmatpush1.msra.mxu0 0.0
        %1518 = vmatprep.subr.mxu0 0.0
        %1519 = vmatpush1.msra.mxu0 0.0
        %1520 = vmatprep.mubr.f32.mxu0 0.0
        %v1521 = vand.u32 %v816, 4294901760
        %1522 = vmatmul.mubr.f32.gmra.mrb[0].mxu0 %v1521
        %v1523 = vpop.f32.mrb[0].mxu0
        %v1524 = vadd.f32 %v1423, %v1523
        %v1525 = vpop.f32.mrb[0].mxu0
        %1526 = vmatprep.mubr.f32.mxu0 0.0
        %v1527 = vand.u32 %v819, 4294901760
        %1528 = vmatmul.mubr.f32.gmra.mrb[0].mxu0 %v1527
        %v1529 = vpop.f32.mrb[0].mxu0
        %v1530 = vadd.f32 %v1429, %v1529
        %v1531 = vpop.f32.mrb[0].mxu0
        %1532 = vmatprep.mubr.f32.mxu0 0.0
        %v1533 = vand.u32 %v822, 4294901760
        %1534 = vmatmul.mubr.f32.gmra.mrb[0].mxu0 %v1533
        %v1535 = vpop.f32.mrb[0].mxu0
        %v1536 = vadd.f32 %v1435, %v1535
        %v1537 = vpop.f32.mrb[0].mxu0
        %1538 = vmatprep.mubr.f32.mxu0 0.0
        %v1539 = vand.u32 %v825, 4294901760
        %1540 = vmatmul.mubr.f32.gmra.mrb[0].mxu0 %v1539
        %v1541 = vpop.f32.mrb[0].mxu0
        %v1542 = vadd.f32 %v1441, %v1541
        %v1543 = vpop.f32.mrb[0].mxu0
        %1544 = vdwg.mxu0
        %v1546 = vsel %vm814, %v806, 0
        %v1549 = vsel %vm814, %v807, 0
        %v1552 = vsel %vm814, %v808, 0
        %v1555 = vsel %vm814, %v809, 0
        %1557 = vmatprep.subr.mxu0 0.0
        %v1558 = vand.u32 %v534, 4294901760
        %1559 = vmatpush1.msra.mxu0 %v1558
        %1560 = vmatprep.subr.mxu0 0.0
        %v1561 = vand.u32 %v535, 4294901760
        %1562 = vmatpush1.msra.mxu0 %v1561
        %1563 = vmatprep.subr.mxu0 0.0
        %v1564 = vand.u32 %v536, 4294901760
        %1565 = vmatpush1.msra.mxu0 %v1564
        %1566 = vmatprep.subr.mxu0 0.0
        %v1567 = vand.u32 %v537, 4294901760
        %1568 = vmatpush1.msra.mxu0 %v1567
        %1569 = vmatprep.subr.mxu0 0.0
        %v1570 = vand.u32 %v538, 4294901760
        %1571 = vmatpush1.msra.mxu0 %v1570
        %1572 = vmatprep.subr.mxu0 0.0
        %v1573 = vand.u32 %v539, 4294901760
        %1574 = vmatpush1.msra.mxu0 %v1573
        %1575 = vmatprep.subr.mxu0 0.0
        %v1576 = vand.u32 %v540, 4294901760
        %1577 = vmatpush1.msra.mxu0 %v1576
        %1578 = vmatprep.subr.mxu0 0.0
        %v1579 = vand.u32 %v541, 4294901760
        %1580 = vmatpush1.msra.mxu0 %v1579
        %1581 = vmatprep.subr.mxu0 0.0
        %v1582 = vand.u32 %v542, 4294901760
        %1583 = vmatpush1.msra.mxu0 %v1582
        %1584 = vmatprep.subr.mxu0 0.0
        %v1585 = vand.u32 %v543, 4294901760
        %1586 = vmatpush1.msra.mxu0 %v1585
        %1587 = vmatprep.subr.mxu0 0.0
        %v1588 = vand.u32 %v544, 4294901760
        %1589 = vmatpush1.msra.mxu0 %v1588
        %1590 = vmatprep.subr.mxu0 0.0
        %v1591 = vand.u32 %v545, 4294901760
        %1592 = vmatpush1.msra.mxu0 %v1591
        %1593 = vmatprep.subr.mxu0 0.0
        %1594 = vmatpush1.msra.mxu0 0.0
        %1595 = vmatprep.subr.mxu0 0.0
        %1596 = vmatpush1.msra.mxu0 0.0
        %1597 = vmatprep.subr.mxu0 0.0
        %1598 = vmatpush1.msra.mxu0 0.0
        %1599 = vmatprep.subr.mxu0 0.0
        %1600 = vmatpush1.msra.mxu0 0.0
        %1601 = vmatprep.subr.mxu0 0.0
        %1602 = vmatpush1.msra.mxu0 0.0
        %1603 = vmatprep.subr.mxu0 0.0
        %1604 = vmatpush1.msra.mxu0 0.0
        %1605 = vmatprep.subr.mxu0 0.0
        %1606 = vmatpush1.msra.mxu0 0.0
        %1607 = vmatprep.subr.mxu0 0.0
        %1608 = vmatpush1.msra.mxu0 0.0
        %1609 = vmatprep.subr.mxu0 0.0
        %1610 = vmatpush1.msra.mxu0 0.0
        %1611 = vmatprep.subr.mxu0 0.0
        %1612 = vmatpush1.msra.mxu0 0.0
        %1613 = vmatprep.subr.mxu0 0.0
        %1614 = vmatpush1.msra.mxu0 0.0
        %1615 = vmatprep.subr.mxu0 0.0
        %1616 = vmatpush1.msra.mxu0 0.0
        %1617 = vmatprep.subr.mxu0 0.0
        %1618 = vmatpush1.msra.mxu0 0.0
        %1619 = vmatprep.subr.mxu0 0.0
        %1620 = vmatpush1.msra.mxu0 0.0
        %1621 = vmatprep.subr.mxu0 0.0
        %1622 = vmatpush1.msra.mxu0 0.0
        %1623 = vmatprep.subr.mxu0 0.0
        %1624 = vmatpush1.msra.mxu0 0.0
        %1625 = vmatprep.subr.mxu0 0.0
        %1626 = vmatpush1.msra.mxu0 0.0
        %1627 = vmatprep.subr.mxu0 0.0
        %1628 = vmatpush1.msra.mxu0 0.0
        %1629 = vmatprep.subr.mxu0 0.0
        %1630 = vmatpush1.msra.mxu0 0.0
        %1631 = vmatprep.subr.mxu0 0.0
        %1632 = vmatpush1.msra.mxu0 0.0
        %1633 = vmatprep.mubr.f32.mxu0 0.0
        %v1634 = vand.u32 %v1546, 4294901760
        %v1635 = vsub.f32 %v1546, %v1634
        %v1636 = vand.u32 %v1635, 4294901760
        %v1637 = vsub.f32 %v1635, %v1636
        %v1638 = vand.u32 %v1637, 4294901760
        %1639 = vmatmul.mubr.f32.gmra.mrb[0].mxu0 %v1638
        %v1640 = vpop.f32.mrb[0].mxu0
        %v1641 = vadd.f32 %v1524, %v1640
        %v1642 = vpop.f32.mrb[0].mxu0
        %1643 = vmatprep.mubr.f32.mxu0 0.0
        %v1644 = vand.u32 %v1549, 4294901760
        %v1645 = vsub.f32 %v1549, %v1644
        %v1646 = vand.u32 %v1645, 4294901760
        %v1647 = vsub.f32 %v1645, %v1646
        %v1648 = vand.u32 %v1647, 4294901760
        %1649 = vmatmul.mubr.f32.gmra.mrb[0].mxu0 %v1648
        %v1650 = vpop.f32.mrb[0].mxu0
        %v1651 = vadd.f32 %v1530, %v1650
        %v1652 = vpop.f32.mrb[0].mxu0
        %1653 = vmatprep.mubr.f32.mxu0 0.0
        %v1654 = vand.u32 %v1552, 4294901760
        %v1655 = vsub.f32 %v1552, %v1654
        %v1656 = vand.u32 %v1655, 4294901760
        %v1657 = vsub.f32 %v1655, %v1656
        %v1658 = vand.u32 %v1657, 4294901760
        %1659 = vmatmul.mubr.f32.gmra.mrb[0].mxu0 %v1658
        %v1660 = vpop.f32.mrb[0].mxu0
        %v1661 = vadd.f32 %v1536, %v1660
        %v1662 = vpop.f32.mrb[0].mxu0
        %1663 = vmatprep.mubr.f32.mxu0 0.0
        %v1664 = vand.u32 %v1555, 4294901760
        %v1665 = vsub.f32 %v1555, %v1664
        %v1666 = vand.u32 %v1665, 4294901760
        %v1667 = vsub.f32 %v1665, %v1666
        %v1668 = vand.u32 %v1667, 4294901760
        %1669 = vmatmul.mubr.f32.gmra.mrb[0].mxu0 %v1668
        %v1670 = vpop.f32.mrb[0].mxu0
        %v1671 = vadd.f32 %v1542, %v1670
        %v1672 = vpop.f32.mrb[0].mxu0
        %1673 = vdwg.mxu0
        %1674 = vmatprep.subr.mxu0 0.0
        %v1675 = vand.u32 %v534, 4294901760
        %v1676 = vsub.f32 %v534, %v1675
        %v1677 = vand.u32 %v1676, 4294901760
        %v1678 = vsub.f32 %v1676, %v1677
        %v1679 = vand.u32 %v1678, 4294901760
        %1680 = vmatpush1.msra.mxu0 %v1679
        %1681 = vmatprep.subr.mxu0 0.0
        %v1682 = vand.u32 %v535, 4294901760
        %v1683 = vsub.f32 %v535, %v1682
        %v1684 = vand.u32 %v1683, 4294901760
        %v1685 = vsub.f32 %v1683, %v1684
        %v1686 = vand.u32 %v1685, 4294901760
        %1687 = vmatpush1.msra.mxu0 %v1686
        %1688 = vmatprep.subr.mxu0 0.0
        %v1689 = vand.u32 %v536, 4294901760
        %v1690 = vsub.f32 %v536, %v1689
        %v1691 = vand.u32 %v1690, 4294901760
        %v1692 = vsub.f32 %v1690, %v1691
        %v1693 = vand.u32 %v1692, 4294901760
        %1694 = vmatpush1.msra.mxu0 %v1693
        %1695 = vmatprep.subr.mxu0 0.0
        %v1696 = vand.u32 %v537, 4294901760
        %v1697 = vsub.f32 %v537, %v1696
        %v1698 = vand.u32 %v1697, 4294901760
        %v1699 = vsub.f32 %v1697, %v1698
        %v1700 = vand.u32 %v1699, 4294901760
        %1701 = vmatpush1.msra.mxu0 %v1700
        %1702 = vmatprep.subr.mxu0 0.0
        %v1703 = vand.u32 %v538, 4294901760
        %v1704 = vsub.f32 %v538, %v1703
        %v1705 = vand.u32 %v1704, 4294901760
        %v1706 = vsub.f32 %v1704, %v1705
        %v1707 = vand.u32 %v1706, 4294901760
        %1708 = vmatpush1.msra.mxu0 %v1707
        %1709 = vmatprep.subr.mxu0 0.0
        %v1710 = vand.u32 %v539, 4294901760
        %v1711 = vsub.f32 %v539, %v1710
        %v1712 = vand.u32 %v1711, 4294901760
        %v1713 = vsub.f32 %v1711, %v1712
        %v1714 = vand.u32 %v1713, 4294901760
        %1715 = vmatpush1.msra.mxu0 %v1714
        %1716 = vmatprep.subr.mxu0 0.0
        %v1717 = vand.u32 %v540, 4294901760
        %v1718 = vsub.f32 %v540, %v1717
        %v1719 = vand.u32 %v1718, 4294901760
        %v1720 = vsub.f32 %v1718, %v1719
        %v1721 = vand.u32 %v1720, 4294901760
        %1722 = vmatpush1.msra.mxu0 %v1721
        %1723 = vmatprep.subr.mxu0 0.0
        %v1724 = vand.u32 %v541, 4294901760
        %v1725 = vsub.f32 %v541, %v1724
        %v1726 = vand.u32 %v1725, 4294901760
        %v1727 = vsub.f32 %v1725, %v1726
        %v1728 = vand.u32 %v1727, 4294901760
        %1729 = vmatpush1.msra.mxu0 %v1728
        %1730 = vmatprep.subr.mxu0 0.0
        %v1731 = vand.u32 %v542, 4294901760
        %v1732 = vsub.f32 %v542, %v1731
        %v1733 = vand.u32 %v1732, 4294901760
        %v1734 = vsub.f32 %v1732, %v1733
        %v1735 = vand.u32 %v1734, 4294901760
        %1736 = vmatpush1.msra.mxu0 %v1735
        %1737 = vmatprep.subr.mxu0 0.0
        %v1738 = vand.u32 %v543, 4294901760
        %v1739 = vsub.f32 %v543, %v1738
        %v1740 = vand.u32 %v1739, 4294901760
        %v1741 = vsub.f32 %v1739, %v1740
        %v1742 = vand.u32 %v1741, 4294901760
        %1743 = vmatpush1.msra.mxu0 %v1742
        %1744 = vmatprep.subr.mxu0 0.0
        %v1745 = vand.u32 %v544, 4294901760
        %v1746 = vsub.f32 %v544, %v1745
        %v1747 = vand.u32 %v1746, 4294901760
        %v1748 = vsub.f32 %v1746, %v1747
        %v1749 = vand.u32 %v1748, 4294901760
        %1750 = vmatpush1.msra.mxu0 %v1749
        %1751 = vmatprep.subr.mxu0 0.0
        %v1752 = vand.u32 %v545, 4294901760
        %v1753 = vsub.f32 %v545, %v1752
        %v1754 = vand.u32 %v1753, 4294901760
        %v1755 = vsub.f32 %v1753, %v1754
        %v1756 = vand.u32 %v1755, 4294901760
        %1757 = vmatpush1.msra.mxu0 %v1756
        %1758 = vmatprep.subr.mxu0 0.0
        %1759 = vmatpush1.msra.mxu0 0.0
        %1760 = vmatprep.subr.mxu0 0.0
        %1761 = vmatpush1.msra.mxu0 0.0
        %1762 = vmatprep.subr.mxu0 0.0
        %1763 = vmatpush1.msra.mxu0 0.0
        %1764 = vmatprep.subr.mxu0 0.0
        %1765 = vmatpush1.msra.mxu0 0.0
        %1766 = vmatprep.subr.mxu0 0.0
        %1767 = vmatpush1.msra.mxu0 0.0
        %1768 = vmatprep.subr.mxu0 0.0
        %1769 = vmatpush1.msra.mxu0 0.0
        %1770 = vmatprep.subr.mxu0 0.0
        %1771 = vmatpush1.msra.mxu0 0.0
        %1772 = vmatprep.subr.mxu0 0.0
        %1773 = vmatpush1.msra.mxu0 0.0
        %1774 = vmatprep.subr.mxu0 0.0
        %1775 = vmatpush1.msra.mxu0 0.0
        %1776 = vmatprep.subr.mxu0 0.0
        %1777 = vmatpush1.msra.mxu0 0.0
        %1778 = vmatprep.subr.mxu0 0.0
        %1779 = vmatpush1.msra.mxu0 0.0
        %1780 = vmatprep.subr.mxu0 0.0
        %1781 = vmatpush1.msra.mxu0 0.0
        %1782 = vmatprep.subr.mxu0 0.0
        %1783 = vmatpush1.msra.mxu0 0.0
        %1784 = vmatprep.subr.mxu0 0.0
        %1785 = vmatpush1.msra.mxu0 0.0
        %1786 = vmatprep.subr.mxu0 0.0
        %1787 = vmatpush1.msra.mxu0 0.0
        %1788 = vmatprep.subr.mxu0 0.0
        %1789 = vmatpush1.msra.mxu0 0.0
        %1790 = vmatprep.subr.mxu0 0.0
        %1791 = vmatpush1.msra.mxu0 0.0
        %1792 = vmatprep.subr.mxu0 0.0
        %1793 = vmatpush1.msra.mxu0 0.0
        %1794 = vmatprep.subr.mxu0 0.0
        %1795 = vmatpush1.msra.mxu0 0.0
        %1796 = vmatprep.subr.mxu0 0.0
        %1797 = vmatpush1.msra.mxu0 0.0
        %1798 = vmatprep.mubr.f32.mxu0 0.0
        %v1799 = vand.u32 %v1546, 4294901760
        %1800 = vmatmul.mubr.f32.gmra.mrb[0].mxu0 %v1799
        %v1801 = vpop.f32.mrb[0].mxu0
        %v1802 = vadd.f32 %v1641, %v1801
        %v1803 = vpop.f32.mrb[0].mxu0
        %1804 = vmatprep.mubr.f32.mxu0 0.0
        %v1805 = vand.u32 %v1549, 4294901760
        %1806 = vmatmul.mubr.f32.gmra.mrb[0].mxu0 %v1805
        %v1807 = vpop.f32.mrb[0].mxu0
        %v1808 = vadd.f32 %v1651, %v1807
        %v1809 = vpop.f32.mrb[0].mxu0
        %1810 = vmatprep.mubr.f32.mxu0 0.0
        %v1811 = vand.u32 %v1552, 4294901760
        %1812 = vmatmul.mubr.f32.gmra.mrb[0].mxu0 %v1811
        %v1813 = vpop.f32.mrb[0].mxu0
        %v1814 = vadd.f32 %v1661, %v1813
        %v1815 = vpop.f32.mrb[0].mxu0
        %1816 = vmatprep.mubr.f32.mxu0 0.0
        %v1817 = vand.u32 %v1555, 4294901760
        %1818 = vmatmul.mubr.f32.gmra.mrb[0].mxu0 %v1817
        %v1819 = vpop.f32.mrb[0].mxu0
        %v1820 = vadd.f32 %v1671, %v1819
        %v1821 = vpop.f32.mrb[0].mxu0
        %1822 = vdwg.mxu0
        %1823 = vmatprep.subr.mxu0 0.0
        %v1824 = vand.u32 %v534, 4294901760
        %v1825 = vsub.f32 %v534, %v1824
        %1826 = vmatpush1.msra.mxu0 %v1825
        %1827 = vmatprep.subr.mxu0 0.0
        %v1828 = vand.u32 %v535, 4294901760
        %v1829 = vsub.f32 %v535, %v1828
        %1830 = vmatpush1.msra.mxu0 %v1829
        %1831 = vmatprep.subr.mxu0 0.0
        %v1832 = vand.u32 %v536, 4294901760
        %v1833 = vsub.f32 %v536, %v1832
        %1834 = vmatpush1.msra.mxu0 %v1833
        %1835 = vmatprep.subr.mxu0 0.0
        %v1836 = vand.u32 %v537, 4294901760
        %v1837 = vsub.f32 %v537, %v1836
        %1838 = vmatpush1.msra.mxu0 %v1837
        %1839 = vmatprep.subr.mxu0 0.0
        %v1840 = vand.u32 %v538, 4294901760
        %v1841 = vsub.f32 %v538, %v1840
        %1842 = vmatpush1.msra.mxu0 %v1841
        %1843 = vmatprep.subr.mxu0 0.0
        %v1844 = vand.u32 %v539, 4294901760
        %v1845 = vsub.f32 %v539, %v1844
        %1846 = vmatpush1.msra.mxu0 %v1845
        %1847 = vmatprep.subr.mxu0 0.0
        %v1848 = vand.u32 %v540, 4294901760
        %v1849 = vsub.f32 %v540, %v1848
        %1850 = vmatpush1.msra.mxu0 %v1849
        %1851 = vmatprep.subr.mxu0 0.0
        %v1852 = vand.u32 %v541, 4294901760
        %v1853 = vsub.f32 %v541, %v1852
        %1854 = vmatpush1.msra.mxu0 %v1853
        %1855 = vmatprep.subr.mxu0 0.0
        %v1856 = vand.u32 %v542, 4294901760
        %v1857 = vsub.f32 %v542, %v1856
        %1858 = vmatpush1.msra.mxu0 %v1857
        %1859 = vmatprep.subr.mxu0 0.0
        %v1860 = vand.u32 %v543, 4294901760
        %v1861 = vsub.f32 %v543, %v1860
        %1862 = vmatpush1.msra.mxu0 %v1861
        %1863 = vmatprep.subr.mxu0 0.0
        %v1864 = vand.u32 %v544, 4294901760
        %v1865 = vsub.f32 %v544, %v1864
        %1866 = vmatpush1.msra.mxu0 %v1865
        %1867 = vmatprep.subr.mxu0 0.0
        %v1868 = vand.u32 %v545, 4294901760
        %v1869 = vsub.f32 %v545, %v1868
        %1870 = vmatpush1.msra.mxu0 %v1869
        %1871 = vmatprep.subr.mxu0 0.0
        %1872 = vmatpush1.msra.mxu0 0.0
        %1873 = vmatprep.subr.mxu0 0.0
        %1874 = vmatpush1.msra.mxu0 0.0
        %1875 = vmatprep.subr.mxu0 0.0
        %1876 = vmatpush1.msra.mxu0 0.0
        %1877 = vmatprep.subr.mxu0 0.0
        %1878 = vmatpush1.msra.mxu0 0.0
        %1879 = vmatprep.subr.mxu0 0.0
        %1880 = vmatpush1.msra.mxu0 0.0
        %1881 = vmatprep.subr.mxu0 0.0
        %1882 = vmatpush1.msra.mxu0 0.0
        %1883 = vmatprep.subr.mxu0 0.0
        %1884 = vmatpush1.msra.mxu0 0.0
        %1885 = vmatprep.subr.mxu0 0.0
        %1886 = vmatpush1.msra.mxu0 0.0
        %1887 = vmatprep.subr.mxu0 0.0
        %1888 = vmatpush1.msra.mxu0 0.0
        %1889 = vmatprep.subr.mxu0 0.0
        %1890 = vmatpush1.msra.mxu0 0.0
        %1891 = vmatprep.subr.mxu0 0.0
        %1892 = vmatpush1.msra.mxu0 0.0
        %1893 = vmatprep.subr.mxu0 0.0
        %1894 = vmatpush1.msra.mxu0 0.0
        %1895 = vmatprep.subr.mxu0 0.0
        %1896 = vmatpush1.msra.mxu0 0.0
        %1897 = vmatprep.subr.mxu0 0.0
        %1898 = vmatpush1.msra.mxu0 0.0
        %1899 = vmatprep.subr.mxu0 0.0
        %1900 = vmatpush1.msra.mxu0 0.0
        %1901 = vmatprep.subr.mxu0 0.0
        %1902 = vmatpush1.msra.mxu0 0.0
        %1903 = vmatprep.subr.mxu0 0.0
        %1904 = vmatpush1.msra.mxu0 0.0
        %1905 = vmatprep.subr.mxu0 0.0
        %1906 = vmatpush1.msra.mxu0 0.0
        %1907 = vmatprep.subr.mxu0 0.0
        %1908 = vmatpush1.msra.mxu0 0.0
        %1909 = vmatprep.subr.mxu0 0.0
        %1910 = vmatpush1.msra.mxu0 0.0
        %1911 = vmatprep.mubr.f32.mxu0 0.0
        %v1912 = vand.u32 %v1546, 4294901760
        %v1913 = vsub.f32 %v1546, %v1912
        %1914 = vmatmul.mubr.f32.gmra.mrb[0].mxu0 %v1913
        %v1915 = vpop.f32.mrb[0].mxu0
        %v1916 = vadd.f32 %v1802, %v1915
        %v1917 = vpop.f32.mrb[0].mxu0
        %1918 = vmatprep.mubr.f32.mxu0 0.0
        %v1919 = vand.u32 %v1549, 4294901760
        %v1920 = vsub.f32 %v1549, %v1919
        %1921 = vmatmul.mubr.f32.gmra.mrb[0].mxu0 %v1920
        %v1922 = vpop.f32.mrb[0].mxu0
        %v1923 = vadd.f32 %v1808, %v1922
        %v1924 = vpop.f32.mrb[0].mxu0
        %1925 = vmatprep.mubr.f32.mxu0 0.0
        %v1926 = vand.u32 %v1552, 4294901760
        %v1927 = vsub.f32 %v1552, %v1926
        %1928 = vmatmul.mubr.f32.gmra.mrb[0].mxu0 %v1927
        %v1929 = vpop.f32.mrb[0].mxu0
        %v1930 = vadd.f32 %v1814, %v1929
        %v1931 = vpop.f32.mrb[0].mxu0
        %1932 = vmatprep.mubr.f32.mxu0 0.0
        %v1933 = vand.u32 %v1555, 4294901760
        %v1934 = vsub.f32 %v1555, %v1933
        %1935 = vmatmul.mubr.f32.gmra.mrb[0].mxu0 %v1934
        %v1936 = vpop.f32.mrb[0].mxu0
        %v1937 = vadd.f32 %v1820, %v1936
        %v1938 = vpop.f32.mrb[0].mxu0
        %1939 = vdwg.mxu0
        %1940 = vmatprep.subr.mxu0 0.0
        %v1941 = vand.u32 %v534, 4294901760
        %1942 = vmatpush1.msra.mxu0 %v1941
        %1943 = vmatprep.subr.mxu0 0.0
        %v1944 = vand.u32 %v535, 4294901760
        %1945 = vmatpush1.msra.mxu0 %v1944
        %1946 = vmatprep.subr.mxu0 0.0
        %v1947 = vand.u32 %v536, 4294901760
        %1948 = vmatpush1.msra.mxu0 %v1947
        %1949 = vmatprep.subr.mxu0 0.0
        %v1950 = vand.u32 %v537, 4294901760
        %1951 = vmatpush1.msra.mxu0 %v1950
        %1952 = vmatprep.subr.mxu0 0.0
        %v1953 = vand.u32 %v538, 4294901760
        %1954 = vmatpush1.msra.mxu0 %v1953
        %1955 = vmatprep.subr.mxu0 0.0
        %v1956 = vand.u32 %v539, 4294901760
        %1957 = vmatpush1.msra.mxu0 %v1956
        %1958 = vmatprep.subr.mxu0 0.0
        %v1959 = vand.u32 %v540, 4294901760
        %1960 = vmatpush1.msra.mxu0 %v1959
        %1961 = vmatprep.subr.mxu0 0.0
        %v1962 = vand.u32 %v541, 4294901760
        %1963 = vmatpush1.msra.mxu0 %v1962
        %1964 = vmatprep.subr.mxu0 0.0
        %v1965 = vand.u32 %v542, 4294901760
        %1966 = vmatpush1.msra.mxu0 %v1965
        %1967 = vmatprep.subr.mxu0 0.0
        %v1968 = vand.u32 %v543, 4294901760
        %1969 = vmatpush1.msra.mxu0 %v1968
        %1970 = vmatprep.subr.mxu0 0.0
        %v1971 = vand.u32 %v544, 4294901760
        %1972 = vmatpush1.msra.mxu0 %v1971
        %1973 = vmatprep.subr.mxu0 0.0
        %v1974 = vand.u32 %v545, 4294901760
        %1975 = vmatpush1.msra.mxu0 %v1974
        %1976 = vmatprep.subr.mxu0 0.0
        %1977 = vmatpush1.msra.mxu0 0.0
        %1978 = vmatprep.subr.mxu0 0.0
        %1979 = vmatpush1.msra.mxu0 0.0
        %1980 = vmatprep.subr.mxu0 0.0
        %1981 = vmatpush1.msra.mxu0 0.0
        %1982 = vmatprep.subr.mxu0 0.0
        %1983 = vmatpush1.msra.mxu0 0.0
        %1984 = vmatprep.subr.mxu0 0.0
        %1985 = vmatpush1.msra.mxu0 0.0
        %1986 = vmatprep.subr.mxu0 0.0
        %1987 = vmatpush1.msra.mxu0 0.0
        %1988 = vmatprep.subr.mxu0 0.0
        %1989 = vmatpush1.msra.mxu0 0.0
        %1990 = vmatprep.subr.mxu0 0.0
        %1991 = vmatpush1.msra.mxu0 0.0
        %1992 = vmatprep.subr.mxu0 0.0
        %1993 = vmatpush1.msra.mxu0 0.0
        %1994 = vmatprep.subr.mxu0 0.0
        %1995 = vmatpush1.msra.mxu0 0.0
        %1996 = vmatprep.subr.mxu0 0.0
        %1997 = vmatpush1.msra.mxu0 0.0
        %1998 = vmatprep.subr.mxu0 0.0
        %1999 = vmatpush1.msra.mxu0 0.0
        %2000 = vmatprep.subr.mxu0 0.0
        %2001 = vmatpush1.msra.mxu0 0.0
        %2002 = vmatprep.subr.mxu0 0.0
        %2003 = vmatpush1.msra.mxu0 0.0
        %2004 = vmatprep.subr.mxu0 0.0
        %2005 = vmatpush1.msra.mxu0 0.0
        %2006 = vmatprep.subr.mxu0 0.0
        %2007 = vmatpush1.msra.mxu0 0.0
        %2008 = vmatprep.subr.mxu0 0.0
        %2009 = vmatpush1.msra.mxu0 0.0
        %2010 = vmatprep.subr.mxu0 0.0
        %2011 = vmatpush1.msra.mxu0 0.0
        %2012 = vmatprep.subr.mxu0 0.0
        %2013 = vmatpush1.msra.mxu0 0.0
        %2014 = vmatprep.subr.mxu0 0.0
        %2015 = vmatpush1.msra.mxu0 0.0
        %2016 = vmatprep.mubr.f32.mxu0 0.0
        %v2017 = vand.u32 %v1546, 4294901760
        %v2018 = vsub.f32 %v1546, %v2017
        %v2019 = vand.u32 %v2018, 4294901760
        %2020 = vmatmul.mubr.f32.gmra.mrb[0].mxu0 %v2019
        %v2021 = vpop.f32.mrb[0].mxu0
        %v2022 = vadd.f32 %v1916, %v2021
        %v2023 = vpop.f32.mrb[0].mxu0
        %2024 = vmatprep.mubr.f32.mxu0 0.0
        %v2025 = vand.u32 %v1549, 4294901760
        %v2026 = vsub.f32 %v1549, %v2025
        %v2027 = vand.u32 %v2026, 4294901760
        %2028 = vmatmul.mubr.f32.gmra.mrb[0].mxu0 %v2027
        %v2029 = vpop.f32.mrb[0].mxu0
        %v2030 = vadd.f32 %v1923, %v2029
        %v2031 = vpop.f32.mrb[0].mxu0
        %2032 = vmatprep.mubr.f32.mxu0 0.0
        %v2033 = vand.u32 %v1552, 4294901760
        %v2034 = vsub.f32 %v1552, %v2033
        %v2035 = vand.u32 %v2034, 4294901760
        %2036 = vmatmul.mubr.f32.gmra.mrb[0].mxu0 %v2035
        %v2037 = vpop.f32.mrb[0].mxu0
        %v2038 = vadd.f32 %v1930, %v2037
        %v2039 = vpop.f32.mrb[0].mxu0
        %2040 = vmatprep.mubr.f32.mxu0 0.0
        %v2041 = vand.u32 %v1555, 4294901760
        %v2042 = vsub.f32 %v1555, %v2041
        %v2043 = vand.u32 %v2042, 4294901760
        %2044 = vmatmul.mubr.f32.gmra.mrb[0].mxu0 %v2043
        %v2045 = vpop.f32.mrb[0].mxu0
        %v2046 = vadd.f32 %v1937, %v2045
        %v2047 = vpop.f32.mrb[0].mxu0
        %2048 = vdwg.mxu0
        %2049 = vmatprep.subr.mxu0 0.0
        %v2050 = vand.u32 %v534, 4294901760
        %v2051 = vsub.f32 %v534, %v2050
        %v2052 = vand.u32 %v2051, 4294901760
        %2053 = vmatpush1.msra.mxu0 %v2052
        %2054 = vmatprep.subr.mxu0 0.0
        %v2055 = vand.u32 %v535, 4294901760
        %v2056 = vsub.f32 %v535, %v2055
        %v2057 = vand.u32 %v2056, 4294901760
        %2058 = vmatpush1.msra.mxu0 %v2057
        %2059 = vmatprep.subr.mxu0 0.0
        %v2060 = vand.u32 %v536, 4294901760
        %v2061 = vsub.f32 %v536, %v2060
        %v2062 = vand.u32 %v2061, 4294901760
        %2063 = vmatpush1.msra.mxu0 %v2062
        %2064 = vmatprep.subr.mxu0 0.0
        %v2065 = vand.u32 %v537, 4294901760
        %v2066 = vsub.f32 %v537, %v2065
        %v2067 = vand.u32 %v2066, 4294901760
        %2068 = vmatpush1.msra.mxu0 %v2067
        %2069 = vmatprep.subr.mxu0 0.0
        %v2070 = vand.u32 %v538, 4294901760
        %v2071 = vsub.f32 %v538, %v2070
        %v2072 = vand.u32 %v2071, 4294901760
        %2073 = vmatpush1.msra.mxu0 %v2072
        %2074 = vmatprep.subr.mxu0 0.0
        %v2075 = vand.u32 %v539, 4294901760
        %v2076 = vsub.f32 %v539, %v2075
        %v2077 = vand.u32 %v2076, 4294901760
        %2078 = vmatpush1.msra.mxu0 %v2077
        %2079 = vmatprep.subr.mxu0 0.0
        %v2080 = vand.u32 %v540, 4294901760
        %v2081 = vsub.f32 %v540, %v2080
        %v2082 = vand.u32 %v2081, 4294901760
        %2083 = vmatpush1.msra.mxu0 %v2082
        %2084 = vmatprep.subr.mxu0 0.0
        %v2085 = vand.u32 %v541, 4294901760
        %v2086 = vsub.f32 %v541, %v2085
        %v2087 = vand.u32 %v2086, 4294901760
        %2088 = vmatpush1.msra.mxu0 %v2087
        %2089 = vmatprep.subr.mxu0 0.0
        %v2090 = vand.u32 %v542, 4294901760
        %v2091 = vsub.f32 %v542, %v2090
        %v2092 = vand.u32 %v2091, 4294901760
        %2093 = vmatpush1.msra.mxu0 %v2092
        %2094 = vmatprep.subr.mxu0 0.0
        %v2095 = vand.u32 %v543, 4294901760
        %v2096 = vsub.f32 %v543, %v2095
        %v2097 = vand.u32 %v2096, 4294901760
        %2098 = vmatpush1.msra.mxu0 %v2097
        %2099 = vmatprep.subr.mxu0 0.0
        %v2100 = vand.u32 %v544, 4294901760
        %v2101 = vsub.f32 %v544, %v2100
        %v2102 = vand.u32 %v2101, 4294901760
        %2103 = vmatpush1.msra.mxu0 %v2102
        %2104 = vmatprep.subr.mxu0 0.0
        %v2105 = vand.u32 %v545, 4294901760
        %v2106 = vsub.f32 %v545, %v2105
        %v2107 = vand.u32 %v2106, 4294901760
        %2108 = vmatpush1.msra.mxu0 %v2107
        %2109 = vmatprep.subr.mxu0 0.0
        %2110 = vmatpush1.msra.mxu0 0.0
        %2111 = vmatprep.subr.mxu0 0.0
        %2112 = vmatpush1.msra.mxu0 0.0
        %2113 = vmatprep.subr.mxu0 0.0
        %2114 = vmatpush1.msra.mxu0 0.0
        %2115 = vmatprep.subr.mxu0 0.0
        %2116 = vmatpush1.msra.mxu0 0.0
        %2117 = vmatprep.subr.mxu0 0.0
        %2118 = vmatpush1.msra.mxu0 0.0
        %2119 = vmatprep.subr.mxu0 0.0
        %2120 = vmatpush1.msra.mxu0 0.0
        %2121 = vmatprep.subr.mxu0 0.0
        %2122 = vmatpush1.msra.mxu0 0.0
        %2123 = vmatprep.subr.mxu0 0.0
        %2124 = vmatpush1.msra.mxu0 0.0
        %2125 = vmatprep.subr.mxu0 0.0
        %2126 = vmatpush1.msra.mxu0 0.0
        %2127 = vmatprep.subr.mxu0 0.0
        %2128 = vmatpush1.msra.mxu0 0.0
        %2129 = vmatprep.subr.mxu0 0.0
        %2130 = vmatpush1.msra.mxu0 0.0
        %2131 = vmatprep.subr.mxu0 0.0
        %2132 = vmatpush1.msra.mxu0 0.0
        %2133 = vmatprep.subr.mxu0 0.0
        %2134 = vmatpush1.msra.mxu0 0.0
        %2135 = vmatprep.subr.mxu0 0.0
        %2136 = vmatpush1.msra.mxu0 0.0
        %2137 = vmatprep.subr.mxu0 0.0
        %2138 = vmatpush1.msra.mxu0 0.0
        %2139 = vmatprep.subr.mxu0 0.0
        %2140 = vmatpush1.msra.mxu0 0.0
        %2141 = vmatprep.subr.mxu0 0.0
        %2142 = vmatpush1.msra.mxu0 0.0
        %2143 = vmatprep.subr.mxu0 0.0
        %2144 = vmatpush1.msra.mxu0 0.0
        %2145 = vmatprep.subr.mxu0 0.0
        %2146 = vmatpush1.msra.mxu0 0.0
        %2147 = vmatprep.subr.mxu0 0.0
        %2148 = vmatpush1.msra.mxu0 0.0
        %2149 = vmatprep.mubr.f32.mxu0 0.0
        %v2150 = vand.u32 %v1546, 4294901760
        %2151 = vmatmul.mubr.f32.gmra.mrb[0].mxu0 %v2150
        %v2152 = vpop.f32.mrb[0].mxu0
        %v2153 = vadd.f32 %v2022, %v2152
        %v2154 = vpop.f32.mrb[0].mxu0
        %2155 = vmatprep.mubr.f32.mxu0 0.0
        %v2156 = vand.u32 %v1549, 4294901760
        %2157 = vmatmul.mubr.f32.gmra.mrb[0].mxu0 %v2156
        %v2158 = vpop.f32.mrb[0].mxu0
        %v2159 = vadd.f32 %v2030, %v2158
        %v2160 = vpop.f32.mrb[0].mxu0
        %2161 = vmatprep.mubr.f32.mxu0 0.0
        %v2162 = vand.u32 %v1552, 4294901760
        %2163 = vmatmul.mubr.f32.gmra.mrb[0].mxu0 %v2162
        %v2164 = vpop.f32.mrb[0].mxu0
        %v2165 = vadd.f32 %v2038, %v2164
        %v2166 = vpop.f32.mrb[0].mxu0
        %2167 = vmatprep.mubr.f32.mxu0 0.0
        %v2168 = vand.u32 %v1555, 4294901760
        %2169 = vmatmul.mubr.f32.gmra.mrb[0].mxu0 %v2168
        %v2170 = vpop.f32.mrb[0].mxu0
        %v2171 = vadd.f32 %v2046, %v2170
        %v2172 = vpop.f32.mrb[0].mxu0
        %2173 = vdwg.mxu0
        %2174 = vmatprep.subr.mxu0 0.0
        %v2175 = vand.u32 %v534, 4294901760
        %2176 = vmatpush1.msra.mxu0 %v2175
        %2177 = vmatprep.subr.mxu0 0.0
        %v2178 = vand.u32 %v535, 4294901760
        %2179 = vmatpush1.msra.mxu0 %v2178
        %2180 = vmatprep.subr.mxu0 0.0
        %v2181 = vand.u32 %v536, 4294901760
        %2182 = vmatpush1.msra.mxu0 %v2181
        %2183 = vmatprep.subr.mxu0 0.0
        %v2184 = vand.u32 %v537, 4294901760
        %2185 = vmatpush1.msra.mxu0 %v2184
        %2186 = vmatprep.subr.mxu0 0.0
        %v2187 = vand.u32 %v538, 4294901760
        %2188 = vmatpush1.msra.mxu0 %v2187
        %2189 = vmatprep.subr.mxu0 0.0
        %v2190 = vand.u32 %v539, 4294901760
        %2191 = vmatpush1.msra.mxu0 %v2190
        %2192 = vmatprep.subr.mxu0 0.0
        %v2193 = vand.u32 %v540, 4294901760
        %2194 = vmatpush1.msra.mxu0 %v2193
        %2195 = vmatprep.subr.mxu0 0.0
        %v2196 = vand.u32 %v541, 4294901760
        %2197 = vmatpush1.msra.mxu0 %v2196
        %2198 = vmatprep.subr.mxu0 0.0
        %v2199 = vand.u32 %v542, 4294901760
        %2200 = vmatpush1.msra.mxu0 %v2199
        %2201 = vmatprep.subr.mxu0 0.0
        %v2202 = vand.u32 %v543, 4294901760
        %2203 = vmatpush1.msra.mxu0 %v2202
        %2204 = vmatprep.subr.mxu0 0.0
        %v2205 = vand.u32 %v544, 4294901760
        %2206 = vmatpush1.msra.mxu0 %v2205
        %2207 = vmatprep.subr.mxu0 0.0
        %v2208 = vand.u32 %v545, 4294901760
        %2209 = vmatpush1.msra.mxu0 %v2208
        %2210 = vmatprep.subr.mxu0 0.0
        %2211 = vmatpush1.msra.mxu0 0.0
        %2212 = vmatprep.subr.mxu0 0.0
        %2213 = vmatpush1.msra.mxu0 0.0
        %2214 = vmatprep.subr.mxu0 0.0
        %2215 = vmatpush1.msra.mxu0 0.0
        %2216 = vmatprep.subr.mxu0 0.0
        %2217 = vmatpush1.msra.mxu0 0.0
        %2218 = vmatprep.subr.mxu0 0.0
        %2219 = vmatpush1.msra.mxu0 0.0
        %2220 = vmatprep.subr.mxu0 0.0
        %2221 = vmatpush1.msra.mxu0 0.0
        %2222 = vmatprep.subr.mxu0 0.0
        %2223 = vmatpush1.msra.mxu0 0.0
        %2224 = vmatprep.subr.mxu0 0.0
        %2225 = vmatpush1.msra.mxu0 0.0
        %2226 = vmatprep.subr.mxu0 0.0
        %2227 = vmatpush1.msra.mxu0 0.0
        %2228 = vmatprep.subr.mxu0 0.0
        %2229 = vmatpush1.msra.mxu0 0.0
        %2230 = vmatprep.subr.mxu0 0.0
        %2231 = vmatpush1.msra.mxu0 0.0
        %2232 = vmatprep.subr.mxu0 0.0
        %2233 = vmatpush1.msra.mxu0 0.0
        %2234 = vmatprep.subr.mxu0 0.0
        %2235 = vmatpush1.msra.mxu0 0.0
        %2236 = vmatprep.subr.mxu0 0.0
        %2237 = vmatpush1.msra.mxu0 0.0
        %2238 = vmatprep.subr.mxu0 0.0
        %2239 = vmatpush1.msra.mxu0 0.0
        %2240 = vmatprep.subr.mxu0 0.0
        %2241 = vmatpush1.msra.mxu0 0.0
        %2242 = vmatprep.subr.mxu0 0.0
        %2243 = vmatpush1.msra.mxu0 0.0
        %2244 = vmatprep.subr.mxu0 0.0
        %2245 = vmatpush1.msra.mxu0 0.0
        %2246 = vmatprep.subr.mxu0 0.0
        %2247 = vmatpush1.msra.mxu0 0.0
        %2248 = vmatprep.subr.mxu0 0.0
        %2249 = vmatpush1.msra.mxu0 0.0
        %2250 = vmatprep.mubr.f32.mxu0 0.0
        %v2251 = vand.u32 %v1546, 4294901760
        %2252 = vmatmul.mubr.f32.gmra.mrb[0].mxu0 %v2251
        %v2253 = vpop.f32.mrb[0].mxu0
        %v2254 = vadd.f32 %v2153, %v2253
        %v2255 = vpop.f32.mrb[0].mxu0
        %2256 = vmatprep.mubr.f32.mxu0 0.0
        %v2257 = vand.u32 %v1549, 4294901760
        %2258 = vmatmul.mubr.f32.gmra.mrb[0].mxu0 %v2257
        %v2259 = vpop.f32.mrb[0].mxu0
        %v2260 = vadd.f32 %v2159, %v2259
        %v2261 = vpop.f32.mrb[0].mxu0
        %2262 = vmatprep.mubr.f32.mxu0 0.0
        %v2263 = vand.u32 %v1552, 4294901760
        %2264 = vmatmul.mubr.f32.gmra.mrb[0].mxu0 %v2263
        %v2265 = vpop.f32.mrb[0].mxu0
        %v2266 = vadd.f32 %v2165, %v2265
        %v2267 = vpop.f32.mrb[0].mxu0
        %2268 = vmatprep.mubr.f32.mxu0 0.0
        %v2269 = vand.u32 %v1555, 4294901760
        %2270 = vmatmul.mubr.f32.gmra.mrb[0].mxu0 %v2269
        %v2271 = vpop.f32.mrb[0].mxu0
        %v2272 = vadd.f32 %v2171, %v2271
        %v2273 = vpop.f32.mrb[0].mxu0
        %2274 = vdwg.mxu0
        %s2275 = scalar_lea.vmem [#allocation9], 64
        %v2276 = vld [vmem:[%s2275] sm:$0xff]
        %v2277 = vld [vmem:[%s2275 + $0x8] sm:$0xff]
        %v2278 = vld [vmem:[%s2275 + $0x10] sm:$0xff]
        %v2279 = vld [vmem:[%s2275 + $0x18] sm:$0xff]
        %v2281 = vsel %vm814, %v2276, 0
        %v2284 = vsel %vm814, %v2277, 0
        %v2287 = vsel %vm814, %v2278, 0
        %v2290 = vsel %vm814, %v2279, 0
        %2292 = vmatprep.subr.mxu0 0.0
        %v2293 = vand.u32 %v793, 4294901760
        %2294 = vmatpush1.msra.mxu0 %v2293
        %2295 = vmatprep.subr.mxu0 0.0
        %v2296 = vand.u32 %v794, 4294901760
        %2297 = vmatpush1.msra.mxu0 %v2296
        %2298 = vmatprep.subr.mxu0 0.0
        %v2299 = vand.u32 %v795, 4294901760
        %2300 = vmatpush1.msra.mxu0 %v2299
        %2301 = vmatprep.subr.mxu0 0.0
        %v2302 = vand.u32 %v796, 4294901760
        %2303 = vmatpush1.msra.mxu0 %v2302
        %2304 = vmatprep.subr.mxu0 0.0
        %v2305 = vand.u32 %v797, 4294901760
        %2306 = vmatpush1.msra.mxu0 %v2305
        %2307 = vmatprep.subr.mxu0 0.0
        %v2308 = vand.u32 %v798, 4294901760
        %2309 = vmatpush1.msra.mxu0 %v2308
        %2310 = vmatprep.subr.mxu0 0.0
        %v2311 = vand.u32 %v799, 4294901760
        %2312 = vmatpush1.msra.mxu0 %v2311
        %2313 = vmatprep.subr.mxu0 0.0
        %v2314 = vand.u32 %v800, 4294901760
        %2315 = vmatpush1.msra.mxu0 %v2314
        %2316 = vmatprep.subr.mxu0 0.0
        %v2317 = vand.u32 %v801, 4294901760
        %2318 = vmatpush1.msra.mxu0 %v2317
        %2319 = vmatprep.subr.mxu0 0.0
        %v2320 = vand.u32 %v802, 4294901760
        %2321 = vmatpush1.msra.mxu0 %v2320
        %2322 = vmatprep.subr.mxu0 0.0
        %v2323 = vand.u32 %v803, 4294901760
        %2324 = vmatpush1.msra.mxu0 %v2323
        %2325 = vmatprep.subr.mxu0 0.0
        %v2326 = vand.u32 %v804, 4294901760
        %2327 = vmatpush1.msra.mxu0 %v2326
        %2328 = vmatprep.subr.mxu0 0.0
        %2329 = vmatpush1.msra.mxu0 0.0
        %2330 = vmatprep.subr.mxu0 0.0
        %2331 = vmatpush1.msra.mxu0 0.0
        %2332 = vmatprep.subr.mxu0 0.0
        %2333 = vmatpush1.msra.mxu0 0.0
        %2334 = vmatprep.subr.mxu0 0.0
        %2335 = vmatpush1.msra.mxu0 0.0
        %2336 = vmatprep.subr.mxu0 0.0
        %2337 = vmatpush1.msra.mxu0 0.0
        %2338 = vmatprep.subr.mxu0 0.0
        %2339 = vmatpush1.msra.mxu0 0.0
        %2340 = vmatprep.subr.mxu0 0.0
        %2341 = vmatpush1.msra.mxu0 0.0
        %2342 = vmatprep.subr.mxu0 0.0
        %2343 = vmatpush1.msra.mxu0 0.0
        %2344 = vmatprep.subr.mxu0 0.0
        %2345 = vmatpush1.msra.mxu0 0.0
        %2346 = vmatprep.subr.mxu0 0.0
        %2347 = vmatpush1.msra.mxu0 0.0
        %2348 = vmatprep.subr.mxu0 0.0
        %2349 = vmatpush1.msra.mxu0 0.0
        %2350 = vmatprep.subr.mxu0 0.0
        %2351 = vmatpush1.msra.mxu0 0.0
        %2352 = vmatprep.subr.mxu0 0.0
        %2353 = vmatpush1.msra.mxu0 0.0
        %2354 = vmatprep.subr.mxu0 0.0
        %2355 = vmatpush1.msra.mxu0 0.0
        %2356 = vmatprep.subr.mxu0 0.0
        %2357 = vmatpush1.msra.mxu0 0.0
        %2358 = vmatprep.subr.mxu0 0.0
        %2359 = vmatpush1.msra.mxu0 0.0
        %2360 = vmatprep.subr.mxu0 0.0
        %2361 = vmatpush1.msra.mxu0 0.0
        %2362 = vmatprep.subr.mxu0 0.0
        %2363 = vmatpush1.msra.mxu0 0.0
        %2364 = vmatprep.subr.mxu0 0.0
        %2365 = vmatpush1.msra.mxu0 0.0
        %2366 = vmatprep.subr.mxu0 0.0
        %2367 = vmatpush1.msra.mxu0 0.0
        %2368 = vmatprep.mubr.f32.mxu0 0.0
        %v2369 = vand.u32 %v2281, 4294901760
        %v2370 = vsub.f32 %v2281, %v2369
        %v2371 = vand.u32 %v2370, 4294901760
        %v2372 = vsub.f32 %v2370, %v2371
        %v2373 = vand.u32 %v2372, 4294901760
        %2374 = vmatmul.mubr.f32.gmra.mrb[0].mxu0 %v2373
        %v2375 = vpop.f32.mrb[0].mxu0
        %v2376 = vadd.f32 0.0, %v2375
        %v2377 = vpop.f32.mrb[0].mxu0
        %2378 = vmatprep.mubr.f32.mxu0 0.0
        %v2379 = vand.u32 %v2284, 4294901760
        %v2380 = vsub.f32 %v2284, %v2379
        %v2381 = vand.u32 %v2380, 4294901760
        %v2382 = vsub.f32 %v2380, %v2381
        %v2383 = vand.u32 %v2382, 4294901760
        %2384 = vmatmul.mubr.f32.gmra.mrb[0].mxu0 %v2383
        %v2385 = vpop.f32.mrb[0].mxu0
        %v2386 = vadd.f32 0.0, %v2385
        %v2387 = vpop.f32.mrb[0].mxu0
        %2388 = vmatprep.mubr.f32.mxu0 0.0
        %v2389 = vand.u32 %v2287, 4294901760
        %v2390 = vsub.f32 %v2287, %v2389
        %v2391 = vand.u32 %v2390, 4294901760
        %v2392 = vsub.f32 %v2390, %v2391
        %v2393 = vand.u32 %v2392, 4294901760
        %2394 = vmatmul.mubr.f32.gmra.mrb[0].mxu0 %v2393
        %v2395 = vpop.f32.mrb[0].mxu0
        %v2396 = vadd.f32 0.0, %v2395
        %v2397 = vpop.f32.mrb[0].mxu0
        %2398 = vmatprep.mubr.f32.mxu0 0.0
        %v2399 = vand.u32 %v2290, 4294901760
        %v2400 = vsub.f32 %v2290, %v2399
        %v2401 = vand.u32 %v2400, 4294901760
        %v2402 = vsub.f32 %v2400, %v2401
        %v2403 = vand.u32 %v2402, 4294901760
        %2404 = vmatmul.mubr.f32.gmra.mrb[0].mxu0 %v2403
        %v2405 = vpop.f32.mrb[0].mxu0
        %v2406 = vadd.f32 0.0, %v2405
        %v2407 = vpop.f32.mrb[0].mxu0
        %2408 = vdwg.mxu0
        %2409 = vmatprep.subr.mxu0 0.0
        %v2410 = vand.u32 %v793, 4294901760
        %v2411 = vsub.f32 %v793, %v2410
        %v2412 = vand.u32 %v2411, 4294901760
        %v2413 = vsub.f32 %v2411, %v2412
        %v2414 = vand.u32 %v2413, 4294901760
        %2415 = vmatpush1.msra.mxu0 %v2414
        %2416 = vmatprep.subr.mxu0 0.0
        %v2417 = vand.u32 %v794, 4294901760
        %v2418 = vsub.f32 %v794, %v2417
        %v2419 = vand.u32 %v2418, 4294901760
        %v2420 = vsub.f32 %v2418, %v2419
        %v2421 = vand.u32 %v2420, 4294901760
        %2422 = vmatpush1.msra.mxu0 %v2421
        %2423 = vmatprep.subr.mxu0 0.0
        %v2424 = vand.u32 %v795, 4294901760
        %v2425 = vsub.f32 %v795, %v2424
        %v2426 = vand.u32 %v2425, 4294901760
        %v2427 = vsub.f32 %v2425, %v2426
        %v2428 = vand.u32 %v2427, 4294901760
        %2429 = vmatpush1.msra.mxu0 %v2428
        %2430 = vmatprep.subr.mxu0 0.0
        %v2431 = vand.u32 %v796, 4294901760
        %v2432 = vsub.f32 %v796, %v2431
        %v2433 = vand.u32 %v2432, 4294901760
        %v2434 = vsub.f32 %v2432, %v2433
        %v2435 = vand.u32 %v2434, 4294901760
        %2436 = vmatpush1.msra.mxu0 %v2435
        %2437 = vmatprep.subr.mxu0 0.0
        %v2438 = vand.u32 %v797, 4294901760
        %v2439 = vsub.f32 %v797, %v2438
        %v2440 = vand.u32 %v2439, 4294901760
        %v2441 = vsub.f32 %v2439, %v2440
        %v2442 = vand.u32 %v2441, 4294901760
        %2443 = vmatpush1.msra.mxu0 %v2442
        %2444 = vmatprep.subr.mxu0 0.0
        %v2445 = vand.u32 %v798, 4294901760
        %v2446 = vsub.f32 %v798, %v2445
        %v2447 = vand.u32 %v2446, 4294901760
        %v2448 = vsub.f32 %v2446, %v2447
        %v2449 = vand.u32 %v2448, 4294901760
        %2450 = vmatpush1.msra.mxu0 %v2449
        %2451 = vmatprep.subr.mxu0 0.0
        %v2452 = vand.u32 %v799, 4294901760
        %v2453 = vsub.f32 %v799, %v2452
        %v2454 = vand.u32 %v2453, 4294901760
        %v2455 = vsub.f32 %v2453, %v2454
        %v2456 = vand.u32 %v2455, 4294901760
        %2457 = vmatpush1.msra.mxu0 %v2456
        %2458 = vmatprep.subr.mxu0 0.0
        %v2459 = vand.u32 %v800, 4294901760
        %v2460 = vsub.f32 %v800, %v2459
        %v2461 = vand.u32 %v2460, 4294901760
        %v2462 = vsub.f32 %v2460, %v2461
        %v2463 = vand.u32 %v2462, 4294901760
        %2464 = vmatpush1.msra.mxu0 %v2463
        %2465 = vmatprep.subr.mxu0 0.0
        %v2466 = vand.u32 %v801, 4294901760
        %v2467 = vsub.f32 %v801, %v2466
        %v2468 = vand.u32 %v2467, 4294901760
        %v2469 = vsub.f32 %v2467, %v2468
        %v2470 = vand.u32 %v2469, 4294901760
        %2471 = vmatpush1.msra.mxu0 %v2470
        %2472 = vmatprep.subr.mxu0 0.0
        %v2473 = vand.u32 %v802, 4294901760
        %v2474 = vsub.f32 %v802, %v2473
        %v2475 = vand.u32 %v2474, 4294901760
        %v2476 = vsub.f32 %v2474, %v2475
        %v2477 = vand.u32 %v2476, 4294901760
        %2478 = vmatpush1.msra.mxu0 %v2477
        %2479 = vmatprep.subr.mxu0 0.0
        %v2480 = vand.u32 %v803, 4294901760
        %v2481 = vsub.f32 %v803, %v2480
        %v2482 = vand.u32 %v2481, 4294901760
        %v2483 = vsub.f32 %v2481, %v2482
        %v2484 = vand.u32 %v2483, 4294901760
        %2485 = vmatpush1.msra.mxu0 %v2484
        %2486 = vmatprep.subr.mxu0 0.0
        %v2487 = vand.u32 %v804, 4294901760
        %v2488 = vsub.f32 %v804, %v2487
        %v2489 = vand.u32 %v2488, 4294901760
        %v2490 = vsub.f32 %v2488, %v2489
        %v2491 = vand.u32 %v2490, 4294901760
        %2492 = vmatpush1.msra.mxu0 %v2491
        %2493 = vmatprep.subr.mxu0 0.0
        %2494 = vmatpush1.msra.mxu0 0.0
        %2495 = vmatprep.subr.mxu0 0.0
        %2496 = vmatpush1.msra.mxu0 0.0
        %2497 = vmatprep.subr.mxu0 0.0
        %2498 = vmatpush1.msra.mxu0 0.0
        %2499 = vmatprep.subr.mxu0 0.0
        %2500 = vmatpush1.msra.mxu0 0.0
        %2501 = vmatprep.subr.mxu0 0.0
        %2502 = vmatpush1.msra.mxu0 0.0
        %2503 = vmatprep.subr.mxu0 0.0
        %2504 = vmatpush1.msra.mxu0 0.0
        %2505 = vmatprep.subr.mxu0 0.0
        %2506 = vmatpush1.msra.mxu0 0.0
        %2507 = vmatprep.subr.mxu0 0.0
        %2508 = vmatpush1.msra.mxu0 0.0
        %2509 = vmatprep.subr.mxu0 0.0
        %2510 = vmatpush1.msra.mxu0 0.0
        %2511 = vmatprep.subr.mxu0 0.0
        %2512 = vmatpush1.msra.mxu0 0.0
        %2513 = vmatprep.subr.mxu0 0.0
        %2514 = vmatpush1.msra.mxu0 0.0
        %2515 = vmatprep.subr.mxu0 0.0
        %2516 = vmatpush1.msra.mxu0 0.0
        %2517 = vmatprep.subr.mxu0 0.0
        %2518 = vmatpush1.msra.mxu0 0.0
        %2519 = vmatprep.subr.mxu0 0.0
        %2520 = vmatpush1.msra.mxu0 0.0
        %2521 = vmatprep.subr.mxu0 0.0
        %2522 = vmatpush1.msra.mxu0 0.0
        %2523 = vmatprep.subr.mxu0 0.0
        %2524 = vmatpush1.msra.mxu0 0.0
        %2525 = vmatprep.subr.mxu0 0.0
        %2526 = vmatpush1.msra.mxu0 0.0
        %2527 = vmatprep.subr.mxu0 0.0
        %2528 = vmatpush1.msra.mxu0 0.0
        %2529 = vmatprep.subr.mxu0 0.0
        %2530 = vmatpush1.msra.mxu0 0.0
        %2531 = vmatprep.subr.mxu0 0.0
        %2532 = vmatpush1.msra.mxu0 0.0
        %2533 = vmatprep.mubr.f32.mxu0 0.0
        %v2534 = vand.u32 %v2281, 4294901760
        %2535 = vmatmul.mubr.f32.gmra.mrb[0].mxu0 %v2534
        %v2536 = vpop.f32.mrb[0].mxu0
        %v2537 = vadd.f32 %v2376, %v2536
        %v2538 = vpop.f32.mrb[0].mxu0
        %2539 = vmatprep.mubr.f32.mxu0 0.0
        %v2540 = vand.u32 %v2284, 4294901760
        %2541 = vmatmul.mubr.f32.gmra.mrb[0].mxu0 %v2540
        %v2542 = vpop.f32.mrb[0].mxu0
        %v2543 = vadd.f32 %v2386, %v2542
        %v2544 = vpop.f32.mrb[0].mxu0
        %2545 = vmatprep.mubr.f32.mxu0 0.0
        %v2546 = vand.u32 %v2287, 4294901760
        %2547 = vmatmul.mubr.f32.gmra.mrb[0].mxu0 %v2546
        %v2548 = vpop.f32.mrb[0].mxu0
        %v2549 = vadd.f32 %v2396, %v2548
        %v2550 = vpop.f32.mrb[0].mxu0
        %2551 = vmatprep.mubr.f32.mxu0 0.0
        %v2552 = vand.u32 %v2290, 4294901760
        %2553 = vmatmul.mubr.f32.gmra.mrb[0].mxu0 %v2552
        %v2554 = vpop.f32.mrb[0].mxu0
        %v2555 = vadd.f32 %v2406, %v2554
        %v2556 = vpop.f32.mrb[0].mxu0
        %2557 = vdwg.mxu0
        %2558 = vmatprep.subr.mxu0 0.0
        %v2559 = vand.u32 %v793, 4294901760
        %v2560 = vsub.f32 %v793, %v2559
        %2561 = vmatpush1.msra.mxu0 %v2560
        %2562 = vmatprep.subr.mxu0 0.0
        %v2563 = vand.u32 %v794, 4294901760
        %v2564 = vsub.f32 %v794, %v2563
        %2565 = vmatpush1.msra.mxu0 %v2564
        %2566 = vmatprep.subr.mxu0 0.0
        %v2567 = vand.u32 %v795, 4294901760
        %v2568 = vsub.f32 %v795, %v2567
        %2569 = vmatpush1.msra.mxu0 %v2568
        %2570 = vmatprep.subr.mxu0 0.0
        %v2571 = vand.u32 %v796, 4294901760
        %v2572 = vsub.f32 %v796, %v2571
        %2573 = vmatpush1.msra.mxu0 %v2572
        %2574 = vmatprep.subr.mxu0 0.0
        %v2575 = vand.u32 %v797, 4294901760
        %v2576 = vsub.f32 %v797, %v2575
        %2577 = vmatpush1.msra.mxu0 %v2576
        %2578 = vmatprep.subr.mxu0 0.0
        %v2579 = vand.u32 %v798, 4294901760
        %v2580 = vsub.f32 %v798, %v2579
        %2581 = vmatpush1.msra.mxu0 %v2580
        %2582 = vmatprep.subr.mxu0 0.0
        %v2583 = vand.u32 %v799, 4294901760
        %v2584 = vsub.f32 %v799, %v2583
        %2585 = vmatpush1.msra.mxu0 %v2584
        %2586 = vmatprep.subr.mxu0 0.0
        %v2587 = vand.u32 %v800, 4294901760
        %v2588 = vsub.f32 %v800, %v2587
        %2589 = vmatpush1.msra.mxu0 %v2588
        %2590 = vmatprep.subr.mxu0 0.0
        %v2591 = vand.u32 %v801, 4294901760
        %v2592 = vsub.f32 %v801, %v2591
        %2593 = vmatpush1.msra.mxu0 %v2592
        %2594 = vmatprep.subr.mxu0 0.0
        %v2595 = vand.u32 %v802, 4294901760
        %v2596 = vsub.f32 %v802, %v2595
        %2597 = vmatpush1.msra.mxu0 %v2596
        %2598 = vmatprep.subr.mxu0 0.0
        %v2599 = vand.u32 %v803, 4294901760
        %v2600 = vsub.f32 %v803, %v2599
        %2601 = vmatpush1.msra.mxu0 %v2600
        %2602 = vmatprep.subr.mxu0 0.0
        %v2603 = vand.u32 %v804, 4294901760
        %v2604 = vsub.f32 %v804, %v2603
        %2605 = vmatpush1.msra.mxu0 %v2604
        %2606 = vmatprep.subr.mxu0 0.0
        %2607 = vmatpush1.msra.mxu0 0.0
        %2608 = vmatprep.subr.mxu0 0.0
        %2609 = vmatpush1.msra.mxu0 0.0
        %2610 = vmatprep.subr.mxu0 0.0
        %2611 = vmatpush1.msra.mxu0 0.0
        %2612 = vmatprep.subr.mxu0 0.0
        %2613 = vmatpush1.msra.mxu0 0.0
        %2614 = vmatprep.subr.mxu0 0.0
        %2615 = vmatpush1.msra.mxu0 0.0
        %2616 = vmatprep.subr.mxu0 0.0
        %2617 = vmatpush1.msra.mxu0 0.0
        %2618 = vmatprep.subr.mxu0 0.0
        %2619 = vmatpush1.msra.mxu0 0.0
        %2620 = vmatprep.subr.mxu0 0.0
        %2621 = vmatpush1.msra.mxu0 0.0
        %2622 = vmatprep.subr.mxu0 0.0
        %2623 = vmatpush1.msra.mxu0 0.0
        %2624 = vmatprep.subr.mxu0 0.0
        %2625 = vmatpush1.msra.mxu0 0.0
        %2626 = vmatprep.subr.mxu0 0.0
        %2627 = vmatpush1.msra.mxu0 0.0
        %2628 = vmatprep.subr.mxu0 0.0
        %2629 = vmatpush1.msra.mxu0 0.0
        %2630 = vmatprep.subr.mxu0 0.0
        %2631 = vmatpush1.msra.mxu0 0.0
        %2632 = vmatprep.subr.mxu0 0.0
        %2633 = vmatpush1.msra.mxu0 0.0
        %2634 = vmatprep.subr.mxu0 0.0
        %2635 = vmatpush1.msra.mxu0 0.0
        %2636 = vmatprep.subr.mxu0 0.0
        %2637 = vmatpush1.msra.mxu0 0.0
        %2638 = vmatprep.subr.mxu0 0.0
        %2639 = vmatpush1.msra.mxu0 0.0
        %2640 = vmatprep.subr.mxu0 0.0
        %2641 = vmatpush1.msra.mxu0 0.0
        %2642 = vmatprep.subr.mxu0 0.0
        %2643 = vmatpush1.msra.mxu0 0.0
        %2644 = vmatprep.subr.mxu0 0.0
        %2645 = vmatpush1.msra.mxu0 0.0
        %2646 = vmatprep.mubr.f32.mxu0 0.0
        %v2647 = vand.u32 %v2281, 4294901760
        %v2648 = vsub.f32 %v2281, %v2647
        %2649 = vmatmul.mubr.f32.gmra.mrb[0].mxu0 %v2648
        %v2650 = vpop.f32.mrb[0].mxu0
        %v2651 = vadd.f32 %v2537, %v2650
        %v2652 = vpop.f32.mrb[0].mxu0
        %2653 = vmatprep.mubr.f32.mxu0 0.0
        %v2654 = vand.u32 %v2284, 4294901760
        %v2655 = vsub.f32 %v2284, %v2654
        %2656 = vmatmul.mubr.f32.gmra.mrb[0].mxu0 %v2655
        %v2657 = vpop.f32.mrb[0].mxu0
        %v2658 = vadd.f32 %v2543, %v2657
        %v2659 = vpop.f32.mrb[0].mxu0
        %2660 = vmatprep.mubr.f32.mxu0 0.0
        %v2661 = vand.u32 %v2287, 4294901760
        %v2662 = vsub.f32 %v2287, %v2661
        %2663 = vmatmul.mubr.f32.gmra.mrb[0].mxu0 %v2662
        %v2664 = vpop.f32.mrb[0].mxu0
        %v2665 = vadd.f32 %v2549, %v2664
        %v2666 = vpop.f32.mrb[0].mxu0
        %2667 = vmatprep.mubr.f32.mxu0 0.0
        %v2668 = vand.u32 %v2290, 4294901760
        %v2669 = vsub.f32 %v2290, %v2668
        %2670 = vmatmul.mubr.f32.gmra.mrb[0].mxu0 %v2669
        %v2671 = vpop.f32.mrb[0].mxu0
        %v2672 = vadd.f32 %v2555, %v2671
        %v2673 = vpop.f32.mrb[0].mxu0
        %2674 = vdwg.mxu0
        %2675 = vmatprep.subr.mxu0 0.0
        %v2676 = vand.u32 %v793, 4294901760
        %2677 = vmatpush1.msra.mxu0 %v2676
        %2678 = vmatprep.subr.mxu0 0.0
        %v2679 = vand.u32 %v794, 4294901760
        %2680 = vmatpush1.msra.mxu0 %v2679
        %2681 = vmatprep.subr.mxu0 0.0
        %v2682 = vand.u32 %v795, 4294901760
        %2683 = vmatpush1.msra.mxu0 %v2682
        %2684 = vmatprep.subr.mxu0 0.0
        %v2685 = vand.u32 %v796, 4294901760
        %2686 = vmatpush1.msra.mxu0 %v2685
        %2687 = vmatprep.subr.mxu0 0.0
        %v2688 = vand.u32 %v797, 4294901760
        %2689 = vmatpush1.msra.mxu0 %v2688
        %2690 = vmatprep.subr.mxu0 0.0
        %v2691 = vand.u32 %v798, 4294901760
        %2692 = vmatpush1.msra.mxu0 %v2691
        %2693 = vmatprep.subr.mxu0 0.0
        %v2694 = vand.u32 %v799, 4294901760
        %2695 = vmatpush1.msra.mxu0 %v2694
        %2696 = vmatprep.subr.mxu0 0.0
        %v2697 = vand.u32 %v800, 4294901760
        %2698 = vmatpush1.msra.mxu0 %v2697
        %2699 = vmatprep.subr.mxu0 0.0
        %v2700 = vand.u32 %v801, 4294901760
        %2701 = vmatpush1.msra.mxu0 %v2700
        %2702 = vmatprep.subr.mxu0 0.0
        %v2703 = vand.u32 %v802, 4294901760
        %2704 = vmatpush1.msra.mxu0 %v2703
        %2705 = vmatprep.subr.mxu0 0.0
        %v2706 = vand.u32 %v803, 4294901760
        %2707 = vmatpush1.msra.mxu0 %v2706
        %2708 = vmatprep.subr.mxu0 0.0
        %v2709 = vand.u32 %v804, 4294901760
        %2710 = vmatpush1.msra.mxu0 %v2709
        %2711 = vmatprep.subr.mxu0 0.0
        %2712 = vmatpush1.msra.mxu0 0.0
        %2713 = vmatprep.subr.mxu0 0.0
        %2714 = vmatpush1.msra.mxu0 0.0
        %2715 = vmatprep.subr.mxu0 0.0
        %2716 = vmatpush1.msra.mxu0 0.0
        %2717 = vmatprep.subr.mxu0 0.0
        %2718 = vmatpush1.msra.mxu0 0.0
        %2719 = vmatprep.subr.mxu0 0.0
        %2720 = vmatpush1.msra.mxu0 0.0
        %2721 = vmatprep.subr.mxu0 0.0
        %2722 = vmatpush1.msra.mxu0 0.0
        %2723 = vmatprep.subr.mxu0 0.0
        %2724 = vmatpush1.msra.mxu0 0.0
        %2725 = vmatprep.subr.mxu0 0.0
        %2726 = vmatpush1.msra.mxu0 0.0
        %2727 = vmatprep.subr.mxu0 0.0
        %2728 = vmatpush1.msra.mxu0 0.0
        %2729 = vmatprep.subr.mxu0 0.0
        %2730 = vmatpush1.msra.mxu0 0.0
        %2731 = vmatprep.subr.mxu0 0.0
        %2732 = vmatpush1.msra.mxu0 0.0
        %2733 = vmatprep.subr.mxu0 0.0
        %2734 = vmatpush1.msra.mxu0 0.0
        %2735 = vmatprep.subr.mxu0 0.0
        %2736 = vmatpush1.msra.mxu0 0.0
        %2737 = vmatprep.subr.mxu0 0.0
        %2738 = vmatpush1.msra.mxu0 0.0
        %2739 = vmatprep.subr.mxu0 0.0
        %2740 = vmatpush1.msra.mxu0 0.0
        %2741 = vmatprep.subr.mxu0 0.0
        %2742 = vmatpush1.msra.mxu0 0.0
        %2743 = vmatprep.subr.mxu0 0.0
        %2744 = vmatpush1.msra.mxu0 0.0
        %2745 = vmatprep.subr.mxu0 0.0
        %2746 = vmatpush1.msra.mxu0 0.0
        %2747 = vmatprep.subr.mxu0 0.0
        %2748 = vmatpush1.msra.mxu0 0.0
        %2749 = vmatprep.subr.mxu0 0.0
        %2750 = vmatpush1.msra.mxu0 0.0
        %2751 = vmatprep.mubr.f32.mxu0 0.0
        %v2752 = vand.u32 %v2281, 4294901760
        %v2753 = vsub.f32 %v2281, %v2752
        %v2754 = vand.u32 %v2753, 4294901760
        %2755 = vmatmul.mubr.f32.gmra.mrb[0].mxu0 %v2754
        %v2756 = vpop.f32.mrb[0].mxu0
        %v2757 = vadd.f32 %v2651, %v2756
        %v2758 = vpop.f32.mrb[0].mxu0
        %2759 = vmatprep.mubr.f32.mxu0 0.0
        %v2760 = vand.u32 %v2284, 4294901760
        %v2761 = vsub.f32 %v2284, %v2760
        %v2762 = vand.u32 %v2761, 4294901760
        %2763 = vmatmul.mubr.f32.gmra.mrb[0].mxu0 %v2762
        %v2764 = vpop.f32.mrb[0].mxu0
        %v2765 = vadd.f32 %v2658, %v2764
        %v2766 = vpop.f32.mrb[0].mxu0
        %2767 = vmatprep.mubr.f32.mxu0 0.0
        %v2768 = vand.u32 %v2287, 4294901760
        %v2769 = vsub.f32 %v2287, %v2768
        %v2770 = vand.u32 %v2769, 4294901760
        %2771 = vmatmul.mubr.f32.gmra.mrb[0].mxu0 %v2770
        %v2772 = vpop.f32.mrb[0].mxu0
        %v2773 = vadd.f32 %v2665, %v2772
        %v2774 = vpop.f32.mrb[0].mxu0
        %2775 = vmatprep.mubr.f32.mxu0 0.0
        %v2776 = vand.u32 %v2290, 4294901760
        %v2777 = vsub.f32 %v2290, %v2776
        %v2778 = vand.u32 %v2777, 4294901760
        %2779 = vmatmul.mubr.f32.gmra.mrb[0].mxu0 %v2778
        %v2780 = vpop.f32.mrb[0].mxu0
        %v2781 = vadd.f32 %v2672, %v2780
        %v2782 = vpop.f32.mrb[0].mxu0
        %2783 = vdwg.mxu0
        %2784 = vmatprep.subr.mxu0 0.0
        %v2785 = vand.u32 %v793, 4294901760
        %v2786 = vsub.f32 %v793, %v2785
        %v2787 = vand.u32 %v2786, 4294901760
        %2788 = vmatpush1.msra.mxu0 %v2787
        %2789 = vmatprep.subr.mxu0 0.0
        %v2790 = vand.u32 %v794, 4294901760
        %v2791 = vsub.f32 %v794, %v2790
        %v2792 = vand.u32 %v2791, 4294901760
        %2793 = vmatpush1.msra.mxu0 %v2792
        %2794 = vmatprep.subr.mxu0 0.0
        %v2795 = vand.u32 %v795, 4294901760
        %v2796 = vsub.f32 %v795, %v2795
        %v2797 = vand.u32 %v2796, 4294901760
        %2798 = vmatpush1.msra.mxu0 %v2797
        %2799 = vmatprep.subr.mxu0 0.0
        %v2800 = vand.u32 %v796, 4294901760
        %v2801 = vsub.f32 %v796, %v2800
        %v2802 = vand.u32 %v2801, 4294901760
        %2803 = vmatpush1.msra.mxu0 %v2802
        %2804 = vmatprep.subr.mxu0 0.0
        %v2805 = vand.u32 %v797, 4294901760
        %v2806 = vsub.f32 %v797, %v2805
        %v2807 = vand.u32 %v2806, 4294901760
        %2808 = vmatpush1.msra.mxu0 %v2807
        %2809 = vmatprep.subr.mxu0 0.0
        %v2810 = vand.u32 %v798, 4294901760
        %v2811 = vsub.f32 %v798, %v2810
        %v2812 = vand.u32 %v2811, 4294901760
        %2813 = vmatpush1.msra.mxu0 %v2812
        %2814 = vmatprep.subr.mxu0 0.0
        %v2815 = vand.u32 %v799, 4294901760
        %v2816 = vsub.f32 %v799, %v2815
        %v2817 = vand.u32 %v2816, 4294901760
        %2818 = vmatpush1.msra.mxu0 %v2817
        %2819 = vmatprep.subr.mxu0 0.0
        %v2820 = vand.u32 %v800, 4294901760
        %v2821 = vsub.f32 %v800, %v2820
        %v2822 = vand.u32 %v2821, 4294901760
        %2823 = vmatpush1.msra.mxu0 %v2822
        %2824 = vmatprep.subr.mxu0 0.0
        %v2825 = vand.u32 %v801, 4294901760
        %v2826 = vsub.f32 %v801, %v2825
        %v2827 = vand.u32 %v2826, 4294901760
        %2828 = vmatpush1.msra.mxu0 %v2827
        %2829 = vmatprep.subr.mxu0 0.0
        %v2830 = vand.u32 %v802, 4294901760
        %v2831 = vsub.f32 %v802, %v2830
        %v2832 = vand.u32 %v2831, 4294901760
        %2833 = vmatpush1.msra.mxu0 %v2832
        %2834 = vmatprep.subr.mxu0 0.0
        %v2835 = vand.u32 %v803, 4294901760
        %v2836 = vsub.f32 %v803, %v2835
        %v2837 = vand.u32 %v2836, 4294901760
        %2838 = vmatpush1.msra.mxu0 %v2837
        %2839 = vmatprep.subr.mxu0 0.0
        %v2840 = vand.u32 %v804, 4294901760
        %v2841 = vsub.f32 %v804, %v2840
        %v2842 = vand.u32 %v2841, 4294901760
        %2843 = vmatpush1.msra.mxu0 %v2842
        %2844 = vmatprep.subr.mxu0 0.0
        %2845 = vmatpush1.msra.mxu0 0.0
        %2846 = vmatprep.subr.mxu0 0.0
        %2847 = vmatpush1.msra.mxu0 0.0
        %2848 = vmatprep.subr.mxu0 0.0
        %2849 = vmatpush1.msra.mxu0 0.0
        %2850 = vmatprep.subr.mxu0 0.0
        %2851 = vmatpush1.msra.mxu0 0.0
        %2852 = vmatprep.subr.mxu0 0.0
        %2853 = vmatpush1.msra.mxu0 0.0
        %2854 = vmatprep.subr.mxu0 0.0
        %2855 = vmatpush1.msra.mxu0 0.0
        %2856 = vmatprep.subr.mxu0 0.0
        %2857 = vmatpush1.msra.mxu0 0.0
        %2858 = vmatprep.subr.mxu0 0.0
        %2859 = vmatpush1.msra.mxu0 0.0
        %2860 = vmatprep.subr.mxu0 0.0
        %2861 = vmatpush1.msra.mxu0 0.0
        %2862 = vmatprep.subr.mxu0 0.0
        %2863 = vmatpush1.msra.mxu0 0.0
        %2864 = vmatprep.subr.mxu0 0.0
        %2865 = vmatpush1.msra.mxu0 0.0
        %2866 = vmatprep.subr.mxu0 0.0
        %2867 = vmatpush1.msra.mxu0 0.0
        %2868 = vmatprep.subr.mxu0 0.0
        %2869 = vmatpush1.msra.mxu0 0.0
        %2870 = vmatprep.subr.mxu0 0.0
        %2871 = vmatpush1.msra.mxu0 0.0
        %2872 = vmatprep.subr.mxu0 0.0
        %2873 = vmatpush1.msra.mxu0 0.0
        %2874 = vmatprep.subr.mxu0 0.0
        %2875 = vmatpush1.msra.mxu0 0.0
        %2876 = vmatprep.subr.mxu0 0.0
        %2877 = vmatpush1.msra.mxu0 0.0
        %2878 = vmatprep.subr.mxu0 0.0
        %2879 = vmatpush1.msra.mxu0 0.0
        %2880 = vmatprep.subr.mxu0 0.0
        %2881 = vmatpush1.msra.mxu0 0.0
        %2882 = vmatprep.subr.mxu0 0.0
        %2883 = vmatpush1.msra.mxu0 0.0
        %2884 = vmatprep.mubr.f32.mxu0 0.0
        %v2885 = vand.u32 %v2281, 4294901760
        %2886 = vmatmul.mubr.f32.gmra.mrb[0].mxu0 %v2885
        %v2887 = vpop.f32.mrb[0].mxu0
        %v2888 = vadd.f32 %v2757, %v2887
        %v2889 = vpop.f32.mrb[0].mxu0
        %2890 = vmatprep.mubr.f32.mxu0 0.0
        %v2891 = vand.u32 %v2284, 4294901760
        %2892 = vmatmul.mubr.f32.gmra.mrb[0].mxu0 %v2891
        %v2893 = vpop.f32.mrb[0].mxu0
        %v2894 = vadd.f32 %v2765, %v2893
        %v2895 = vpop.f32.mrb[0].mxu0
        %2896 = vmatprep.mubr.f32.mxu0 0.0
        %v2897 = vand.u32 %v2287, 4294901760
        %2898 = vmatmul.mubr.f32.gmra.mrb[0].mxu0 %v2897
        %v2899 = vpop.f32.mrb[0].mxu0
        %v2900 = vadd.f32 %v2773, %v2899
        %v2901 = vpop.f32.mrb[0].mxu0
        %2902 = vmatprep.mubr.f32.mxu0 0.0
        %v2903 = vand.u32 %v2290, 4294901760
        %2904 = vmatmul.mubr.f32.gmra.mrb[0].mxu0 %v2903
        %v2905 = vpop.f32.mrb[0].mxu0
        %v2906 = vadd.f32 %v2781, %v2905
        %v2907 = vpop.f32.mrb[0].mxu0
        %2908 = vdwg.mxu0
        %2909 = vmatprep.subr.mxu0 0.0
        %v2910 = vand.u32 %v793, 4294901760
        %2911 = vmatpush1.msra.mxu0 %v2910
        %2912 = vmatprep.subr.mxu0 0.0
        %v2913 = vand.u32 %v794, 4294901760
        %2914 = vmatpush1.msra.mxu0 %v2913
        %2915 = vmatprep.subr.mxu0 0.0
        %v2916 = vand.u32 %v795, 4294901760
        %2917 = vmatpush1.msra.mxu0 %v2916
        %2918 = vmatprep.subr.mxu0 0.0
        %v2919 = vand.u32 %v796, 4294901760
        %2920 = vmatpush1.msra.mxu0 %v2919
        %2921 = vmatprep.subr.mxu0 0.0
        %v2922 = vand.u32 %v797, 4294901760
        %2923 = vmatpush1.msra.mxu0 %v2922
        %2924 = vmatprep.subr.mxu0 0.0
        %v2925 = vand.u32 %v798, 4294901760
        %2926 = vmatpush1.msra.mxu0 %v2925
        %2927 = vmatprep.subr.mxu0 0.0
        %v2928 = vand.u32 %v799, 4294901760
        %2929 = vmatpush1.msra.mxu0 %v2928
        %2930 = vmatprep.subr.mxu0 0.0
        %v2931 = vand.u32 %v800, 4294901760
        %2932 = vmatpush1.msra.mxu0 %v2931
        %2933 = vmatprep.subr.mxu0 0.0
        %v2934 = vand.u32 %v801, 4294901760
        %2935 = vmatpush1.msra.mxu0 %v2934
        %2936 = vmatprep.subr.mxu0 0.0
        %v2937 = vand.u32 %v802, 4294901760
        %2938 = vmatpush1.msra.mxu0 %v2937
        %2939 = vmatprep.subr.mxu0 0.0
        %v2940 = vand.u32 %v803, 4294901760
        %2941 = vmatpush1.msra.mxu0 %v2940
        %2942 = vmatprep.subr.mxu0 0.0
        %v2943 = vand.u32 %v804, 4294901760
        %2944 = vmatpush1.msra.mxu0 %v2943
        %2945 = vmatprep.subr.mxu0 0.0
        %2946 = vmatpush1.msra.mxu0 0.0
        %2947 = vmatprep.subr.mxu0 0.0
        %2948 = vmatpush1.msra.mxu0 0.0
        %2949 = vmatprep.subr.mxu0 0.0
        %2950 = vmatpush1.msra.mxu0 0.0
        %2951 = vmatprep.subr.mxu0 0.0
        %2952 = vmatpush1.msra.mxu0 0.0
        %2953 = vmatprep.subr.mxu0 0.0
        %2954 = vmatpush1.msra.mxu0 0.0
        %2955 = vmatprep.subr.mxu0 0.0
        %2956 = vmatpush1.msra.mxu0 0.0
        %2957 = vmatprep.subr.mxu0 0.0
        %2958 = vmatpush1.msra.mxu0 0.0
        %2959 = vmatprep.subr.mxu0 0.0
        %2960 = vmatpush1.msra.mxu0 0.0
        %2961 = vmatprep.subr.mxu0 0.0
        %2962 = vmatpush1.msra.mxu0 0.0
        %2963 = vmatprep.subr.mxu0 0.0
        %2964 = vmatpush1.msra.mxu0 0.0
        %2965 = vmatprep.subr.mxu0 0.0
        %2966 = vmatpush1.msra.mxu0 0.0
        %2967 = vmatprep.subr.mxu0 0.0
        %2968 = vmatpush1.msra.mxu0 0.0
        %2969 = vmatprep.subr.mxu0 0.0
        %2970 = vmatpush1.msra.mxu0 0.0
        %2971 = vmatprep.subr.mxu0 0.0
        %2972 = vmatpush1.msra.mxu0 0.0
        %2973 = vmatprep.subr.mxu0 0.0
        %2974 = vmatpush1.msra.mxu0 0.0
        %2975 = vmatprep.subr.mxu0 0.0
        %2976 = vmatpush1.msra.mxu0 0.0
        %2977 = vmatprep.subr.mxu0 0.0
        %2978 = vmatpush1.msra.mxu0 0.0
        %2979 = vmatprep.subr.mxu0 0.0
        %2980 = vmatpush1.msra.mxu0 0.0
        %2981 = vmatprep.subr.mxu0 0.0
        %2982 = vmatpush1.msra.mxu0 0.0
        %2983 = vmatprep.subr.mxu0 0.0
        %2984 = vmatpush1.msra.mxu0 0.0
        %2985 = vmatprep.mubr.f32.mxu0 0.0
        %v2986 = vand.u32 %v2281, 4294901760
        %2987 = vmatmul.mubr.f32.gmra.mrb[0].mxu0 %v2986
        %v2988 = vpop.f32.mrb[0].mxu0
        %v2989 = vadd.f32 %v2888, %v2988
        %v2990 = vpop.f32.mrb[0].mxu0
        %2991 = vmatprep.mubr.f32.mxu0 0.0
        %v2992 = vand.u32 %v2284, 4294901760
        %2993 = vmatmul.mubr.f32.gmra.mrb[0].mxu0 %v2992
        %v2994 = vpop.f32.mrb[0].mxu0
        %v2995 = vadd.f32 %v2894, %v2994
        %v2996 = vpop.f32.mrb[0].mxu0
        %2997 = vmatprep.mubr.f32.mxu0 0.0
        %v2998 = vand.u32 %v2287, 4294901760
        %2999 = vmatmul.mubr.f32.gmra.mrb[0].mxu0 %v2998
        %v3000 = vpop.f32.mrb[0].mxu0
        %v3001 = vadd.f32 %v2900, %v3000
        %v3002 = vpop.f32.mrb[0].mxu0
        %3003 = vmatprep.mubr.f32.mxu0 0.0
        %v3004 = vand.u32 %v2290, 4294901760
        %3005 = vmatmul.mubr.f32.gmra.mrb[0].mxu0 %v3004
        %v3006 = vpop.f32.mrb[0].mxu0
        %v3007 = vadd.f32 %v2906, %v3006
        %v3008 = vpop.f32.mrb[0].mxu0
        %3009 = vdwg.mxu0
        %v3010 = vadd.f32 %v2254, %v2989
        %v3011 = vadd.f32 %v2260, %v2995
        %v3012 = vadd.f32 %v2266, %v3001
        %v3013 = vadd.f32 %v2272, %v3007
        %v3014 = vld [vmem:[%s4] sm:$0xff]
        %v3015 = vld [vmem:[%s4 + $0x8] sm:$0xff]
        %v3016 = vld [vmem:[%s4 + $0x10] sm:$0xff]
        %v3017 = vld [vmem:[%s4 + $0x18] sm:$0xff]
        %3019 = vset.pattern.permute.xlu0 0
        %3020 = vperm.xlu0 %3019, %v3014
        %v3021 = vpop.permute.xlu0 %3020
        %3024 = vset.pattern.permute.xlu0 0
        %3025 = vperm.xlu0 %3024, %v3015
        %v3026 = vpop.permute.xlu0 %3025
        %3029 = vset.pattern.permute.xlu0 0
        %3030 = vperm.xlu0 %3029, %v3016
        %v3031 = vpop.permute.xlu0 %3030
        %3034 = vset.pattern.permute.xlu0 0
        %3035 = vperm.xlu0 %3034, %v3017
        %v3036 = vpop.permute.xlu0 %3035
        %v3038 = vadd.f32 %v3010, %v3021
        %v3039 = vadd.f32 %v3011, %v3026
        %v3040 = vadd.f32 %v3012, %v3031
        %v3041 = vadd.f32 %v3013, %v3036
        %v3042 = vmax.f32 %v3038, 0.0
        %v3043 = vmax.f32 %v3039, 0.0
        %v3044 = vmax.f32 %v3040, 0.0
        %v3045 = vmax.f32 %v3041, 0.0
        %3046 = vst [vmem:[%s375] sm:$0xff] %v3042
        %3047 = vst [vmem:[%s375 + $0x8] sm:$0xff] %v3043
        %3048 = vst [vmem:[%s375 + $0x10] sm:$0xff] %v3044
        %3049 = vst [vmem:[%s375 + $0x18] sm:$0xff] %v3045
        %s3050 = sand.u32 %s186, 1
        %s3051 = scalar_lea.sflag [#allocation5], %s3050
        %s3052 = sand.u32 %s186, 1
        %s3053 = smul.addr %s3052, 32
        %s3054 = scalar_lea.vmem [#allocation11], %s3053
        // Predicated region
        $region65: #{tpu_custom_call.1} parent=39 // pred_check
          %p3055 = pneg %p196
        $region66: #{tpu_custom_call.1} parent=39 // pred_check_branch
          %3057 = sbr.rel (%p3055) target = $region68
        $region67: #{tpu_custom_call.1} parent=39 // pred_region
          %s3059 = ssub.s32 512, 512
          %3060 = vsyncadd %s3051, %s3059
          %s3061 = smul.addr %s30, 8
          %s3062 = sadd.s32 %s31, %s3061
          %s3063 = smul.addr %s3062, 128
          %s3064 = scalar_lea.hbm %s5, %s3063
          %s3065 = sshll.u32 %s3054, 4
          %s3066 = int_to_ptr.vmem [resolvable:$true] %s3065
          %3071 = dma.vmem_to_hbm [thread:$0]  %s3066, 512, %s3064, %s3051, 128, 256, 8
        $region68: #{tpu_custom_call.1} parent=39 // pred_fallthru
          _
      $region40: #{tpu_custom_call.1} parent=5 // pred_fallthru
        _
      %p3072 = scmp.le.s32.totalorder 2, %s21
      // Predicated region
      $region69: #{tpu_custom_call.1} parent=5 // pred_check
        %p3073 = pneg %p3072
      $region70: #{tpu_custom_call.1} parent=5 // pred_check_branch
        %3075 = sbr.rel (%p3073) target = $region72
      $region71: #{tpu_custom_call.1} parent=5 // pred_region
        %s3076 = ssub.s32 %s21, 2
        // Predicated region
        $region73: #{tpu_custom_call.1} parent=71 // pred_check
          %p3077 = pneg %p202
        $region74: #{tpu_custom_call.1} parent=71 // pred_check_branch
          %3079 = sbr.rel (%p3077) target = $region76
        $region75: #{tpu_custom_call.1} parent=71 // pred_region
          %s3080 = sand.u32 %s187, 1
          %s3081 = scalar_lea.sflag [#allocation5], %s3080
          %s3082 = sand.u32 %s187, 1
          %s3083 = smul.addr %s3082, 32
          %s3084 = scalar_lea.vmem [#allocation11], %s3083
          %3085 = dma.done %s3081, 512
        $region76: #{tpu_custom_call.1} parent=71 // pred_fallthru
          _
      $region72: #{tpu_custom_call.1} parent=5 // pred_fallthru
        _
    $region6: #{tpu_custom_call.1} parent=1 // loop_footer
      %s25 = sadd.s32 1, %s21
    $region7: #{tpu_custom_call.1} parent=1 // loop_footer_branch
      %20 = sbr.rel target = $region3
    $region8: #{tpu_custom_call.1} parent=1 // loop_exit
      _
    %3086 = vsyncpa [#allocation4], 1
    %s3087 = scalar_lea.sflag [#allocation4], 1
    %3088 = vsyncpa %s3087, 1
    %3089 = vsyncpa [#allocation7], 1
    %s3090 = scalar_lea.sflag [#allocation7], 1
    %3091 = vsyncpa %s3090, 1
    %3092 = vsyncpa [#allocation10], 1
    %3093 = vsyncpa [#allocation5], 1
    %s3094 = scalar_lea.sflag [#allocation5], 1
    %3095 = vsyncpa %s3094, 1

</llo_original>
